<compile_context>
chip_gen: v5e
topology: v5e:2x2
jax: 0.10.0
libtpu: 0.0.40
codegen_flags: <defaults>
</compile_context>

<pallas_src>
import functools

import jax
import jax.numpy as jnp
from jax import lax
from jax.experimental import pallas as pl
from jax.experimental.pallas import tpu as pltpu


# ----------------------------------------------------------------------------
# Fused kernel: conv1 -> conv2 -> (upsample+concat+1x1 head), one batch / step
# ----------------------------------------------------------------------------
def _od3d_fused_kernel(x_ref, w1_ref, b1_ref, w2_ref, b2_ref,
                       wh1_ref, wh2_ref, bh_ref, o_ref, f1s_ref,
                       *, cin, c1, ho1, ho2, wo2, nd_dots):
    """Layouts (one batch element per grid step):

    x_ref  : (ho1+1, 4, wo2, 3*cin) bf16, x_ref[p, 2r+t, q, kj*cin+c] = x_pad[2p+r, 4q+2t+kj, c]
             (H paired by 2, output-col parity t split, 3 W-taps pre-expanded)
    f1s_ref: (ho2+1, 2, wo2, 3*c1) bf16 scratch,
             f1s[p, rr, q, kj*c1+c] = f1_pad[2p+rr, 2q+kj, c]   (zero-padded f1)
    o_ref  : (ho2, wo2, 4*cout) f32, 2x2 pixel block packed into 128 lanes
    """
    f32, bf16 = jnp.float32, jnp.bfloat16

    def mm(a, w):
        # a: rank-3 (.., .., K) bf16 value, w: (K, N) bf16 -> f32 accumulation.
        if nd_dots:  # review item: contract the minor dim of the 3-D operand directly
            return lax.dot_general(a, w, (((a.ndim - 1,), (0,)), ((), ())),
                                   preferred_element_type=f32)
        out2 = lax.dot_general(a.reshape(-1, a.shape[-1]), w,
                               (((1,), (0,)), ((), ())), preferred_element_type=f32)
        return out2.reshape(a.shape[:-1] + (w.shape[-1],))

    # ---------------- conv1: 3x3 / stride 2 / pad 1, cin -> c1, ReLU ----------------
    # 3 dense per-ki taps (no phases, no concat); each is a full-width unit-stride slice.
    def x_tap(p0, r):
        v = x_ref[pl.ds(p0, ho1), pl.ds(2 * r, 2), :, :]       # (ho1, 2, wo2, 3*cin)
        return v.reshape(ho1 * 2, wo2, 3 * cin)                # free leading-dim merge

    acc1 = mm(x_tap(0, 0), w1_ref[0, :, :])
    acc1 = acc1 + mm(x_tap(0, 1), w1_ref[1, :, :])
    acc1 = acc1 + mm(x_tap(1, 0), w1_ref[2, :, :])
    f1 = jnp.maximum(acc1 + b1_ref[...], 0.0)                  # (ho1*2, wo2, c1) f32

    # -------- stage f1 (bf16) into the H-paired / W-3-expanded padded scratch --------
    f1b = f1.astype(bf16)                                      # reused by head matmul
    f1b4 = f1b.reshape(ho2, 4, wo2, c1)                        # dim1 = rh*2 + t (free)

    # zero borders rewritten every step (scratch is per-core; keeps "parallel" safe)
    f1s_ref[0, 0, :, :] = jnp.zeros((wo2, 3 * c1), bf16)               # padded row 0
    f1s_ref[:, :, 0, pl.ds(0, c1)] = jnp.zeros((ho2 + 1, 2, c1), bf16)  # padded col 0
    # interior: even f1 rows -> (p, rr=1); odd f1 rows -> (p+1, rr=0)
    f1s_ref[pl.ds(0, ho2), 1, :, pl.ds(c1, c1)] = f1b4[:, 0]           # kj=1 <- even cols
    f1s_ref[pl.ds(0, ho2), 1, :, pl.ds(2 * c1, c1)] = f1b4[:, 1]       # kj=2 <- odd cols
    f1s_ref[pl.ds(0, ho2), 1, pl.ds(1, wo2 - 1), pl.ds(0, c1)] = f1b4[:, 1, :wo2 - 1]
    f1s_ref[pl.ds(1, ho2), 0, :, pl.ds(c1, c1)] = f1b4[:, 2]
    f1s_ref[pl.ds(1, ho2), 0, :, pl.ds(2 * c1, c1)] = f1b4[:, 3]
    f1s_ref[pl.ds(1, ho2), 0, pl.ds(1, wo2 - 1), pl.ds(0, c1)] = f1b4[:, 3, :wo2 - 1]

    # ---------------- conv2: 3x3 / stride 2 / pad 1, c1 -> c2, ReLU ------------------
    # 3 dense 48-lane per-ki slices, 3 matmuls accumulated in f32 (no 144-lane concat).
    acc2 = mm(f1s_ref[pl.ds(0, ho2), 0, :, :], w2_ref[0, :, :])
    acc2 = acc2 + mm(f1s_ref[pl.ds(0, ho2), 1, :, :], w2_ref[1, :, :])
    acc2 = acc2 + mm(f1s_ref[pl.ds(1, ho2), 0, :, :], w2_ref[2, :, :])
    f2 = jnp.maximum(acc2 + b2_ref[...], 0.0)                  # (ho2, wo2, c2) f32

    # -------- head: 1x1 conv on concat([f1, upsample2x(f2)]), ReLU -------------------
    # out = relu(f1 @ Wh1 + up2(f2 @ Wh2 + bh)); upsample fused as a broadcast-add.
    f2c = mm(f2.astype(bf16), wh2_ref[...]) + bh_ref[...]      # (ho2, wo2, cout), bias once
    hf1 = mm(f1b, wh1_ref[...])                                # (ho1*2, wo2, cout)
    out4 = jnp.maximum(hf1.reshape(ho2, 4, wo2, hf1.shape[-1]) + f2c[:, None], 0.0)

    # pack the 2x2 output pixel block into 4*cout = 128 lanes -> dense, unmasked store
    o_ref[...] = jnp.concatenate(
        [out4[:, 0], out4[:, 1], out4[:, 2], out4[:, 3]], axis=-1)


# ----------------------------------------------------------------------------
# Wrapper: layout prep (3x W-tap expansion, H/W parity packing) + one pallas_call
# ----------------------------------------------------------------------------
def init_params(c_in=4, c1=16, c2=32, c_out=32, seed=0):
    ks = jax.random.split(jax.random.PRNGKey(seed), 6)
    s = 0.1
    return {
        "bb1_w": s * jax.random.normal(ks[0], (c1, c_in, 3, 3), jnp.float32),
        "bb1_b": s * jax.random.normal(ks[1], (c1,), jnp.float32),
        "bb2_w": s * jax.random.normal(ks[2], (c2, c1, 3, 3), jnp.float32),
        "bb2_b": s * jax.random.normal(ks[3], (c2,), jnp.float32),
        "head_w": s * jax.random.normal(ks[4], (c_out, c1 + c2, 1, 1), jnp.float32),
        "head_b": s * jax.random.normal(ks[5], (c_out,), jnp.float32),
    }


@functools.partial(jax.jit, static_argnames=("nd_dots",))
def od3d_model_forward(params, x_nchw, nd_dots=True):
    N, cin, H, W = x_nchw.shape
    assert H % 4 == 0 and W % 4 == 0, "spatial dims must be divisible by 4"
    c1 = params["bb1_w"].shape[0]
    c2 = params["bb2_w"].shape[0]
    cout = params["head_w"].shape[0]
    ho1, wo1 = H // 2, W // 2
    ho2, wo2 = H // 4, W // 4

    # NCHW -> NHWC, zero-pad by 1, pre-expand the 3 W-taps of the stride-2 conv
    # (3x duplication along W only) with output-col parity t split, then pair H rows.
    x = jnp.transpose(x_nchw, (0, 2, 3, 1))
    xp = jnp.pad(x, ((0, 0), (1, 1), (1, 1), (0, 0)))            # (N, H+2, W+2, cin)
    cols = []
    for t in range(2):
        taps = [xp[:, :, 2 * t + kj: 2 * t + kj + 4 * wo2 - 3: 4, :] for kj in range(3)]
        cols.append(jnp.stack(taps, axis=3))                     # (N, H+2, wo2, 3, cin)
    x3 = jnp.stack(cols, axis=2)                                 # (N, H+2, 2, wo2, 3, cin)
    x3 = x3.reshape(N, ho1 + 1, 4, wo2, 3 * cin).astype(jnp.bfloat16)

    # conv weights as per-ki matmul slabs; row order (kj, cin) matches the kernel taps.
    w1 = jnp.transpose(params["bb1_w"], (2, 3, 1, 0)).reshape(3, 3 * cin, c1).astype(jnp.bfloat16)
    w2 = jnp.transpose(params["bb2_w"], (2, 3, 1, 0)).reshape(3, 3 * c1, c2).astype(jnp.bfloat16)
    wh = params["head_w"][:, :, 0, 0]                            # (cout, c1 + c2)
    wh1 = jnp.transpose(wh[:, :c1]).astype(jnp.bfloat16)         # (c1, cout)  f1 branch
    wh2 = jnp.transpose(wh[:, c1:]).astype(jnp.bfloat16)         # (c2, cout)  f2 branch
    b1 = params["bb1_b"].reshape(1, c1)
    b2 = params["bb2_b"].reshape(1, c2)
    bh = params["head_b"].reshape(1, cout)

    kernel = functools.partial(_od3d_fused_kernel, cin=cin, c1=c1,
                               ho1=ho1, ho2=ho2, wo2=wo2, nd_dots=nd_dots)

    flops = 2 * N * (ho1 * wo1 * 9 * cin * c1 + ho2 * wo2 * 9 * c1 * c2
                     + ho1 * wo1 * c1 * cout + ho2 * wo2 * c2 * cout)
    bytes_accessed = (2 * (x3.size + w1.size + w2.size + wh1.size + wh2.size)
                      + 4 * (b1.size + b2.size + bh.size + N * ho1 * wo1 * cout))

    out = pl.pallas_call(
        kernel,
        out_shape=jax.ShapeDtypeStruct((N, ho2, wo2, 4 * cout), jnp.float32),
        grid=(N,),
        in_specs=[
            pl.BlockSpec((None, ho1 + 1, 4, wo2, 3 * cin), lambda n: (n, 0, 0, 0, 0)),
            pl.BlockSpec((3, 3 * cin, c1), lambda n: (0, 0, 0)),
            pl.BlockSpec((1, c1), lambda n: (0, 0)),
            pl.BlockSpec((3, 3 * c1, c2), lambda n: (0, 0, 0)),
            pl.BlockSpec((1, c2), lambda n: (0, 0)),
            pl.BlockSpec((c1, cout), lambda n: (0, 0)),
            pl.BlockSpec((c2, cout), lambda n: (0, 0)),
            pl.BlockSpec((1, cout), lambda n: (0, 0)),
        ],
        out_specs=pl.BlockSpec((None, ho2, wo2, 4 * cout), lambda n: (n, 0, 0, 0)),
        scratch_shapes=[pltpu.VMEM((ho2 + 1, 2, wo2, 3 * c1), jnp.bfloat16)],
        compiler_params=pltpu.CompilerParams(
            dimension_semantics=("parallel",),
            vmem_limit_bytes=48 * 1024 * 1024),
        cost_estimate=pl.CostEstimate(flops=int(flops), transcendentals=0,
                                      bytes_accessed=int(bytes_accessed)),
    )(x3, w1, b1, w2, b2, wh1, wh2, bh)

    # un-pack the 2x2 pixel block from the lane dim (free wrapper-side reshapes)
    out = out.reshape(N, ho2, wo2, 2, 2, cout)
    out = jnp.transpose(out, (0, 1, 3, 2, 4, 5)).reshape(N, ho1, wo1, cout)
    return jnp.transpose(out, (0, 3, 1, 2))                     # NCHW like the module


# ----------------------------------------------------------------------------
# Pure-JAX reference (lax conv) for correctness checking
# ----------------------------------------------------------------------------
def reference_forward(params, x_nchw):
    dn = lax.conv_dimension_numbers(x_nchw.shape, params["bb1_w"].shape,
                                    ("NCHW", "OIHW", "NCHW"))

    def conv(x, w, b, stride, pad, relu=True):
        y = lax.conv_general_dilated(x, w, (stride, stride),
                                     [(pad, pad), (pad, pad)],
                                     dimension_numbers=dn)
        y = y + b.reshape(1, -1, 1, 1)
        return jnp.maximum(y, 0.0) if relu else y

    f1 = conv(x_nchw, params["bb1_w"], params["bb1_b"], 2, 1)
    f2 = conv(f1, params["bb2_w"], params["bb2_b"], 2, 1)
    f2_up = jnp.repeat(jnp.repeat(f2, 2, axis=2), 2, axis=3)
    fused = jnp.concatenate([f1, f2_up], axis=1)
    return conv(fused, params["head_w"], params["head_b"], 1, 0)


if __name__ == "__main__":
    N, C, H, W = 2, 4, 16, 16
    x = jax.random.normal(jax.random.PRNGKey(0), (N, C, H, W), jnp.float32)
    params = init_params(c_in=C)

    ref = jax.block_until_ready(reference_forward(params, x))

    # Primary path uses rank-3 dot_general operands (no (M,K)-collapse relayouts).
    # If this Mosaic build rejects >2-D dot operands, fall back to 2-D dots (same math).
    try:
        out = jax.block_until_ready(od3d_model_forward(params, x, nd_dots=True))
    except Exception:
        out = jax.block_until_ready(od3d_model_forward(params, x, nd_dots=False))

    assert out.shape == (N, 32, H // 2, W // 2), out.shape
    # bf16 matmul operands (f32 accumulation) -> loose tolerance vs the f32 reference.
    assert jnp.max(jnp.abs(out - ref)) < 5e-2

    print("KERNEL_OK")
</pallas_src>

<mosaic_0001>
module attributes {stable_mosaic.version = 11 : i64} {
  func.func @_od3d_fused_kernel(%arg0: i32, %arg1: memref<1x9x4x4x12xbf16, #tpu.memory_space<vmem>>, %arg2: memref<3x12x16xbf16, #tpu.memory_space<vmem>>, %arg3: memref<1x16xf32, #tpu.memory_space<vmem>>, %arg4: memref<3x48x32xbf16, #tpu.memory_space<vmem>>, %arg5: memref<1x32xf32, #tpu.memory_space<vmem>>, %arg6: memref<16x32xbf16, #tpu.memory_space<vmem>>, %arg7: memref<32x32xbf16, #tpu.memory_space<vmem>>, %arg8: memref<1x32xf32, #tpu.memory_space<vmem>>, %arg9: memref<1x4x4x128xf32, #tpu.memory_space<vmem>>, %arg10: memref<5x2x4x48xbf16, #tpu.memory_space<vmem>>) attributes {dimension_semantics = [#tpu.dimension_semantics<parallel>], iteration_bounds = array<i64: 2>, scalar_prefetch = 0 : i64, scratch_operands = 1 : i64, tpu.core_type = #tpu.core_type<tc>, window_params = [{transform_indices = @transform_0, window_bounds = array<i64: 1, 9, 4, 4, 12>}, {pipeline_mode = #tpu.pipeline_mode<synchronous>, transform_indices = @transform_1, window_bounds = array<i64: 3, 12, 16>}, {pipeline_mode = #tpu.pipeline_mode<synchronous>, transform_indices = @transform_2, window_bounds = array<i64: 1, 16>}, {pipeline_mode = #tpu.pipeline_mode<synchronous>, transform_indices = @transform_3, window_bounds = array<i64: 3, 48, 32>}, {pipeline_mode = #tpu.pipeline_mode<synchronous>, transform_indices = @transform_4, window_bounds = array<i64: 1, 32>}, {pipeline_mode = #tpu.pipeline_mode<synchronous>, transform_indices = @transform_5, window_bounds = array<i64: 16, 32>}, {pipeline_mode = #tpu.pipeline_mode<synchronous>, transform_indices = @transform_6, window_bounds = array<i64: 32, 32>}, {pipeline_mode = #tpu.pipeline_mode<synchronous>, transform_indices = @transform_7, window_bounds = array<i64: 1, 32>}, {transform_indices = @transform_8, window_bounds = array<i64: 1, 4, 4, 128>}]} {
    %c0 = arith.constant 0 : index
    %c0_0 = arith.constant 0 : index
    %c0_1 = arith.constant 0 : index
    %c0_2 = arith.constant 0 : index
    %c0_3 = arith.constant 0 : index
    %0 = vector.load %arg1[%c0, %c0_0, %c0_1, %c0_2, %c0_3] : memref<1x9x4x4x12xbf16, #tpu.memory_space<vmem>>, vector<1x8x2x4x12xbf16>
    %1 = vector.shape_cast %0 : vector<1x8x2x4x12xbf16> to vector<8x2x4x12xbf16>
    %2 = vector.shape_cast %1 : vector<8x2x4x12xbf16> to vector<16x4x12xbf16>
    %c0_4 = arith.constant 0 : index
    %c0_5 = arith.constant 0 : index
    %c0_6 = arith.constant 0 : index
    %3 = vector.load %arg2[%c0_4, %c0_5, %c0_6] : memref<3x12x16xbf16, #tpu.memory_space<vmem>>, vector<1x12x16xbf16>
    %4 = vector.shape_cast %3 : vector<1x12x16xbf16> to vector<12x16xbf16>
    %cst = arith.constant dense<0.000000e+00> : vector<16x4x16xf32>
    %5 = tpu.matmul %2, %4, %cst {dimension_numbers = #tpu.dot_dimension_numbers<[2], [0], [0, 1], [1], [0, 0, 0, 1, 1, 1], [], []>} : vector<16x4x12xbf16>, vector<12x16xbf16>, vector<16x4x16xf32> -> vector<16x4x16xf32>
    %c0_7 = arith.constant 0 : index
    %c0_8 = arith.constant 0 : index
    %c2 = arith.constant 2 : index
    %c0_9 = arith.constant 0 : index
    %c0_10 = arith.constant 0 : index
    %6 = vector.load %arg1[%c0_7, %c0_8, %c2, %c0_9, %c0_10] : memref<1x9x4x4x12xbf16, #tpu.memory_space<vmem>>, vector<1x8x2x4x12xbf16>
    %7 = vector.shape_cast %6 : vector<1x8x2x4x12xbf16> to vector<8x2x4x12xbf16>
    %8 = vector.shape_cast %7 : vector<8x2x4x12xbf16> to vector<16x4x12xbf16>
    %c1 = arith.constant 1 : index
    %c0_11 = arith.constant 0 : index
    %c0_12 = arith.constant 0 : index
    %9 = vector.load %arg2[%c1, %c0_11, %c0_12] : memref<3x12x16xbf16, #tpu.memory_space<vmem>>, vector<1x12x16xbf16>
    %10 = vector.shape_cast %9 : vector<1x12x16xbf16> to vector<12x16xbf16>
    %cst_13 = arith.constant dense<0.000000e+00> : vector<16x4x16xf32>
    %11 = tpu.matmul %8, %10, %cst_13 {dimension_numbers = #tpu.dot_dimension_numbers<[2], [0], [0, 1], [1], [0, 0, 0, 1, 1, 1], [], []>} : vector<16x4x12xbf16>, vector<12x16xbf16>, vector<16x4x16xf32> -> vector<16x4x16xf32>
    %12 = arith.addf %5, %11 : vector<16x4x16xf32>
    %c0_14 = arith.constant 0 : index
    %c1_15 = arith.constant 1 : index
    %c0_16 = arith.constant 0 : index
    %c0_17 = arith.constant 0 : index
    %c0_18 = arith.constant 0 : index
    %13 = vector.load %arg1[%c0_14, %c1_15, %c0_16, %c0_17, %c0_18] : memref<1x9x4x4x12xbf16, #tpu.memory_space<vmem>>, vector<1x8x2x4x12xbf16>
    %14 = vector.shape_cast %13 : vector<1x8x2x4x12xbf16> to vector<8x2x4x12xbf16>
    %15 = vector.shape_cast %14 : vector<8x2x4x12xbf16> to vector<16x4x12xbf16>
    %c2_19 = arith.constant 2 : index
    %c0_20 = arith.constant 0 : index
    %c0_21 = arith.constant 0 : index
    %16 = vector.load %arg2[%c2_19, %c0_20, %c0_21] : memref<3x12x16xbf16, #tpu.memory_space<vmem>>, vector<1x12x16xbf16>
    %17 = vector.shape_cast %16 : vector<1x12x16xbf16> to vector<12x16xbf16>
    %cst_22 = arith.constant dense<0.000000e+00> : vector<16x4x16xf32>
    %18 = tpu.matmul %15, %17, %cst_22 {dimension_numbers = #tpu.dot_dimension_numbers<[2], [0], [0, 1], [1], [0, 0, 0, 1, 1, 1], [], []>} : vector<16x4x12xbf16>, vector<12x16xbf16>, vector<16x4x16xf32> -> vector<16x4x16xf32>
    %19 = arith.addf %12, %18 : vector<16x4x16xf32>
    %c0_23 = arith.constant 0 : index
    %c0_24 = arith.constant 0 : index
    %20 = vector.load %arg3[%c0_23, %c0_24] : memref<1x16xf32, #tpu.memory_space<vmem>>, vector<1x16xf32>
    %21 = vector.shape_cast %20 : vector<1x16xf32> to vector<1x1x16xf32>
    %22 = vector.broadcast %21 : vector<1x1x16xf32> to vector<16x4x16xf32>
    %23 = arith.addf %19, %22 : vector<16x4x16xf32>
    %cst_25 = arith.constant 0.000000e+00 : f32
    %24 = vector.broadcast %cst_25 : f32 to vector<16x4x16xf32>
    %25 = arith.maximumf %23, %24 : vector<16x4x16xf32>
    %26 = arith.truncf %25 : vector<16x4x16xf32> to vector<16x4x16xbf16>
    %27 = vector.shape_cast %26 : vector<16x4x16xbf16> to vector<4x4x4x16xbf16>
    %cst_26 = arith.constant 0.000000e+00 : bf16
    %28 = vector.broadcast %cst_26 : bf16 to vector<4x48xbf16>
    %c0_27 = arith.constant 0 : index
    %c0_28 = arith.constant 0 : index
    %c0_29 = arith.constant 0 : index
    %c0_30 = arith.constant 0 : index
    %29 = vector.load %arg10[%c0_27, %c0_28, %c0_29, %c0_30] : memref<5x2x4x48xbf16, #tpu.memory_space<vmem>>, vector<1x1x4x48xbf16>
    %30 = vector.shape_cast %29 : vector<1x1x4x48xbf16> to vector<4x48xbf16>
    %31 = vector.shape_cast %28 : vector<4x48xbf16> to vector<1x1x4x48xbf16>
    tpu.vector_store %arg10[%c0_27, %c0_28, %c0_29, %c0_30], %31 {strides = array<i32>} : memref<5x2x4x48xbf16, #tpu.memory_space<vmem>>, vector<1x1x4x48xbf16>,
    %cst_31 = arith.constant 0.000000e+00 : bf16
    %32 = vector.broadcast %cst_31 : bf16 to vector<5x2x16xbf16>
    %c0_32 = arith.constant 0 : index
    %c0_33 = arith.constant 0 : index
    %c0_34 = arith.constant 0 : index
    %c0_35 = arith.constant 0 : index
    %33 = vector.load %arg10[%c0_32, %c0_33, %c0_34, %c0_35] : memref<5x2x4x48xbf16, #tpu.memory_space<vmem>>, vector<5x2x1x16xbf16>
    %34 = vector.shape_cast %33 : vector<5x2x1x16xbf16> to vector<5x2x16xbf16>
    %35 = vector.shape_cast %32 : vector<5x2x16xbf16> to vector<5x2x1x16xbf16>
    tpu.vector_store %arg10[%c0_32, %c0_33, %c0_34, %c0_35], %35 {strides = array<i32>} : memref<5x2x4x48xbf16, #tpu.memory_space<vmem>>, vector<5x2x1x16xbf16>,
    %36 = vector.extract_strided_slice %27 {offsets = [0, 0, 0, 0], sizes = [4, 1, 4, 16], strides = [1, 1, 1, 1]} : vector<4x4x4x16xbf16> to vector<4x1x4x16xbf16>
    %37 = vector.shape_cast %36 : vector<4x1x4x16xbf16> to vector<4x4x16xbf16>
    %c0_36 = arith.constant 0 : index
    %c1_37 = arith.constant 1 : index
    %c0_38 = arith.constant 0 : index
    %c16 = arith.constant 16 : index
    %38 = vector.load %arg10[%c0_36, %c1_37, %c0_38, %c16] : memref<5x2x4x48xbf16, #tpu.memory_space<vmem>>, vector<4x1x4x16xbf16>
    %39 = vector.shape_cast %38 : vector<4x1x4x16xbf16> to vector<4x4x16xbf16>
    %40 = vector.shape_cast %37 : vector<4x4x16xbf16> to vector<4x1x4x16xbf16>
    tpu.vector_store %arg10[%c0_36, %c1_37, %c0_38, %c16], %40 {strides = array<i32>} : memref<5x2x4x48xbf16, #tpu.memory_space<vmem>>, vector<4x1x4x16xbf16>,
    %41 = vector.extract_strided_slice %27 {offsets = [0, 1, 0, 0], sizes = [4, 1, 4, 16], strides = [1, 1, 1, 1]} : vector<4x4x4x16xbf16> to vector<4x1x4x16xbf16>
    %42 = vector.shape_cast %41 : vector<4x1x4x16xbf16> to vector<4x4x16xbf16>
    %c0_39 = arith.constant 0 : index
    %c1_40 = arith.constant 1 : index
    %c0_41 = arith.constant 0 : index
    %c32 = arith.constant 32 : index
    %43 = vector.load %arg10[%c0_39, %c1_40, %c0_41, %c32] : memref<5x2x4x48xbf16, #tpu.memory_space<vmem>>, vector<4x1x4x16xbf16>
    %44 = vector.shape_cast %43 : vector<4x1x4x16xbf16> to vector<4x4x16xbf16>
    %45 = vector.shape_cast %42 : vector<4x4x16xbf16> to vector<4x1x4x16xbf16>
    tpu.vector_store %arg10[%c0_39, %c1_40, %c0_41, %c32], %45 {strides = array<i32>} : memref<5x2x4x48xbf16, #tpu.memory_space<vmem>>, vector<4x1x4x16xbf16>,
    %46 = vector.extract_strided_slice %27 {offsets = [0, 1, 0, 0], sizes = [4, 1, 3, 16], strides = [1, 1, 1, 1]} : vector<4x4x4x16xbf16> to vector<4x1x3x16xbf16>
    %47 = vector.shape_cast %46 : vector<4x1x3x16xbf16> to vector<4x3x16xbf16>
    %c0_42 = arith.constant 0 : index
    %c1_43 = arith.constant 1 : index
    %c1_44 = arith.constant 1 : index
    %c0_45 = arith.constant 0 : index
    %48 = vector.load %arg10[%c0_42, %c1_43, %c1_44, %c0_45] : memref<5x2x4x48xbf16, #tpu.memory_space<vmem>>, vector<4x1x3x16xbf16>
    %49 = vector.shape_cast %48 : vector<4x1x3x16xbf16> to vector<4x3x16xbf16>
    %50 = vector.shape_cast %47 : vector<4x3x16xbf16> to vector<4x1x3x16xbf16>
    tpu.vector_store %arg10[%c0_42, %c1_43, %c1_44, %c0_45], %50 {strides = array<i32>} : memref<5x2x4x48xbf16, #tpu.memory_space<vmem>>, vector<4x1x3x16xbf16>,
    %51 = vector.extract_strided_slice %27 {offsets = [0, 2, 0, 0], sizes = [4, 1, 4, 16], strides = [1, 1, 1, 1]} : vector<4x4x4x16xbf16> to vector<4x1x4x16xbf16>
    %52 = vector.shape_cast %51 : vector<4x1x4x16xbf16> to vector<4x4x16xbf16>
    %c1_46 = arith.constant 1 : index
    %c0_47 = arith.constant 0 : index
    %c0_48 = arith.constant 0 : index
    %c16_49 = arith.constant 16 : index
    %53 = vector.load %arg10[%c1_46, %c0_47, %c0_48, %c16_49] : memref<5x2x4x48xbf16, #tpu.memory_space<vmem>>, vector<4x1x4x16xbf16>
    %54 = vector.shape_cast %53 : vector<4x1x4x16xbf16> to vector<4x4x16xbf16>
    %55 = vector.shape_cast %52 : vector<4x4x16xbf16> to vector<4x1x4x16xbf16>
    tpu.vector_store %arg10[%c1_46, %c0_47, %c0_48, %c16_49], %55 {strides = array<i32>} : memref<5x2x4x48xbf16, #tpu.memory_space<vmem>>, vector<4x1x4x16xbf16>,
    %56 = vector.extract_strided_slice %27 {offsets = [0, 3, 0, 0], sizes = [4, 1, 4, 16], strides = [1, 1, 1, 1]} : vector<4x4x4x16xbf16> to vector<4x1x4x16xbf16>
    %57 = vector.shape_cast %56 : vector<4x1x4x16xbf16> to vector<4x4x16xbf16>
    %c1_50 = arith.constant 1 : index
    %c0_51 = arith.constant 0 : index
    %c0_52 = arith.constant 0 : index
    %c32_53 = arith.constant 32 : index
    %58 = vector.load %arg10[%c1_50, %c0_51, %c0_52, %c32_53] : memref<5x2x4x48xbf16, #tpu.memory_space<vmem>>, vector<4x1x4x16xbf16>
    %59 = vector.shape_cast %58 : vector<4x1x4x16xbf16> to vector<4x4x16xbf16>
    %60 = vector.shape_cast %57 : vector<4x4x16xbf16> to vector<4x1x4x16xbf16>
    tpu.vector_store %arg10[%c1_50, %c0_51, %c0_52, %c32_53], %60 {strides = array<i32>} : memref<5x2x4x48xbf16, #tpu.memory_space<vmem>>, vector<4x1x4x16xbf16>,
    %61 = vector.extract_strided_slice %27 {offsets = [0, 3, 0, 0], sizes = [4, 1, 3, 16], strides = [1, 1, 1, 1]} : vector<4x4x4x16xbf16> to vector<4x1x3x16xbf16>
    %62 = vector.shape_cast %61 : vector<4x1x3x16xbf16> to vector<4x3x16xbf16>
    %c1_54 = arith.constant 1 : index
    %c0_55 = arith.constant 0 : index
    %c1_56 = arith.constant 1 : index
    %c0_57 = arith.constant 0 : index
    %63 = vector.load %arg10[%c1_54, %c0_55, %c1_56, %c0_57] : memref<5x2x4x48xbf16, #tpu.memory_space<vmem>>, vector<4x1x3x16xbf16>
    %64 = vector.shape_cast %63 : vector<4x1x3x16xbf16> to vector<4x3x16xbf16>
    %65 = vector.shape_cast %62 : vector<4x3x16xbf16> to vector<4x1x3x16xbf16>
    tpu.vector_store %arg10[%c1_54, %c0_55, %c1_56, %c0_57], %65 {strides = array<i32>} : memref<5x2x4x48xbf16, #tpu.memory_space<vmem>>, vector<4x1x3x16xbf16>,
    %c0_58 = arith.constant 0 : index
    %c0_59 = arith.constant 0 : index
    %c0_60 = arith.constant 0 : index
    %c0_61 = arith.constant 0 : index
    %66 = vector.load %arg10[%c0_58, %c0_59, %c0_60, %c0_61] : memref<5x2x4x48xbf16, #tpu.memory_space<vmem>>, vector<4x1x4x48xbf16>
    %67 = vector.shape_cast %66 : vector<4x1x4x48xbf16> to vector<4x4x48xbf16>
    %c0_62 = arith.constant 0 : index
    %c0_63 = arith.constant 0 : index
    %c0_64 = arith.constant 0 : index
    %68 = vector.load %arg4[%c0_62, %c0_63, %c0_64] : memref<3x48x32xbf16, #tpu.memory_space<vmem>>, vector<1x48x32xbf16>
    %69 = vector.shape_cast %68 : vector<1x48x32xbf16> to vector<48x32xbf16>
    %cst_65 = arith.constant dense<0.000000e+00> : vector<4x4x32xf32>
    %70 = tpu.matmul %67, %69, %cst_65 {dimension_numbers = #tpu.dot_dimension_numbers<[2], [0], [0, 1], [1], [0, 0, 0, 1, 1, 1], [], []>} : vector<4x4x48xbf16>, vector<48x32xbf16>, vector<4x4x32xf32> -> vector<4x4x32xf32>
    %c0_66 = arith.constant 0 : index
    %c1_67 = arith.constant 1 : index
    %c0_68 = arith.constant 0 : index
    %c0_69 = arith.constant 0 : index
    %71 = vector.load %arg10[%c0_66, %c1_67, %c0_68, %c0_69] : memref<5x2x4x48xbf16, #tpu.memory_space<vmem>>, vector<4x1x4x48xbf16>
    %72 = vector.shape_cast %71 : vector<4x1x4x48xbf16> to vector<4x4x48xbf16>
    %c1_70 = arith.constant 1 : index
    %c0_71 = arith.constant 0 : index
    %c0_72 = arith.constant 0 : index
    %73 = vector.load %arg4[%c1_70, %c0_71, %c0_72] : memref<3x48x32xbf16, #tpu.memory_space<vmem>>, vector<1x48x32xbf16>
    %74 = vector.shape_cast %73 : vector<1x48x32xbf16> to vector<48x32xbf16>
    %cst_73 = arith.constant dense<0.000000e+00> : vector<4x4x32xf32>
    %75 = tpu.matmul %72, %74, %cst_73 {dimension_numbers = #tpu.dot_dimension_numbers<[2], [0], [0, 1], [1], [0, 0, 0, 1, 1, 1], [], []>} : vector<4x4x48xbf16>, vector<48x32xbf16>, vector<4x4x32xf32> -> vector<4x4x32xf32>
    %76 = arith.addf %70, %75 : vector<4x4x32xf32>
    %c1_74 = arith.constant 1 : index
    %c0_75 = arith.constant 0 : index
    %c0_76 = arith.constant 0 : index
    %c0_77 = arith.constant 0 : index
    %77 = vector.load %arg10[%c1_74, %c0_75, %c0_76, %c0_77] : memref<5x2x4x48xbf16, #tpu.memory_space<vmem>>, vector<4x1x4x48xbf16>
    %78 = vector.shape_cast %77 : vector<4x1x4x48xbf16> to vector<4x4x48xbf16>
    %c2_78 = arith.constant 2 : index
    %c0_79 = arith.constant 0 : index
    %c0_80 = arith.constant 0 : index
    %79 = vector.load %arg4[%c2_78, %c0_79, %c0_80] : memref<3x48x32xbf16, #tpu.memory_space<vmem>>, vector<1x48x32xbf16>
    %80 = vector.shape_cast %79 : vector<1x48x32xbf16> to vector<48x32xbf16>
    %cst_81 = arith.constant dense<0.000000e+00> : vector<4x4x32xf32>
    %81 = tpu.matmul %78, %80, %cst_81 {dimension_numbers = #tpu.dot_dimension_numbers<[2], [0], [0, 1], [1], [0, 0, 0, 1, 1, 1], [], []>} : vector<4x4x48xbf16>, vector<48x32xbf16>, vector<4x4x32xf32> -> vector<4x4x32xf32>
    %82 = arith.addf %76, %81 : vector<4x4x32xf32>
    %c0_82 = arith.constant 0 : index
    %c0_83 = arith.constant 0 : index
    %83 = vector.load %arg5[%c0_82, %c0_83] : memref<1x32xf32, #tpu.memory_space<vmem>>, vector<1x32xf32>
    %84 = vector.shape_cast %83 : vector<1x32xf32> to vector<1x1x32xf32>
    %85 = vector.broadcast %84 : vector<1x1x32xf32> to vector<4x4x32xf32>
    %86 = arith.addf %82, %85 : vector<4x4x32xf32>
    %cst_84 = arith.constant 0.000000e+00 : f32
    %87 = vector.broadcast %cst_84 : f32 to vector<4x4x32xf32>
    %88 = arith.maximumf %86, %87 : vector<4x4x32xf32>
    %89 = arith.truncf %88 : vector<4x4x32xf32> to vector<4x4x32xbf16>
    %c0_85 = arith.constant 0 : index
    %c0_86 = arith.constant 0 : index
    %90 = vector.load %arg7[%c0_85, %c0_86] : memref<32x32xbf16, #tpu.memory_space<vmem>>, vector<32x32xbf16>
    %cst_87 = arith.constant dense<0.000000e+00> : vector<4x4x32xf32>
    %91 = tpu.matmul %89, %90, %cst_87 {dimension_numbers = #tpu.dot_dimension_numbers<[2], [0], [0, 1], [1], [0, 0, 0, 1, 1, 1], [], []>} : vector<4x4x32xbf16>, vector<32x32xbf16>, vector<4x4x32xf32> -> vector<4x4x32xf32>
    %c0_88 = arith.constant 0 : index
    %c0_89 = arith.constant 0 : index
    %92 = vector.load %arg8[%c0_88, %c0_89] : memref<1x32xf32, #tpu.memory_space<vmem>>, vector<1x32xf32>
    %93 = vector.shape_cast %92 : vector<1x32xf32> to vector<1x1x32xf32>
    %94 = vector.broadcast %93 : vector<1x1x32xf32> to vector<4x4x32xf32>
    %95 = arith.addf %91, %94 : vector<4x4x32xf32>
    %c0_90 = arith.constant 0 : index
    %c0_91 = arith.constant 0 : index
    %96 = vector.load %arg6[%c0_90, %c0_91] : memref<16x32xbf16, #tpu.memory_space<vmem>>, vector<16x32xbf16>
    %cst_92 = arith.constant dense<0.000000e+00> : vector<16x4x32xf32>
    %97 = tpu.matmul %26, %96, %cst_92 {dimension_numbers = #tpu.dot_dimension_numbers<[2], [0], [0, 1], [1], [0, 0, 0, 1, 1, 1], [], []>} : vector<16x4x16xbf16>, vector<16x32xbf16>, vector<16x4x32xf32> -> vector<16x4x32xf32>
    %98 = vector.shape_cast %97 : vector<16x4x32xf32> to vector<4x4x4x32xf32>
    %99 = vector.shape_cast %95 : vector<4x4x32xf32> to vector<4x1x4x32xf32>
    %100 = vector.broadcast %99 : vector<4x1x4x32xf32> to vector<4x4x4x32xf32>
    %101 = arith.addf %98, %100 : vector<4x4x4x32xf32>
    %cst_93 = arith.constant 0.000000e+00 : f32
    %102 = vector.broadcast %cst_93 : f32 to vector<4x4x4x32xf32>
    %103 = arith.maximumf %101, %102 : vector<4x4x4x32xf32>
    %104 = vector.extract_strided_slice %103 {offsets = [0, 0, 0, 0], sizes = [4, 1, 4, 32], strides = [1, 1, 1, 1]} : vector<4x4x4x32xf32> to vector<4x1x4x32xf32>
    %105 = vector.shape_cast %104 : vector<4x1x4x32xf32> to vector<4x4x32xf32>
    %106 = vector.extract_strided_slice %103 {offsets = [0, 1, 0, 0], sizes = [4, 1, 4, 32], strides = [1, 1, 1, 1]} : vector<4x4x4x32xf32> to vector<4x1x4x32xf32>
    %107 = vector.shape_cast %106 : vector<4x1x4x32xf32> to vector<4x4x32xf32>
    %108 = vector.extract_strided_slice %103 {offsets = [0, 2, 0, 0], sizes = [4, 1, 4, 32], strides = [1, 1, 1, 1]} : vector<4x4x4x32xf32> to vector<4x1x4x32xf32>
    %109 = vector.shape_cast %108 : vector<4x1x4x32xf32> to vector<4x4x32xf32>
    %110 = vector.extract_strided_slice %103 {offsets = [0, 3, 0, 0], sizes = [4, 1, 4, 32], strides = [1, 1, 1, 1]} : vector<4x4x4x32xf32> to vector<4x1x4x32xf32>
    %111 = vector.shape_cast %110 : vector<4x1x4x32xf32> to vector<4x4x32xf32>
    %112 = tpu.concatenate %105, %107, %109, %111 in 2 : vector<4x4x32xf32>, vector<4x4x32xf32>, vector<4x4x32xf32>, vector<4x4x32xf32> -> vector<4x4x128xf32>
    %c0_94 = arith.constant 0 : index
    %c0_95 = arith.constant 0 : index
    %c0_96 = arith.constant 0 : index
    %c0_97 = arith.constant 0 : index
    %113 = vector.load %arg9[%c0_94, %c0_95, %c0_96, %c0_97] : memref<1x4x4x128xf32, #tpu.memory_space<vmem>>, vector<1x4x4x128xf32>
    %114 = vector.shape_cast %113 : vector<1x4x4x128xf32> to vector<4x4x128xf32>
    %115 = vector.shape_cast %112 : vector<4x4x128xf32> to vector<1x4x4x128xf32>
    tpu.vector_store %arg9[%c0_94, %c0_95, %c0_96, %c0_97], %115 {strides = array<i32>} : memref<1x4x4x128xf32, #tpu.memory_space<vmem>>, vector<1x4x4x128xf32>,
    return
  }
  func.func @transform_0(%arg0: i32) -> (i32, i32, i32, i32, i32) {
    %c0_i32 = arith.constant 0 : i32
    %c0_i32_0 = arith.constant 0 : i32
    %c0_i32_1 = arith.constant 0 : i32
    %c0_i32_2 = arith.constant 0 : i32
    %c0_i32_3 = arith.constant 0 : i32
    return %arg0, %c0_i32, %c0_i32_0, %c0_i32_1, %c0_i32_2 : i32, i32, i32, i32, i32
  }
  func.func @transform_1(%arg0: i32) -> (i32, i32, i32) {
    %c0_i32 = arith.constant 0 : i32
    %c0_i32_0 = arith.constant 0 : i32
    %c0_i32_1 = arith.constant 0 : i32
    %c0_i32_2 = arith.constant 0 : i32
    return %c0_i32, %c0_i32_0, %c0_i32_1 : i32, i32, i32
  }
  func.func @transform_2(%arg0: i32) -> (i32, i32) {
    %c0_i32 = arith.constant 0 : i32
    %c0_i32_0 = arith.constant 0 : i32
    %c0_i32_1 = arith.constant 0 : i32
    return %c0_i32, %c0_i32_0 : i32, i32
  }
  func.func @transform_3(%arg0: i32) -> (i32, i32, i32) {
    %c0_i32 = arith.constant 0 : i32
    %c0_i32_0 = arith.constant 0 : i32
    %c0_i32_1 = arith.constant 0 : i32
    %c0_i32_2 = arith.constant 0 : i32
    return %c0_i32, %c0_i32_0, %c0_i32_1 : i32, i32, i32
  }
  func.func @transform_4(%arg0: i32) -> (i32, i32) {
    %c0_i32 = arith.constant 0 : i32
    %c0_i32_0 = arith.constant 0 : i32
    %c0_i32_1 = arith.constant 0 : i32
    return %c0_i32, %c0_i32_0 : i32, i32
  }
  func.func @transform_5(%arg0: i32) -> (i32, i32) {
    %c0_i32 = arith.constant 0 : i32
    %c0_i32_0 = arith.constant 0 : i32
    %c0_i32_1 = arith.constant 0 : i32
    return %c0_i32, %c0_i32_0 : i32, i32
  }
  func.func @transform_6(%arg0: i32) -> (i32, i32) {
    %c0_i32 = arith.constant 0 : i32
    %c0_i32_0 = arith.constant 0 : i32
    %c0_i32_1 = arith.constant 0 : i32
    return %c0_i32, %c0_i32_0 : i32, i32
  }
  func.func @transform_7(%arg0: i32) -> (i32, i32) {
    %c0_i32 = arith.constant 0 : i32
    %c0_i32_0 = arith.constant 0 : i32
    %c0_i32_1 = arith.constant 0 : i32
    return %c0_i32, %c0_i32_0 : i32, i32
  }
  func.func @transform_8(%arg0: i32) -> (i32, i32, i32, i32) {
    %c0_i32 = arith.constant 0 : i32
    %c0_i32_0 = arith.constant 0 : i32
    %c0_i32_1 = arith.constant 0 : i32
    %c0_i32_2 = arith.constant 0 : i32
    return %arg0, %c0_i32, %c0_i32_0, %c0_i32_1 : i32, i32, i32, i32
  }
}

module attributes {stable_mosaic.version = 11 : i64} {
  func.func @_od3d_fused_kernel(%arg0: i32, %arg1: memref<1x9x4x4x12xbf16, #tpu.memory_space<vmem>>, %arg2: memref<3x12x16xbf16, #tpu.memory_space<vmem>>, %arg3: memref<1x16xf32, #tpu.memory_space<vmem>>, %arg4: memref<3x48x32xbf16, #tpu.memory_space<vmem>>, %arg5: memref<1x32xf32, #tpu.memory_space<vmem>>, %arg6: memref<16x32xbf16, #tpu.memory_space<vmem>>, %arg7: memref<32x32xbf16, #tpu.memory_space<vmem>>, %arg8: memref<1x32xf32, #tpu.memory_space<vmem>>, %arg9: memref<1x4x4x128xf32, #tpu.memory_space<vmem>>, %arg10: memref<5x2x4x48xbf16, #tpu.memory_space<vmem>>) attributes {dimension_semantics = [#tpu.dimension_semantics<parallel>], iteration_bounds = array<i64: 2>, scalar_prefetch = 0 : i64, scratch_operands = 1 : i64, tpu.core_type = #tpu.core_type<tc>, window_params = [{transform_indices = @transform_0, window_bounds = array<i64: 1, 9, 4, 4, 12>}, {pipeline_mode = #tpu.pipeline_mode<synchronous>, transform_indices = @transform_1, window_bounds = array<i64: 3, 12, 16>}, {pipeline_mode = #tpu.pipeline_mode<synchronous>, transform_indices = @transform_2, window_bounds = array<i64: 1, 16>}, {pipeline_mode = #tpu.pipeline_mode<synchronous>, transform_indices = @transform_3, window_bounds = array<i64: 3, 48, 32>}, {pipeline_mode = #tpu.pipeline_mode<synchronous>, transform_indices = @transform_4, window_bounds = array<i64: 1, 32>}, {pipeline_mode = #tpu.pipeline_mode<synchronous>, transform_indices = @transform_5, window_bounds = array<i64: 16, 32>}, {pipeline_mode = #tpu.pipeline_mode<synchronous>, transform_indices = @transform_6, window_bounds = array<i64: 32, 32>}, {pipeline_mode = #tpu.pipeline_mode<synchronous>, transform_indices = @transform_7, window_bounds = array<i64: 1, 32>}, {transform_indices = @transform_8, window_bounds = array<i64: 1, 4, 4, 128>}]} {
    %c0 = arith.constant 0 : index
    %c0_0 = arith.constant 0 : index
    %c0_1 = arith.constant 0 : index
    %c0_2 = arith.constant 0 : index
    %c0_3 = arith.constant 0 : index
    %0 = vector.load %arg1[%c0, %c0_0, %c0_1, %c0_2, %c0_3] : memref<1x9x4x4x12xbf16, #tpu.memory_space<vmem>>, vector<1x8x2x4x12xbf16>
    %1 = vector.shape_cast %0 : vector<1x8x2x4x12xbf16> to vector<8x2x4x12xbf16>
    %2 = vector.shape_cast %1 : vector<8x2x4x12xbf16> to vector<16x4x12xbf16>
    %c0_4 = arith.constant 0 : index
    %c0_5 = arith.constant 0 : index
    %c0_6 = arith.constant 0 : index
    %3 = vector.load %arg2[%c0_4, %c0_5, %c0_6] : memref<3x12x16xbf16, #tpu.memory_space<vmem>>, vector<1x12x16xbf16>
    %4 = vector.shape_cast %3 : vector<1x12x16xbf16> to vector<12x16xbf16>
    %5 = vector.shape_cast %2 : vector<16x4x12xbf16> to vector<64x12xbf16>
    %cst = arith.constant dense<0.000000e+00> : vector<64x16xf32>
    %6 = tpu.matmul %5, %4, %cst {dimension_numbers = #tpu.dot_dimension_numbers<[1], [0], [0], [1], [0, 0, 1, 1], [], []>} : vector<64x12xbf16>, vector<12x16xbf16>, vector<64x16xf32> -> vector<64x16xf32>
    %7 = vector.shape_cast %6 : vector<64x16xf32> to vector<16x4x16xf32>
    %c0_7 = arith.constant 0 : index
    %c0_8 = arith.constant 0 : index
    %c2 = arith.constant 2 : index
    %c0_9 = arith.constant 0 : index
    %c0_10 = arith.constant 0 : index
    %8 = vector.load %arg1[%c0_7, %c0_8, %c2, %c0_9, %c0_10] : memref<1x9x4x4x12xbf16, #tpu.memory_space<vmem>>, vector<1x8x2x4x12xbf16>
    %9 = vector.shape_cast %8 : vector<1x8x2x4x12xbf16> to vector<8x2x4x12xbf16>
    %10 = vector.shape_cast %9 : vector<8x2x4x12xbf16> to vector<16x4x12xbf16>
    %c1 = arith.constant 1 : index
    %c0_11 = arith.constant 0 : index
    %c0_12 = arith.constant 0 : index
    %11 = vector.load %arg2[%c1, %c0_11, %c0_12] : memref<3x12x16xbf16, #tpu.memory_space<vmem>>, vector<1x12x16xbf16>
    %12 = vector.shape_cast %11 : vector<1x12x16xbf16> to vector<12x16xbf16>
    %13 = vector.shape_cast %10 : vector<16x4x12xbf16> to vector<64x12xbf16>
    %cst_13 = arith.constant dense<0.000000e+00> : vector<64x16xf32>
    %14 = tpu.matmul %13, %12, %cst_13 {dimension_numbers = #tpu.dot_dimension_numbers<[1], [0], [0], [1], [0, 0, 1, 1], [], []>} : vector<64x12xbf16>, vector<12x16xbf16>, vector<64x16xf32> -> vector<64x16xf32>
    %15 = vector.shape_cast %14 : vector<64x16xf32> to vector<16x4x16xf32>
    %16 = arith.addf %7, %15 : vector<16x4x16xf32>
    %c0_14 = arith.constant 0 : index
    %c1_15 = arith.constant 1 : index
    %c0_16 = arith.constant 0 : index
    %c0_17 = arith.constant 0 : index
    %c0_18 = arith.constant 0 : index
    %17 = vector.load %arg1[%c0_14, %c1_15, %c0_16, %c0_17, %c0_18] : memref<1x9x4x4x12xbf16, #tpu.memory_space<vmem>>, vector<1x8x2x4x12xbf16>
    %18 = vector.shape_cast %17 : vector<1x8x2x4x12xbf16> to vector<8x2x4x12xbf16>
    %19 = vector.shape_cast %18 : vector<8x2x4x12xbf16> to vector<16x4x12xbf16>
    %c2_19 = arith.constant 2 : index
    %c0_20 = arith.constant 0 : index
    %c0_21 = arith.constant 0 : index
    %20 = vector.load %arg2[%c2_19, %c0_20, %c0_21] : memref<3x12x16xbf16, #tpu.memory_space<vmem>>, vector<1x12x16xbf16>
    %21 = vector.shape_cast %20 : vector<1x12x16xbf16> to vector<12x16xbf16>
    %22 = vector.shape_cast %19 : vector<16x4x12xbf16> to vector<64x12xbf16>
    %cst_22 = arith.constant dense<0.000000e+00> : vector<64x16xf32>
    %23 = tpu.matmul %22, %21, %cst_22 {dimension_numbers = #tpu.dot_dimension_numbers<[1], [0], [0], [1], [0, 0, 1, 1], [], []>} : vector<64x12xbf16>, vector<12x16xbf16>, vector<64x16xf32> -> vector<64x16xf32>
    %24 = vector.shape_cast %23 : vector<64x16xf32> to vector<16x4x16xf32>
    %25 = arith.addf %16, %24 : vector<16x4x16xf32>
    %c0_23 = arith.constant 0 : index
    %c0_24 = arith.constant 0 : index
    %26 = vector.load %arg3[%c0_23, %c0_24] : memref<1x16xf32, #tpu.memory_space<vmem>>, vector<1x16xf32>
    %27 = vector.shape_cast %26 : vector<1x16xf32> to vector<1x1x16xf32>
    %28 = vector.broadcast %27 : vector<1x1x16xf32> to vector<16x4x16xf32>
    %29 = arith.addf %25, %28 : vector<16x4x16xf32>
    %cst_25 = arith.constant 0.000000e+00 : f32
    %30 = vector.broadcast %cst_25 : f32 to vector<16x4x16xf32>
    %31 = arith.maximumf %29, %30 : vector<16x4x16xf32>
    %32 = arith.truncf %31 : vector<16x4x16xf32> to vector<16x4x16xbf16>
    %33 = vector.shape_cast %32 : vector<16x4x16xbf16> to vector<4x4x4x16xbf16>
    %cst_26 = arith.constant 0.000000e+00 : bf16
    %34 = vector.broadcast %cst_26 : bf16 to vector<4x48xbf16>
    %c0_27 = arith.constant 0 : index
    %c0_28 = arith.constant 0 : index
    %c0_29 = arith.constant 0 : index
    %c0_30 = arith.constant 0 : index
    %35 = vector.load %arg10[%c0_27, %c0_28, %c0_29, %c0_30] : memref<5x2x4x48xbf16, #tpu.memory_space<vmem>>, vector<1x1x4x48xbf16>
    %36 = vector.shape_cast %35 : vector<1x1x4x48xbf16> to vector<4x48xbf16>
    %37 = vector.shape_cast %34 : vector<4x48xbf16> to vector<1x1x4x48xbf16>
    tpu.vector_store %arg10[%c0_27, %c0_28, %c0_29, %c0_30], %37 {strides = array<i32>} : memref<5x2x4x48xbf16, #tpu.memory_space<vmem>>, vector<1x1x4x48xbf16>,
    %cst_31 = arith.constant 0.000000e+00 : bf16
    %38 = vector.broadcast %cst_31 : bf16 to vector<5x2x16xbf16>
    %c0_32 = arith.constant 0 : index
    %c0_33 = arith.constant 0 : index
    %c0_34 = arith.constant 0 : index
    %c0_35 = arith.constant 0 : index
    %39 = vector.load %arg10[%c0_32, %c0_33, %c0_34, %c0_35] : memref<5x2x4x48xbf16, #tpu.memory_space<vmem>>, vector<5x2x1x16xbf16>
    %40 = vector.shape_cast %39 : vector<5x2x1x16xbf16> to vector<5x2x16xbf16>
    %41 = vector.shape_cast %38 : vector<5x2x16xbf16> to vector<5x2x1x16xbf16>
    tpu.vector_store %arg10[%c0_32, %c0_33, %c0_34, %c0_35], %41 {strides = array<i32>} : memref<5x2x4x48xbf16, #tpu.memory_space<vmem>>, vector<5x2x1x16xbf16>,
    %42 = vector.extract_strided_slice %33 {offsets = [0, 0, 0, 0], sizes = [4, 1, 4, 16], strides = [1, 1, 1, 1]} : vector<4x4x4x16xbf16> to vector<4x1x4x16xbf16>
    %43 = vector.shape_cast %42 : vector<4x1x4x16xbf16> to vector<4x4x16xbf16>
    %c0_36 = arith.constant 0 : index
    %c1_37 = arith.constant 1 : index
    %c0_38 = arith.constant 0 : index
    %c16 = arith.constant 16 : index
    %44 = vector.load %arg10[%c0_36, %c1_37, %c0_38, %c16] : memref<5x2x4x48xbf16, #tpu.memory_space<vmem>>, vector<4x1x4x16xbf16>
    %45 = vector.shape_cast %44 : vector<4x1x4x16xbf16> to vector<4x4x16xbf16>
    %46 = vector.shape_cast %43 : vector<4x4x16xbf16> to vector<4x1x4x16xbf16>
    tpu.vector_store %arg10[%c0_36, %c1_37, %c0_38, %c16], %46 {strides = array<i32>} : memref<5x2x4x48xbf16, #tpu.memory_space<vmem>>, vector<4x1x4x16xbf16>,
    %47 = vector.extract_strided_slice %33 {offsets = [0, 1, 0, 0], sizes = [4, 1, 4, 16], strides = [1, 1, 1, 1]} : vector<4x4x4x16xbf16> to vector<4x1x4x16xbf16>
    %48 = vector.shape_cast %47 : vector<4x1x4x16xbf16> to vector<4x4x16xbf16>
    %c0_39 = arith.constant 0 : index
    %c1_40 = arith.constant 1 : index
    %c0_41 = arith.constant 0 : index
    %c32 = arith.constant 32 : index
    %49 = vector.load %arg10[%c0_39, %c1_40, %c0_41, %c32] : memref<5x2x4x48xbf16, #tpu.memory_space<vmem>>, vector<4x1x4x16xbf16>
    %50 = vector.shape_cast %49 : vector<4x1x4x16xbf16> to vector<4x4x16xbf16>
    %51 = vector.shape_cast %48 : vector<4x4x16xbf16> to vector<4x1x4x16xbf16>
    tpu.vector_store %arg10[%c0_39, %c1_40, %c0_41, %c32], %51 {strides = array<i32>} : memref<5x2x4x48xbf16, #tpu.memory_space<vmem>>, vector<4x1x4x16xbf16>,
    %52 = vector.extract_strided_slice %33 {offsets = [0, 1, 0, 0], sizes = [4, 1, 3, 16], strides = [1, 1, 1, 1]} : vector<4x4x4x16xbf16> to vector<4x1x3x16xbf16>
    %53 = vector.shape_cast %52 : vector<4x1x3x16xbf16> to vector<4x3x16xbf16>
    %c0_42 = arith.constant 0 : index
    %c1_43 = arith.constant 1 : index
    %c1_44 = arith.constant 1 : index
    %c0_45 = arith.constant 0 : index
    %54 = vector.load %arg10[%c0_42, %c1_43, %c1_44, %c0_45] : memref<5x2x4x48xbf16, #tpu.memory_space<vmem>>, vector<4x1x3x16xbf16>
    %55 = vector.shape_cast %54 : vector<4x1x3x16xbf16> to vector<4x3x16xbf16>
    %56 = vector.shape_cast %53 : vector<4x3x16xbf16> to vector<4x1x3x16xbf16>
    tpu.vector_store %arg10[%c0_42, %c1_43, %c1_44, %c0_45], %56 {strides = array<i32>} : memref<5x2x4x48xbf16, #tpu.memory_space<vmem>>, vector<4x1x3x16xbf16>,
    %57 = vector.extract_strided_slice %33 {offsets = [0, 2, 0, 0], sizes = [4, 1, 4, 16], strides = [1, 1, 1, 1]} : vector<4x4x4x16xbf16> to vector<4x1x4x16xbf16>
    %58 = vector.shape_cast %57 : vector<4x1x4x16xbf16> to vector<4x4x16xbf16>
    %c1_46 = arith.constant 1 : index
    %c0_47 = arith.constant 0 : index
    %c0_48 = arith.constant 0 : index
    %c16_49 = arith.constant 16 : index
    %59 = vector.load %arg10[%c1_46, %c0_47, %c0_48, %c16_49] : memref<5x2x4x48xbf16, #tpu.memory_space<vmem>>, vector<4x1x4x16xbf16>
    %60 = vector.shape_cast %59 : vector<4x1x4x16xbf16> to vector<4x4x16xbf16>
    %61 = vector.shape_cast %58 : vector<4x4x16xbf16> to vector<4x1x4x16xbf16>
    tpu.vector_store %arg10[%c1_46, %c0_47, %c0_48, %c16_49], %61 {strides = array<i32>} : memref<5x2x4x48xbf16, #tpu.memory_space<vmem>>, vector<4x1x4x16xbf16>,
    %62 = vector.extract_strided_slice %33 {offsets = [0, 3, 0, 0], sizes = [4, 1, 4, 16], strides = [1, 1, 1, 1]} : vector<4x4x4x16xbf16> to vector<4x1x4x16xbf16>
    %63 = vector.shape_cast %62 : vector<4x1x4x16xbf16> to vector<4x4x16xbf16>
    %c1_50 = arith.constant 1 : index
    %c0_51 = arith.constant 0 : index
    %c0_52 = arith.constant 0 : index
    %c32_53 = arith.constant 32 : index
    %64 = vector.load %arg10[%c1_50, %c0_51, %c0_52, %c32_53] : memref<5x2x4x48xbf16, #tpu.memory_space<vmem>>, vector<4x1x4x16xbf16>
    %65 = vector.shape_cast %64 : vector<4x1x4x16xbf16> to vector<4x4x16xbf16>
    %66 = vector.shape_cast %63 : vector<4x4x16xbf16> to vector<4x1x4x16xbf16>
    tpu.vector_store %arg10[%c1_50, %c0_51, %c0_52, %c32_53], %66 {strides = array<i32>} : memref<5x2x4x48xbf16, #tpu.memory_space<vmem>>, vector<4x1x4x16xbf16>,
    %67 = vector.extract_strided_slice %33 {offsets = [0, 3, 0, 0], sizes = [4, 1, 3, 16], strides = [1, 1, 1, 1]} : vector<4x4x4x16xbf16> to vector<4x1x3x16xbf16>
    %68 = vector.shape_cast %67 : vector<4x1x3x16xbf16> to vector<4x3x16xbf16>
    %c1_54 = arith.constant 1 : index
    %c0_55 = arith.constant 0 : index
    %c1_56 = arith.constant 1 : index
    %c0_57 = arith.constant 0 : index
    %69 = vector.load %arg10[%c1_54, %c0_55, %c1_56, %c0_57] : memref<5x2x4x48xbf16, #tpu.memory_space<vmem>>, vector<4x1x3x16xbf16>
    %70 = vector.shape_cast %69 : vector<4x1x3x16xbf16> to vector<4x3x16xbf16>
    %71 = vector.shape_cast %68 : vector<4x3x16xbf16> to vector<4x1x3x16xbf16>
    tpu.vector_store %arg10[%c1_54, %c0_55, %c1_56, %c0_57], %71 {strides = array<i32>} : memref<5x2x4x48xbf16, #tpu.memory_space<vmem>>, vector<4x1x3x16xbf16>,
    %c0_58 = arith.constant 0 : index
    %c0_59 = arith.constant 0 : index
    %c0_60 = arith.constant 0 : index
    %c0_61 = arith.constant 0 : index
    %72 = vector.load %arg10[%c0_58, %c0_59, %c0_60, %c0_61] : memref<5x2x4x48xbf16, #tpu.memory_space<vmem>>, vector<4x1x4x48xbf16>
    %73 = vector.shape_cast %72 : vector<4x1x4x48xbf16> to vector<4x4x48xbf16>
    %c0_62 = arith.constant 0 : index
    %c0_63 = arith.constant 0 : index
    %c0_64 = arith.constant 0 : index
    %74 = vector.load %arg4[%c0_62, %c0_63, %c0_64] : memref<3x48x32xbf16, #tpu.memory_space<vmem>>, vector<1x48x32xbf16>
    %75 = vector.shape_cast %74 : vector<1x48x32xbf16> to vector<48x32xbf16>
    %76 = vector.shape_cast %73 : vector<4x4x48xbf16> to vector<16x48xbf16>
    %cst_65 = arith.constant dense<0.000000e+00> : vector<16x32xf32>
    %77 = tpu.matmul %76, %75, %cst_65 {dimension_numbers = #tpu.dot_dimension_numbers<[1], [0], [0], [1], [0, 0, 1, 1], [], []>} : vector<16x48xbf16>, vector<48x32xbf16>, vector<16x32xf32> -> vector<16x32xf32>
    %78 = vector.shape_cast %77 : vector<16x32xf32> to vector<4x4x32xf32>
    %c0_66 = arith.constant 0 : index
    %c1_67 = arith.constant 1 : index
    %c0_68 = arith.constant 0 : index
    %c0_69 = arith.constant 0 : index
    %79 = vector.load %arg10[%c0_66, %c1_67, %c0_68, %c0_69] : memref<5x2x4x48xbf16, #tpu.memory_space<vmem>>, vector<4x1x4x48xbf16>
    %80 = vector.shape_cast %79 : vector<4x1x4x48xbf16> to vector<4x4x48xbf16>
    %c1_70 = arith.constant 1 : index
    %c0_71 = arith.constant 0 : index
    %c0_72 = arith.constant 0 : index
    %81 = vector.load %arg4[%c1_70, %c0_71, %c0_72] : memref<3x48x32xbf16, #tpu.memory_space<vmem>>, vector<1x48x32xbf16>
    %82 = vector.shape_cast %81 : vector<1x48x32xbf16> to vector<48x32xbf16>
    %83 = vector.shape_cast %80 : vector<4x4x48xbf16> to vector<16x48xbf16>
    %cst_73 = arith.constant dense<0.000000e+00> : vector<16x32xf32>
    %84 = tpu.matmul %83, %82, %cst_73 {dimension_numbers = #tpu.dot_dimension_numbers<[1], [0], [0], [1], [0, 0, 1, 1], [], []>} : vector<16x48xbf16>, vector<48x32xbf16>, vector<16x32xf32> -> vector<16x32xf32>
    %85 = vector.shape_cast %84 : vector<16x32xf32> to vector<4x4x32xf32>
    %86 = arith.addf %78, %85 : vector<4x4x32xf32>
    %c1_74 = arith.constant 1 : index
    %c0_75 = arith.constant 0 : index
    %c0_76 = arith.constant 0 : index
    %c0_77 = arith.constant 0 : index
    %87 = vector.load %arg10[%c1_74, %c0_75, %c0_76, %c0_77] : memref<5x2x4x48xbf16, #tpu.memory_space<vmem>>, vector<4x1x4x48xbf16>
    %88 = vector.shape_cast %87 : vector<4x1x4x48xbf16> to vector<4x4x48xbf16>
    %c2_78 = arith.constant 2 : index
    %c0_79 = arith.constant 0 : index
    %c0_80 = arith.constant 0 : index
    %89 = vector.load %arg4[%c2_78, %c0_79, %c0_80] : memref<3x48x32xbf16, #tpu.memory_space<vmem>>, vector<1x48x32xbf16>
    %90 = vector.shape_cast %89 : vector<1x48x32xbf16> to vector<48x32xbf16>
    %91 = vector.shape_cast %88 : vector<4x4x48xbf16> to vector<16x48xbf16>
    %cst_81 = arith.constant dense<0.000000e+00> : vector<16x32xf32>
    %92 = tpu.matmul %91, %90, %cst_81 {dimension_numbers = #tpu.dot_dimension_numbers<[1], [0], [0], [1], [0, 0, 1, 1], [], []>} : vector<16x48xbf16>, vector<48x32xbf16>, vector<16x32xf32> -> vector<16x32xf32>
    %93 = vector.shape_cast %92 : vector<16x32xf32> to vector<4x4x32xf32>
    %94 = arith.addf %86, %93 : vector<4x4x32xf32>
    %c0_82 = arith.constant 0 : index
    %c0_83 = arith.constant 0 : index
    %95 = vector.load %arg5[%c0_82, %c0_83] : memref<1x32xf32, #tpu.memory_space<vmem>>, vector<1x32xf32>
    %96 = vector.shape_cast %95 : vector<1x32xf32> to vector<1x1x32xf32>
    %97 = vector.broadcast %96 : vector<1x1x32xf32> to vector<4x4x32xf32>
    %98 = arith.addf %94, %97 : vector<4x4x32xf32>
    %cst_84 = arith.constant 0.000000e+00 : f32
    %99 = vector.broadcast %cst_84 : f32 to vector<4x4x32xf32>
    %100 = arith.maximumf %98, %99 : vector<4x4x32xf32>
    %101 = arith.truncf %100 : vector<4x4x32xf32> to vector<4x4x32xbf16>
    %c0_85 = arith.constant 0 : index
    %c0_86 = arith.constant 0 : index
    %102 = vector.load %arg7[%c0_85, %c0_86] : memref<32x32xbf16, #tpu.memory_space<vmem>>, vector<32x32xbf16>
    %103 = vector.shape_cast %101 : vector<4x4x32xbf16> to vector<16x32xbf16>
    %cst_87 = arith.constant dense<0.000000e+00> : vector<16x32xf32>
    %104 = tpu.matmul %103, %102, %cst_87 {dimension_numbers = #tpu.dot_dimension_numbers<[1], [0], [0], [1], [0, 0, 1, 1], [], []>} : vector<16x32xbf16>, vector<32x32xbf16>, vector<16x32xf32> -> vector<16x32xf32>
    %105 = vector.shape_cast %104 : vector<16x32xf32> to vector<4x4x32xf32>
    %c0_88 = arith.constant 0 : index
    %c0_89 = arith.constant 0 : index
    %106 = vector.load %arg8[%c0_88, %c0_89] : memref<1x32xf32, #tpu.memory_space<vmem>>, vector<1x32xf32>
    %107 = vector.shape_cast %106 : vector<1x32xf32> to vector<1x1x32xf32>
    %108 = vector.broadcast %107 : vector<1x1x32xf32> to vector<4x4x32xf32>
    %109 = arith.addf %105, %108 : vector<4x4x32xf32>
    %c0_90 = arith.constant 0 : index
    %c0_91 = arith.constant 0 : index
    %110 = vector.load %arg6[%c0_90, %c0_91] : memref<16x32xbf16, #tpu.memory_space<vmem>>, vector<16x32xbf16>
    %111 = vector.shape_cast %32 : vector<16x4x16xbf16> to vector<64x16xbf16>
    %cst_92 = arith.constant dense<0.000000e+00> : vector<64x32xf32>
    %112 = tpu.matmul %111, %110, %cst_92 {dimension_numbers = #tpu.dot_dimension_numbers<[1], [0], [0], [1], [0, 0, 1, 1], [], []>} : vector<64x16xbf16>, vector<16x32xbf16>, vector<64x32xf32> -> vector<64x32xf32>
    %113 = vector.shape_cast %112 : vector<64x32xf32> to vector<16x4x32xf32>
    %114 = vector.shape_cast %113 : vector<16x4x32xf32> to vector<4x4x4x32xf32>
    %115 = vector.shape_cast %109 : vector<4x4x32xf32> to vector<4x1x4x32xf32>
    %116 = vector.broadcast %115 : vector<4x1x4x32xf32> to vector<4x4x4x32xf32>
    %117 = arith.addf %114, %116 : vector<4x4x4x32xf32>
    %cst_93 = arith.constant 0.000000e+00 : f32
    %118 = vector.broadcast %cst_93 : f32 to vector<4x4x4x32xf32>
    %119 = arith.maximumf %117, %118 : vector<4x4x4x32xf32>
    %120 = vector.extract_strided_slice %119 {offsets = [0, 0, 0, 0], sizes = [4, 1, 4, 32], strides = [1, 1, 1, 1]} : vector<4x4x4x32xf32> to vector<4x1x4x32xf32>
    %121 = vector.shape_cast %120 : vector<4x1x4x32xf32> to vector<4x4x32xf32>
    %122 = vector.extract_strided_slice %119 {offsets = [0, 1, 0, 0], sizes = [4, 1, 4, 32], strides = [1, 1, 1, 1]} : vector<4x4x4x32xf32> to vector<4x1x4x32xf32>
    %123 = vector.shape_cast %122 : vector<4x1x4x32xf32> to vector<4x4x32xf32>
    %124 = vector.extract_strided_slice %119 {offsets = [0, 2, 0, 0], sizes = [4, 1, 4, 32], strides = [1, 1, 1, 1]} : vector<4x4x4x32xf32> to vector<4x1x4x32xf32>
    %125 = vector.shape_cast %124 : vector<4x1x4x32xf32> to vector<4x4x32xf32>
    %126 = vector.extract_strided_slice %119 {offsets = [0, 3, 0, 0], sizes = [4, 1, 4, 32], strides = [1, 1, 1, 1]} : vector<4x4x4x32xf32> to vector<4x1x4x32xf32>
    %127 = vector.shape_cast %126 : vector<4x1x4x32xf32> to vector<4x4x32xf32>
    %128 = tpu.concatenate %121, %123, %125, %127 in 2 : vector<4x4x32xf32>, vector<4x4x32xf32>, vector<4x4x32xf32>, vector<4x4x32xf32> -> vector<4x4x128xf32>
    %c0_94 = arith.constant 0 : index
    %c0_95 = arith.constant 0 : index
    %c0_96 = arith.constant 0 : index
    %c0_97 = arith.constant 0 : index
    %129 = vector.load %arg9[%c0_94, %c0_95, %c0_96, %c0_97] : memref<1x4x4x128xf32, #tpu.memory_space<vmem>>, vector<1x4x4x128xf32>
    %130 = vector.shape_cast %129 : vector<1x4x4x128xf32> to vector<4x4x128xf32>
    %131 = vector.shape_cast %128 : vector<4x4x128xf32> to vector<1x4x4x128xf32>
    tpu.vector_store %arg9[%c0_94, %c0_95, %c0_96, %c0_97], %131 {strides = array<i32>} : memref<1x4x4x128xf32, #tpu.memory_space<vmem>>, vector<1x4x4x128xf32>,
    return
  }
  func.func @transform_0(%arg0: i32) -> (i32, i32, i32, i32, i32) {
    %c0_i32 = arith.constant 0 : i32
    %c0_i32_0 = arith.constant 0 : i32
    %c0_i32_1 = arith.constant 0 : i32
    %c0_i32_2 = arith.constant 0 : i32
    %c0_i32_3 = arith.constant 0 : i32
    return %arg0, %c0_i32, %c0_i32_0, %c0_i32_1, %c0_i32_2 : i32, i32, i32, i32, i32
  }
  func.func @transform_1(%arg0: i32) -> (i32, i32, i32) {
    %c0_i32 = arith.constant 0 : i32
    %c0_i32_0 = arith.constant 0 : i32
    %c0_i32_1 = arith.constant 0 : i32
    %c0_i32_2 = arith.constant 0 : i32
    return %c0_i32, %c0_i32_0, %c0_i32_1 : i32, i32, i32
  }
  func.func @transform_2(%arg0: i32) -> (i32, i32) {
    %c0_i32 = arith.constant 0 : i32
    %c0_i32_0 = arith.constant 0 : i32
    %c0_i32_1 = arith.constant 0 : i32
    return %c0_i32, %c0_i32_0 : i32, i32
  }
  func.func @transform_3(%arg0: i32) -> (i32, i32, i32) {
    %c0_i32 = arith.constant 0 : i32
    %c0_i32_0 = arith.constant 0 : i32
    %c0_i32_1 = arith.constant 0 : i32
    %c0_i32_2 = arith.constant 0 : i32
    return %c0_i32, %c0_i32_0, %c0_i32_1 : i32, i32, i32
  }
  func.func @transform_4(%arg0: i32) -> (i32, i32) {
    %c0_i32 = arith.constant 0 : i32
    %c0_i32_0 = arith.constant 0 : i32
    %c0_i32_1 = arith.constant 0 : i32
    return %c0_i32, %c0_i32_0 : i32, i32
  }
  func.func @transform_5(%arg0: i32) -> (i32, i32) {
    %c0_i32 = arith.constant 0 : i32
    %c0_i32_0 = arith.constant 0 : i32
    %c0_i32_1 = arith.constant 0 : i32
    return %c0_i32, %c0_i32_0 : i32, i32
  }
  func.func @transform_6(%arg0: i32) -> (i32, i32) {
    %c0_i32 = arith.constant 0 : i32
    %c0_i32_0 = arith.constant 0 : i32
    %c0_i32_1 = arith.constant 0 : i32
    return %c0_i32, %c0_i32_0 : i32, i32
  }
  func.func @transform_7(%arg0: i32) -> (i32, i32) {
    %c0_i32 = arith.constant 0 : i32
    %c0_i32_0 = arith.constant 0 : i32
    %c0_i32_1 = arith.constant 0 : i32
    return %c0_i32, %c0_i32_0 : i32, i32
  }
  func.func @transform_8(%arg0: i32) -> (i32, i32, i32, i32) {
    %c0_i32 = arith.constant 0 : i32
    %c0_i32_0 = arith.constant 0 : i32
    %c0_i32_1 = arith.constant 0 : i32
    %c0_i32_2 = arith.constant 0 : i32
    return %arg0, %c0_i32, %c0_i32_0, %c0_i32_1 : i32, i32, i32, i32
  }
}

</mosaic_0001>

<llo_original>
// kernel: od3d_model_forward.1
$region0: #{od3d_model_forward.1}
  #allocation0 [shape = 'u32[]', space=smem, size = 0x4, offset = 0x4, fixed_abs, tag = 'smem constant byte address 0x4 - core index']
  #allocation1 [shape = 'u32[72,128]{1,0:T(1,128)}', space=vmem, size = 0x9000, scoped, tag = 'internal scratch']
  #allocation2 [shape = 'bf16[5,2,4,48]{3,2,1,0:T(4,128)(2,1)}', space=vmem, size = 0x2800, scoped, tag = 'scratch operand']
  %s0 = inlined_call_operand.vmem [shape: bf16[2,9,4,4,12], index: 0, kind: input, shape index: {}]
  %s1 = inlined_call_operand.vmem [shape: bf16[3,12,16], index: 1, kind: input, shape index: {}]
  %s2 = inlined_call_operand.vmem [shape: f32[1,16], index: 2, kind: input, shape index: {}]
  %s3 = inlined_call_operand.vmem [shape: bf16[3,48,32], index: 3, kind: input, shape index: {}]
  %s4 = inlined_call_operand.vmem [shape: f32[1,32], index: 4, kind: input, shape index: {}]
  %s5 = inlined_call_operand.vmem [shape: bf16[16,32], index: 5, kind: input, shape index: {}]
  %s6 = inlined_call_operand.vmem [shape: bf16[32,32], index: 6, kind: input, shape index: {}]
  %s7 = inlined_call_operand.vmem [shape: f32[1,32], index: 7, kind: input, shape index: {}]
  %s8 = inlined_call_operand.vmem [shape: f32[2,4,4,128], index: 8, kind: output, shape index: {}]
  %s9 = sld [smem:[#allocation0]]
  $region65: #{od3d_model_forward.1} parent=0
    _
  %s11 = ssub.s32 1, %s9
  %s12 = scalar_select 0, %s11, %s9
  loop: start=0, step=1, limit=4
  $region2: #{od3d_model_forward.1} parent=0 // loop_pre_header
    _
  $region3: #{od3d_model_forward.1} parent=0 // loop_header
    %s14 = sphi 0, %s18
    %p15 = scmp.ge.s32.totalorder %s14, 4
    %s24 = sphi 0, %s26
    %s27 = sphi 0, %s24
    %s28 = sphi 0, %s27
    %s44 = sphi 0, %s28
    %s48 = sphi 0, %s48
    %s50 = sphi 0, %s48
    %s51 = sphi 0, %s50
    %s65 = sphi 0, %s51
    %s69 = sphi 0, %s69
    %s71 = sphi 0, %s69
    %s72 = sphi 0, %s71
    %s86 = sphi 0, %s72
    %s90 = sphi 0, %s90
    %s92 = sphi 0, %s90
    %s93 = sphi 0, %s92
    %s107 = sphi 0, %s93
    %s111 = sphi 0, %s111
    %s113 = sphi 0, %s111
    %s114 = sphi 0, %s113
    %s128 = sphi 0, %s114
    %s132 = sphi 0, %s132
    %s134 = sphi 0, %s132
    %s135 = sphi 0, %s134
    %s149 = sphi 0, %s135
    %s153 = sphi 0, %s153
    %s155 = sphi 0, %s153
    %s156 = sphi 0, %s155
    %s170 = sphi 0, %s156
    %s174 = sphi 0, %s174
    %s176 = sphi 0, %s174
    %s177 = sphi 0, %s176
    %s191 = sphi 0, %s177
    %s197 = sphi 0, %s199
    %s200 = sphi 0, %s197
    %s201 = sphi 0, %s200
    %s217 = sphi 0, %s201
  $region4: #{od3d_model_forward.1} parent=0 // loop_header_branch
    %17 = sbr.rel (%p15) target = $region8
  $region5: #{od3d_model_forward.1} parent=0 // loop_body
    %s19 = ssub.s32 %s14, 1
    %s20 = ssub.s32 %s14, 2
    %s21 = sadd.s32 %s14, 1
    %s22 = ssub.s32 %s14, %s21
    %p23 = scmp.eq.s32.totalorder %s22, 0
    %s25 = sadd.s32 %s24, 1
    %s26 = scalar_select %p23, %s24, %s25
    %p29 = pneg %p23
    %p30 = scmp.eq.s32.totalorder %s14, 1
    %p31 = por %p29, %p30
    %p32 = scmp.ne.s32.totalorder %s24, %s27
    %p33 = scmp.eq.s32.totalorder %s14, 0
    %p34 = por %p32, %p33
    %p35 = scmp.ne.s32.totalorder %s24, %s27
    %p36 = scmp.eq.s32.totalorder %s19, 1
    %p37 = por %p35, %p36
    %p38 = scmp.ne.s32.totalorder %s27, %s28
    %p39 = scmp.eq.s32.totalorder %s19, 0
    %p40 = por %p38, %p39
    %p41 = scmp.ne.s32.totalorder %s27, %s28
    %p42 = scmp.eq.s32.totalorder %s20, 1
    %p43 = por %p41, %p42
    %p45 = scmp.ne.s32.totalorder %s28, %s44
    %p46 = scmp.eq.s32.totalorder %s20, 0
    %p47 = por %p45, %p46
    %s49 = sadd.s32 %s48, 1
    %p52 = scmp.eq.s32.totalorder %s14, 1
    %p53 = scmp.ne.s32.totalorder %s48, %s50
    %p54 = scmp.eq.s32.totalorder %s14, 0
    %p55 = por %p53, %p54
    %p56 = scmp.ne.s32.totalorder %s48, %s50
    %p57 = scmp.eq.s32.totalorder %s19, 1
    %p58 = por %p56, %p57
    %p59 = scmp.ne.s32.totalorder %s50, %s51
    %p60 = scmp.eq.s32.totalorder %s19, 0
    %p61 = por %p59, %p60
    %p62 = scmp.ne.s32.totalorder %s50, %s51
    %p63 = scmp.eq.s32.totalorder %s20, 1
    %p64 = por %p62, %p63
    %p66 = scmp.ne.s32.totalorder %s51, %s65
    %p67 = scmp.eq.s32.totalorder %s20, 0
    %p68 = por %p66, %p67
    %s70 = sadd.s32 %s69, 1
    %p73 = scmp.eq.s32.totalorder %s14, 1
    %p74 = scmp.ne.s32.totalorder %s69, %s71
    %p75 = scmp.eq.s32.totalorder %s14, 0
    %p76 = por %p74, %p75
    %p77 = scmp.ne.s32.totalorder %s69, %s71
    %p78 = scmp.eq.s32.totalorder %s19, 1
    %p79 = por %p77, %p78
    %p80 = scmp.ne.s32.totalorder %s71, %s72
    %p81 = scmp.eq.s32.totalorder %s19, 0
    %p82 = por %p80, %p81
    %p83 = scmp.ne.s32.totalorder %s71, %s72
    %p84 = scmp.eq.s32.totalorder %s20, 1
    %p85 = por %p83, %p84
    %p87 = scmp.ne.s32.totalorder %s72, %s86
    %p88 = scmp.eq.s32.totalorder %s20, 0
    %p89 = por %p87, %p88
    %s91 = sadd.s32 %s90, 1
    %p94 = scmp.eq.s32.totalorder %s14, 1
    %p95 = scmp.ne.s32.totalorder %s90, %s92
    %p96 = scmp.eq.s32.totalorder %s14, 0
    %p97 = por %p95, %p96
    %p98 = scmp.ne.s32.totalorder %s90, %s92
    %p99 = scmp.eq.s32.totalorder %s19, 1
    %p100 = por %p98, %p99
    %p101 = scmp.ne.s32.totalorder %s92, %s93
    %p102 = scmp.eq.s32.totalorder %s19, 0
    %p103 = por %p101, %p102
    %p104 = scmp.ne.s32.totalorder %s92, %s93
    %p105 = scmp.eq.s32.totalorder %s20, 1
    %p106 = por %p104, %p105
    %p108 = scmp.ne.s32.totalorder %s93, %s107
    %p109 = scmp.eq.s32.totalorder %s20, 0
    %p110 = por %p108, %p109
    %s112 = sadd.s32 %s111, 1
    %p115 = scmp.eq.s32.totalorder %s14, 1
    %p116 = scmp.ne.s32.totalorder %s111, %s113
    %p117 = scmp.eq.s32.totalorder %s14, 0
    %p118 = por %p116, %p117
    %p119 = scmp.ne.s32.totalorder %s111, %s113
    %p120 = scmp.eq.s32.totalorder %s19, 1
    %p121 = por %p119, %p120
    %p122 = scmp.ne.s32.totalorder %s113, %s114
    %p123 = scmp.eq.s32.totalorder %s19, 0
    %p124 = por %p122, %p123
    %p125 = scmp.ne.s32.totalorder %s113, %s114
    %p126 = scmp.eq.s32.totalorder %s20, 1
    %p127 = por %p125, %p126
    %p129 = scmp.ne.s32.totalorder %s114, %s128
    %p130 = scmp.eq.s32.totalorder %s20, 0
    %p131 = por %p129, %p130
    %s133 = sadd.s32 %s132, 1
    %p136 = scmp.eq.s32.totalorder %s14, 1
    %p137 = scmp.ne.s32.totalorder %s132, %s134
    %p138 = scmp.eq.s32.totalorder %s14, 0
    %p139 = por %p137, %p138
    %p140 = scmp.ne.s32.totalorder %s132, %s134
    %p141 = scmp.eq.s32.totalorder %s19, 1
    %p142 = por %p140, %p141
    %p143 = scmp.ne.s32.totalorder %s134, %s135
    %p144 = scmp.eq.s32.totalorder %s19, 0
    %p145 = por %p143, %p144
    %p146 = scmp.ne.s32.totalorder %s134, %s135
    %p147 = scmp.eq.s32.totalorder %s20, 1
    %p148 = por %p146, %p147
    %p150 = scmp.ne.s32.totalorder %s135, %s149
    %p151 = scmp.eq.s32.totalorder %s20, 0
    %p152 = por %p150, %p151
    %s154 = sadd.s32 %s153, 1
    %p157 = scmp.eq.s32.totalorder %s14, 1
    %p158 = scmp.ne.s32.totalorder %s153, %s155
    %p159 = scmp.eq.s32.totalorder %s14, 0
    %p160 = por %p158, %p159
    %p161 = scmp.ne.s32.totalorder %s153, %s155
    %p162 = scmp.eq.s32.totalorder %s19, 1
    %p163 = por %p161, %p162
    %p164 = scmp.ne.s32.totalorder %s155, %s156
    %p165 = scmp.eq.s32.totalorder %s19, 0
    %p166 = por %p164, %p165
    %p167 = scmp.ne.s32.totalorder %s155, %s156
    %p168 = scmp.eq.s32.totalorder %s20, 1
    %p169 = por %p167, %p168
    %p171 = scmp.ne.s32.totalorder %s156, %s170
    %p172 = scmp.eq.s32.totalorder %s20, 0
    %p173 = por %p171, %p172
    %s175 = sadd.s32 %s174, 1
    %p178 = scmp.eq.s32.totalorder %s14, 1
    %p179 = scmp.ne.s32.totalorder %s174, %s176
    %p180 = scmp.eq.s32.totalorder %s14, 0
    %p181 = por %p179, %p180
    %p182 = scmp.ne.s32.totalorder %s174, %s176
    %p183 = scmp.eq.s32.totalorder %s19, 1
    %p184 = por %p182, %p183
    %p185 = scmp.ne.s32.totalorder %s176, %s177
    %p186 = scmp.eq.s32.totalorder %s19, 0
    %p187 = por %p185, %p186
    %p188 = scmp.ne.s32.totalorder %s176, %s177
    %p189 = scmp.eq.s32.totalorder %s20, 1
    %p190 = por %p188, %p189
    %p192 = scmp.ne.s32.totalorder %s177, %s191
    %p193 = scmp.eq.s32.totalorder %s20, 0
    %p194 = por %p192, %p193
    %s195 = ssub.s32 %s14, %s21
    %p196 = scmp.eq.s32.totalorder %s195, 0
    %s198 = sadd.s32 %s197, 1
    %s199 = scalar_select %p196, %s197, %s198
    %p202 = pneg %p196
    %p203 = scmp.eq.s32.totalorder %s14, 1
    %p204 = por %p202, %p203
    %p205 = scmp.ne.s32.totalorder %s197, %s200
    %p206 = scmp.eq.s32.totalorder %s14, 0
    %p207 = por %p205, %p206
    %p208 = scmp.ne.s32.totalorder %s197, %s200
    %p209 = scmp.eq.s32.totalorder %s19, 1
    %p210 = por %p208, %p209
    %p211 = scmp.ne.s32.totalorder %s200, %s201
    %p212 = scmp.eq.s32.totalorder %s19, 0
    %p213 = por %p211, %p212
    %p214 = scmp.ne.s32.totalorder %s200, %s201
    %p215 = scmp.eq.s32.totalorder %s20, 1
    %p216 = por %p214, %p215
    %p218 = scmp.ne.s32.totalorder %s201, %s217
    %p219 = scmp.eq.s32.totalorder %s20, 0
    %p220 = por %p218, %p219
    %p221 = scmp.le.s32.totalorder 1, %s14
    %p222 = scmp.lt.s32.totalorder %s14, 3
    %p223 = pnand %p221, %p222
    %p224 = pneg %p223
    // Predicated region
    $region9: #{od3d_model_forward.1} parent=5 // pred_check
      _
    $region10: #{od3d_model_forward.1} parent=5 // pred_check_branch
      %226 = sbr.rel (%p223) target = $region12
    $region11: #{od3d_model_forward.1} parent=5 // pred_region
      %s227 = ssub.s32 %s14, 1
      // Predicated region
      $region13: #{od3d_model_forward.1} parent=11 // pred_check
        %p228 = pneg %p61
      $region14: #{od3d_model_forward.1} parent=11 // pred_check_branch
        %230 = sbr.rel (%p228) target = $region16
      $region15: #{od3d_model_forward.1} parent=11 // pred_region
        _
      $region16: #{od3d_model_forward.1} parent=11 // pred_fallthru
        _
      // Predicated region
      $region17: #{od3d_model_forward.1} parent=11 // pred_check
        %p231 = pneg %p82
      $region18: #{od3d_model_forward.1} parent=11 // pred_check_branch
        %233 = sbr.rel (%p231) target = $region20
      $region19: #{od3d_model_forward.1} parent=11 // pred_region
        _
      $region20: #{od3d_model_forward.1} parent=11 // pred_fallthru
        _
      // Predicated region
      $region21: #{od3d_model_forward.1} parent=11 // pred_check
        %p234 = pneg %p103
      $region22: #{od3d_model_forward.1} parent=11 // pred_check_branch
        %236 = sbr.rel (%p234) target = $region24
      $region23: #{od3d_model_forward.1} parent=11 // pred_region
        _
      $region24: #{od3d_model_forward.1} parent=11 // pred_fallthru
        _
      // Predicated region
      $region25: #{od3d_model_forward.1} parent=11 // pred_check
        %p237 = pneg %p124
      $region26: #{od3d_model_forward.1} parent=11 // pred_check_branch
        %239 = sbr.rel (%p237) target = $region28
      $region27: #{od3d_model_forward.1} parent=11 // pred_region
        _
      $region28: #{od3d_model_forward.1} parent=11 // pred_fallthru
        _
      // Predicated region
      $region29: #{od3d_model_forward.1} parent=11 // pred_check
        %p240 = pneg %p145
      $region30: #{od3d_model_forward.1} parent=11 // pred_check_branch
        %242 = sbr.rel (%p240) target = $region32
      $region31: #{od3d_model_forward.1} parent=11 // pred_region
        _
      $region32: #{od3d_model_forward.1} parent=11 // pred_fallthru
        _
      // Predicated region
      $region33: #{od3d_model_forward.1} parent=11 // pred_check
        %p243 = pneg %p166
      $region34: #{od3d_model_forward.1} parent=11 // pred_check_branch
        %245 = sbr.rel (%p243) target = $region36
      $region35: #{od3d_model_forward.1} parent=11 // pred_region
        _
      $region36: #{od3d_model_forward.1} parent=11 // pred_fallthru
        _
      // Predicated region
      $region37: #{od3d_model_forward.1} parent=11 // pred_check
        %p246 = pneg %p187
      $region38: #{od3d_model_forward.1} parent=11 // pred_check_branch
        %248 = sbr.rel (%p246) target = $region40
      $region39: #{od3d_model_forward.1} parent=11 // pred_region
        _
      $region40: #{od3d_model_forward.1} parent=11 // pred_fallthru
        _
    $region12: #{od3d_model_forward.1} parent=5 // pred_fallthru
      _
    %p249 = scmp.lt.s32.totalorder %s14, 2
    // Predicated region
    $region41: #{od3d_model_forward.1} parent=5 // pred_check
      %p250 = pneg %p249
    $region42: #{od3d_model_forward.1} parent=5 // pred_check_branch
      %252 = sbr.rel (%p250) target = $region44
    $region43: #{od3d_model_forward.1} parent=5 // pred_region
      // Predicated region
      $region45: #{od3d_model_forward.1} parent=43 // pred_check
        %p253 = pneg %p34
      $region46: #{od3d_model_forward.1} parent=43 // pred_check_branch
        %255 = sbr.rel (%p253) target = $region48
      $region47: #{od3d_model_forward.1} parent=43 // pred_region
        %p256 = scmp.lt.s32.totalorder %s14, 1
        %s257 = scalar_select %p256, %s14, 1
        %s258 = smul.addr %s257, 36
        %s259 = smul.addr %s258, 2
        %s260 = scalar_lea.vmem %s0, %s259
      $region48: #{od3d_model_forward.1} parent=43 // pred_fallthru
        _
    $region44: #{od3d_model_forward.1} parent=5 // pred_fallthru
      _
    %p261 = scmp.le.s32.totalorder 1, %s14
    %p262 = scmp.lt.s32.totalorder %s14, 3
    %p263 = pnand %p261, %p262
    %p264 = pneg %p263
    // Predicated region
    $region49: #{od3d_model_forward.1} parent=5 // pred_check
      _
    $region50: #{od3d_model_forward.1} parent=5 // pred_check_branch
      %266 = sbr.rel (%p263) target = $region52
    $region51: #{od3d_model_forward.1} parent=5 // pred_region
      %s267 = ssub.s32 %s14, 1
      %p268 = scmp.lt.s32.totalorder %s19, 1
      %s269 = scalar_select %p268, %s19, 1
      %s270 = smul.addr %s269, 36
      %s271 = smul.addr %s270, 2
      %s272 = scalar_lea.vmem %s0, %s271
      %p273 = pneg %p40
      %p274 = pneg %p37
      %p275 = pneg %p61
      %p276 = pneg %p58
      %p277 = pneg %p82
      %p278 = pneg %p79
      %p279 = pneg %p103
      %p280 = pneg %p100
      %p281 = pneg %p124
      %p282 = pneg %p121
      %p283 = pneg %p145
      %p284 = pneg %p142
      %p285 = pneg %p166
      %p286 = pneg %p163
      %p287 = pneg %p187
      %p288 = pneg %p184
      %p289 = pneg %p213
      %p290 = pneg %p210
      %p291 = scmp.lt.s32.totalorder %s19, 1
      %s292 = scalar_select %p291, %s19, 1
      %s293 = smul.addr %s292, 4
      %s294 = smul.addr %s293, 4
      %s295 = scalar_lea.vmem %s8, %s294
      %p296 = scmp.lt.s32.totalorder %s19, 1
      %s297 = scalar_select %p296, %s19, 1
      %s298 = smul.addr %s297, 36
      %s299 = smul.addr %s298, 2
      %s300 = scalar_lea.vmem %s0, %s299
      %p301 = scmp.lt.s32.totalorder %s19, 1
      %s302 = scalar_select %p301, %s19, 1
      %s303 = smul.addr %s302, 4
      %s304 = smul.addr %s303, 4
      %s305 = scalar_lea.vmem %s8, %s304
      %v307 = vld [vmem:[%s300] sm:$0x3]
      %v308 = vld [vmem:[%s300 + $0x2] sm:$0x3]
      %v309 = vld [vmem:[%s300 + $0x8] sm:$0x3]
      %v310 = vld [vmem:[%s300 + $0xa] sm:$0x3]
      %v311 = vld [vmem:[%s300 + $0x10] sm:$0x3]
      %v312 = vld [vmem:[%s300 + $0x12] sm:$0x3]
      %v313 = vld [vmem:[%s300 + $0x18] sm:$0x3]
      %v314 = vld [vmem:[%s300 + $0x1a] sm:$0x3]
      %v315 = vld [vmem:[%s300 + $0x20] sm:$0x3]
      %v316 = vld [vmem:[%s300 + $0x22] sm:$0x3]
      %v317 = vld [vmem:[%s300 + $0x28] sm:$0x3]
      %v318 = vld [vmem:[%s300 + $0x2a] sm:$0x3]
      %v319 = vld [vmem:[%s300 + $0x30] sm:$0x3]
      %v320 = vld [vmem:[%s300 + $0x32] sm:$0x3]
      %v321 = vld [vmem:[%s300 + $0x38] sm:$0x3]
      %v322 = vld [vmem:[%s300 + $0x3a] sm:$0x3]
      %v323 = vld [vmem:[%s1] sm:$0xf]
      %v324 = vld [vmem:[%s1 + $0x4] sm:$0x3]
      %s325 = scalar_lea.vmem %s300, 4
      %v326 = vld [vmem:[%s325] sm:$0x3]
      %v327 = vld [vmem:[%s325 + $0x2] sm:$0x3]
      %v328 = vld [vmem:[%s325 + $0x8] sm:$0x3]
      %v329 = vld [vmem:[%s325 + $0xa] sm:$0x3]
      %v330 = vld [vmem:[%s325 + $0x10] sm:$0x3]
      %v331 = vld [vmem:[%s325 + $0x12] sm:$0x3]
      %v332 = vld [vmem:[%s325 + $0x18] sm:$0x3]
      %v333 = vld [vmem:[%s325 + $0x1a] sm:$0x3]
      %v334 = vld [vmem:[%s325 + $0x20] sm:$0x3]
      %v335 = vld [vmem:[%s325 + $0x22] sm:$0x3]
      %v336 = vld [vmem:[%s325 + $0x28] sm:$0x3]
      %v337 = vld [vmem:[%s325 + $0x2a] sm:$0x3]
      %v338 = vld [vmem:[%s325 + $0x30] sm:$0x3]
      %v339 = vld [vmem:[%s325 + $0x32] sm:$0x3]
      %v340 = vld [vmem:[%s325 + $0x38] sm:$0x3]
      %v341 = vld [vmem:[%s325 + $0x3a] sm:$0x3]
      %s342 = scalar_lea.vmem %s1, 8
      %v343 = vld [vmem:[%s342] sm:$0xf]
      %v344 = vld [vmem:[%s342 + $0x4] sm:$0x3]
      %346 = vst [vmem:[#allocation1] ss:$4 sm:$0xff] %v326
      %s348 = scalar_lea.vmem [#allocation1], 1
      %349 = vst [vmem:[%s348] ss:$4 sm:$0xff] %v327
      %s351 = scalar_lea.vmem [#allocation1], 2
      %352 = vst [vmem:[%s351] ss:$4 sm:$0xff] %v328
      %s354 = scalar_lea.vmem [#allocation1], 3
      %355 = vst [vmem:[%s354] ss:$4 sm:$0xff] %v329
      %s357 = scalar_lea.vmem [#allocation1], 32
      %358 = vst [vmem:[%s357] ss:$4 sm:$0xff] %v330
      %s360 = scalar_lea.vmem [#allocation1], 33
      %361 = vst [vmem:[%s360] ss:$4 sm:$0xff] %v331
      %s363 = scalar_lea.vmem [#allocation1], 34
      %364 = vst [vmem:[%s363] ss:$4 sm:$0xff] %v332
      %s366 = scalar_lea.vmem [#allocation1], 35
      %367 = vst [vmem:[%s366] ss:$4 sm:$0xff] %v333
      %v368 = vld.sshfl [vmem:[#allocation1] sm:$0xff pattern:$0x73625140]
      %v369 = vld.sshfl [vmem:[#allocation1 + $0x20] sm:$0xff pattern:$0x73625140]
      %371 = vst [vmem:[#allocation1] ss:$4 sm:$0xff] %v334
      %373 = vst [vmem:[%s348] ss:$4 sm:$0xff] %v335
      %375 = vst [vmem:[%s351] ss:$4 sm:$0xff] %v336
      %377 = vst [vmem:[%s354] ss:$4 sm:$0xff] %v337
      %379 = vst [vmem:[%s357] ss:$4 sm:$0xff] %v338
      %381 = vst [vmem:[%s360] ss:$4 sm:$0xff] %v339
      %383 = vst [vmem:[%s363] ss:$4 sm:$0xff] %v340
      %385 = vst [vmem:[%s366] ss:$4 sm:$0xff] %v341
      %v386 = vld.sshfl [vmem:[#allocation1] sm:$0xff pattern:$0x73625140]
      %v387 = vld.sshfl [vmem:[#allocation1 + $0x20] sm:$0xff pattern:$0x73625140]
      %v390 = vunpack.c.l.b16 %v343
      %v391 = vunpack.c.l.b16 %v344
      %v392 = vpack.c.b16 %v391, %v390
      %vm393 = vcmask 97280
      %v394 = vsel %vm393, %v368, 0
      %v396 = vsel %vm393, %v369, 0
      %v398 = vsel %vm393, %v386, 0
      %v400 = vsel %vm393, %v387, 0
      %vm402 = vcmask 1045504
      %v404 = vsel %vm402, %v392, 0
      %406 = vmatpush.bf16.msra.mxu0 0
      %407 = vmatpush.bf16.msra.mxu0 0
      %408 = vmatpush.bf16.msra.mxu0 0
      %409 = vmatpush.bf16.msra.mxu0 0
      %410 = vmatpush.bf16.msra.mxu0 0
      %411 = vmatpush.bf16.msra.mxu0 0
      %412 = vmatpush.bf16.msra.mxu0 0
      %413 = vmatpush.bf16.msra.mxu0 %v404
      %414 = vmatmul.bf16.gmra.mxu0 %v394
      %v415 = vpop.f32.mrf.mxu0
      %v416 = vadd.f32 0.0, %v415
      %v417 = vpop.f32.mrf.mxu0
      %v418 = vadd.f32 0.0, %v417
      %419 = vmatmul.bf16.gmra.mxu0 %v396
      %v420 = vpop.f32.mrf.mxu0
      %v421 = vadd.f32 0.0, %v420
      %v422 = vpop.f32.mrf.mxu0
      %v423 = vadd.f32 0.0, %v422
      %424 = vmatmul.bf16.gmra.mxu0 %v398
      %v425 = vpop.f32.mrf.mxu0
      %v426 = vadd.f32 0.0, %v425
      %v427 = vpop.f32.mrf.mxu0
      %v428 = vadd.f32 0.0, %v427
      %429 = vmatmul.bf16.gmra.mxu0 %v400
      %v430 = vpop.f32.mrf.mxu0
      %v431 = vadd.f32 0.0, %v430
      %v432 = vpop.f32.mrf.mxu0
      %v433 = vadd.f32 0.0, %v432
      %434 = vdwg.mxu0
      %436 = vst [vmem:[#allocation1] ss:$4 sm:$0xff] %v307
      %s438 = scalar_lea.vmem [#allocation1], 1
      %439 = vst [vmem:[%s438] ss:$4 sm:$0xff] %v308
      %s441 = scalar_lea.vmem [#allocation1], 2
      %442 = vst [vmem:[%s441] ss:$4 sm:$0xff] %v309
      %s444 = scalar_lea.vmem [#allocation1], 3
      %445 = vst [vmem:[%s444] ss:$4 sm:$0xff] %v310
      %s447 = scalar_lea.vmem [#allocation1], 32
      %448 = vst [vmem:[%s447] ss:$4 sm:$0xff] %v311
      %s450 = scalar_lea.vmem [#allocation1], 33
      %451 = vst [vmem:[%s450] ss:$4 sm:$0xff] %v312
      %s453 = scalar_lea.vmem [#allocation1], 34
      %454 = vst [vmem:[%s453] ss:$4 sm:$0xff] %v313
      %s456 = scalar_lea.vmem [#allocation1], 35
      %457 = vst [vmem:[%s456] ss:$4 sm:$0xff] %v314
      %v458 = vld.sshfl [vmem:[#allocation1] sm:$0xff pattern:$0x73625140]
      %v459 = vld.sshfl [vmem:[#allocation1 + $0x20] sm:$0xff pattern:$0x73625140]
      %461 = vst [vmem:[#allocation1] ss:$4 sm:$0xff] %v315
      %463 = vst [vmem:[%s438] ss:$4 sm:$0xff] %v316
      %465 = vst [vmem:[%s441] ss:$4 sm:$0xff] %v317
      %467 = vst [vmem:[%s444] ss:$4 sm:$0xff] %v318
      %469 = vst [vmem:[%s447] ss:$4 sm:$0xff] %v319
      %471 = vst [vmem:[%s450] ss:$4 sm:$0xff] %v320
      %473 = vst [vmem:[%s453] ss:$4 sm:$0xff] %v321
      %475 = vst [vmem:[%s456] ss:$4 sm:$0xff] %v322
      %v476 = vld.sshfl [vmem:[#allocation1] sm:$0xff pattern:$0x73625140]
      %v477 = vld.sshfl [vmem:[#allocation1 + $0x20] sm:$0xff pattern:$0x73625140]
      %v480 = vunpack.c.l.b16 %v323
      %v481 = vunpack.c.l.b16 %v324
      %v482 = vpack.c.b16 %v481, %v480
      %v483 = vsel %vm393, %v458, 0
      %v485 = vsel %vm393, %v459, 0
      %v487 = vsel %vm393, %v476, 0
      %v489 = vsel %vm393, %v477, 0
      %v492 = vsel %vm402, %v482, 0
      %494 = vmatpush.bf16.msra.mxu0 0
      %495 = vmatpush.bf16.msra.mxu0 0
      %496 = vmatpush.bf16.msra.mxu0 0
      %497 = vmatpush.bf16.msra.mxu0 0
      %498 = vmatpush.bf16.msra.mxu0 0
      %499 = vmatpush.bf16.msra.mxu0 0
      %500 = vmatpush.bf16.msra.mxu0 0
      %501 = vmatpush.bf16.msra.mxu0 %v492
      %502 = vmatmul.bf16.gmra.mxu0 %v483
      %v503 = vpop.f32.mrf.mxu0
      %v504 = vadd.f32 %v416, %v503
      %v505 = vpop.f32.mrf.mxu0
      %v506 = vadd.f32 %v418, %v505
      %507 = vmatmul.bf16.gmra.mxu0 %v485
      %v508 = vpop.f32.mrf.mxu0
      %v509 = vadd.f32 %v421, %v508
      %v510 = vpop.f32.mrf.mxu0
      %v511 = vadd.f32 %v423, %v510
      %512 = vmatmul.bf16.gmra.mxu0 %v487
      %v513 = vpop.f32.mrf.mxu0
      %v514 = vadd.f32 %v426, %v513
      %v515 = vpop.f32.mrf.mxu0
      %v516 = vadd.f32 %v428, %v515
      %517 = vmatmul.bf16.gmra.mxu0 %v489
      %v518 = vpop.f32.mrf.mxu0
      %v519 = vadd.f32 %v431, %v518
      %v520 = vpop.f32.mrf.mxu0
      %v521 = vadd.f32 %v433, %v520
      %522 = vdwg.mxu0
      %v531 = vrot.slane %v504, 4
      %v532 = vrot.slane %v506, 4
      %v533 = vrot.slane %v509, 4
      %v534 = vrot.slane %v511, 4
      %v535 = vrot.slane %v514, 4
      %v536 = vrot.slane %v516, 4
      %v537 = vrot.slane %v519, 4
      %v538 = vrot.slane %v521, 4
      %s547 = scalar_lea.vmem %s300, 8
      %v548 = vld [vmem:[%s547] sm:$0x3]
      %v549 = vld [vmem:[%s547 + $0x2] sm:$0x3]
      %v550 = vld [vmem:[%s547 + $0x8] sm:$0x3]
      %v551 = vld [vmem:[%s547 + $0xa] sm:$0x3]
      %v552 = vld [vmem:[%s547 + $0x10] sm:$0x3]
      %v553 = vld [vmem:[%s547 + $0x12] sm:$0x3]
      %v554 = vld [vmem:[%s547 + $0x18] sm:$0x3]
      %v555 = vld [vmem:[%s547 + $0x1a] sm:$0x3]
      %v556 = vld [vmem:[%s547 + $0x20] sm:$0x3]
      %v557 = vld [vmem:[%s547 + $0x22] sm:$0x3]
      %v558 = vld [vmem:[%s547 + $0x28] sm:$0x3]
      %v559 = vld [vmem:[%s547 + $0x2a] sm:$0x3]
      %v560 = vld [vmem:[%s547 + $0x30] sm:$0x3]
      %v561 = vld [vmem:[%s547 + $0x32] sm:$0x3]
      %v562 = vld [vmem:[%s547 + $0x38] sm:$0x3]
      %v563 = vld [vmem:[%s547 + $0x3a] sm:$0x3]
      %s564 = scalar_lea.vmem %s1, 16
      %v565 = vld [vmem:[%s564] sm:$0xf]
      %v566 = vld [vmem:[%s564 + $0x4] sm:$0x3]
      %568 = vst [vmem:[#allocation1] ss:$4 sm:$0xff] %v548
      %s570 = scalar_lea.vmem [#allocation1], 1
      %571 = vst [vmem:[%s570] ss:$4 sm:$0xff] %v549
      %s573 = scalar_lea.vmem [#allocation1], 2
      %574 = vst [vmem:[%s573] ss:$4 sm:$0xff] %v550
      %s576 = scalar_lea.vmem [#allocation1], 3
      %577 = vst [vmem:[%s576] ss:$4 sm:$0xff] %v551
      %s579 = scalar_lea.vmem [#allocation1], 32
      %580 = vst [vmem:[%s579] ss:$4 sm:$0xff] %v552
      %s582 = scalar_lea.vmem [#allocation1], 33
      %583 = vst [vmem:[%s582] ss:$4 sm:$0xff] %v553
      %s585 = scalar_lea.vmem [#allocation1], 34
      %586 = vst [vmem:[%s585] ss:$4 sm:$0xff] %v554
      %s588 = scalar_lea.vmem [#allocation1], 35
      %589 = vst [vmem:[%s588] ss:$4 sm:$0xff] %v555
      %v590 = vld.sshfl [vmem:[#allocation1] sm:$0xff pattern:$0x73625140]
      %v591 = vld.sshfl [vmem:[#allocation1 + $0x20] sm:$0xff pattern:$0x73625140]
      %593 = vst [vmem:[#allocation1] ss:$4 sm:$0xff] %v556
      %595 = vst [vmem:[%s570] ss:$4 sm:$0xff] %v557
      %597 = vst [vmem:[%s573] ss:$4 sm:$0xff] %v558
      %599 = vst [vmem:[%s576] ss:$4 sm:$0xff] %v559
      %601 = vst [vmem:[%s579] ss:$4 sm:$0xff] %v560
      %603 = vst [vmem:[%s582] ss:$4 sm:$0xff] %v561
      %605 = vst [vmem:[%s585] ss:$4 sm:$0xff] %v562
      %607 = vst [vmem:[%s588] ss:$4 sm:$0xff] %v563
      %v608 = vld.sshfl [vmem:[#allocation1] sm:$0xff pattern:$0x73625140]
      %v609 = vld.sshfl [vmem:[#allocation1 + $0x20] sm:$0xff pattern:$0x73625140]
      %v612 = vunpack.c.l.b16 %v565
      %v613 = vunpack.c.l.b16 %v566
      %v614 = vpack.c.b16 %v613, %v612
      %v615 = vsel %vm393, %v590, 0
      %v617 = vsel %vm393, %v591, 0
      %v619 = vsel %vm393, %v608, 0
      %v621 = vsel %vm393, %v609, 0
      %v624 = vsel %vm402, %v614, 0
      %626 = vmatpush.bf16.msra.mxu0 0
      %627 = vmatpush.bf16.msra.mxu0 0
      %628 = vmatpush.bf16.msra.mxu0 0
      %629 = vmatpush.bf16.msra.mxu0 0
      %630 = vmatpush.bf16.msra.mxu0 0
      %631 = vmatpush.bf16.msra.mxu0 0
      %632 = vmatpush.bf16.msra.mxu0 0
      %633 = vmatpush.bf16.msra.mxu0 %v624
      %634 = vmatmul.bf16.gmra.mxu0 %v615
      %v635 = vpop.f32.mrf.mxu0
      %v636 = vadd.f32 0.0, %v635
      %v637 = vpop.f32.mrf.mxu0
      %v638 = vadd.f32 0.0, %v637
      %639 = vmatmul.bf16.gmra.mxu0 %v617
      %v640 = vpop.f32.mrf.mxu0
      %v641 = vadd.f32 0.0, %v640
      %v642 = vpop.f32.mrf.mxu0
      %v643 = vadd.f32 0.0, %v642
      %644 = vmatmul.bf16.gmra.mxu0 %v619
      %v645 = vpop.f32.mrf.mxu0
      %v646 = vadd.f32 0.0, %v645
      %v647 = vpop.f32.mrf.mxu0
      %v648 = vadd.f32 0.0, %v647
      %649 = vmatmul.bf16.gmra.mxu0 %v621
      %v650 = vpop.f32.mrf.mxu0
      %v651 = vadd.f32 0.0, %v650
      %v652 = vpop.f32.mrf.mxu0
      %v653 = vadd.f32 0.0, %v652
      %654 = vdwg.mxu0
      %v663 = vrot.slane %v636, 4
      %v664 = vrot.slane %v638, 4
      %v665 = vrot.slane %v641, 4
      %v666 = vrot.slane %v643, 4
      %v667 = vrot.slane %v646, 4
      %v668 = vrot.slane %v648, 4
      %v669 = vrot.slane %v651, 4
      %v670 = vrot.slane %v653, 4
      %v679 = vadd.f32 %v504, %v636
      %v680 = vadd.f32 %v531, %v663
      %v681 = vadd.f32 %v506, %v638
      %v682 = vadd.f32 %v532, %v664
      %v683 = vadd.f32 %v509, %v641
      %v684 = vadd.f32 %v533, %v665
      %v685 = vadd.f32 %v511, %v643
      %v686 = vadd.f32 %v534, %v666
      %v687 = vadd.f32 %v514, %v646
      %v688 = vadd.f32 %v535, %v667
      %v689 = vadd.f32 %v516, %v648
      %v690 = vadd.f32 %v536, %v668
      %v691 = vadd.f32 %v519, %v651
      %v692 = vadd.f32 %v537, %v669
      %v693 = vadd.f32 %v521, %v653
      %v694 = vadd.f32 %v538, %v670
      %v695 = vld [vmem:[%s2] sm:$0x1]
      %v697 = vperm.slane %v695, 0
      %v699 = vadd.f32 %v679, %v697
      %v700 = vadd.f32 %v680, %v697
      %v701 = vadd.f32 %v681, %v697
      %v702 = vadd.f32 %v682, %v697
      %v703 = vadd.f32 %v683, %v697
      %v704 = vadd.f32 %v684, %v697
      %v705 = vadd.f32 %v685, %v697
      %v706 = vadd.f32 %v686, %v697
      %v707 = vadd.f32 %v687, %v697
      %v708 = vadd.f32 %v688, %v697
      %v709 = vadd.f32 %v689, %v697
      %v710 = vadd.f32 %v690, %v697
      %v711 = vadd.f32 %v691, %v697
      %v712 = vadd.f32 %v692, %v697
      %v713 = vadd.f32 %v693, %v697
      %v714 = vadd.f32 %v694, %v697
      %v715 = vmax.f32 %v699, 0.0
      %v716 = vmax.f32 %v700, 0.0
      %v717 = vmax.f32 %v701, 0.0
      %v718 = vmax.f32 %v702, 0.0
      %v719 = vmax.f32 %v703, 0.0
      %v720 = vmax.f32 %v704, 0.0
      %v721 = vmax.f32 %v705, 0.0
      %v722 = vmax.f32 %v706, 0.0
      %v723 = vmax.f32 %v707, 0.0
      %v724 = vmax.f32 %v708, 0.0
      %v725 = vmax.f32 %v709, 0.0
      %v726 = vmax.f32 %v710, 0.0
      %v727 = vmax.f32 %v711, 0.0
      %v728 = vmax.f32 %v712, 0.0
      %v729 = vmax.f32 %v713, 0.0
      %v730 = vmax.f32 %v714, 0.0
      %v731 = vpack.c.bf16 %v715, %v715
      %v732 = vpack.c.bf16 %v716, %v716
      %v733 = vpack.c.bf16 %v717, %v717
      %v734 = vpack.c.bf16 %v718, %v718
      %v735 = vpack.c.bf16 %v719, %v719
      %v736 = vpack.c.bf16 %v720, %v720
      %v737 = vpack.c.bf16 %v721, %v721
      %v738 = vpack.c.bf16 %v722, %v722
      %v739 = vpack.c.bf16 %v723, %v723
      %v740 = vpack.c.bf16 %v724, %v724
      %v741 = vpack.c.bf16 %v725, %v725
      %v742 = vpack.c.bf16 %v726, %v726
      %v743 = vpack.c.bf16 %v727, %v727
      %v744 = vpack.c.bf16 %v728, %v728
      %v745 = vpack.c.bf16 %v729, %v729
      %v746 = vpack.c.bf16 %v730, %v730
      %vm747 = vcmask 386048
      %748 = vst.msk [vmem:[#allocation2] sm:$0x3] %vm747, 0
      %vm749 = vcmask 122880
      %vm750 = vsmask.f32 256
      %vm751 = vmand %vm749, %vm750
      %v752 = vld [vmem:[#allocation2] sm:$0x1]
      %v753 = vsel %vm751, 0, %v752
      %754 = vst [vmem:[#allocation2] sm:$0x1] %v753
      %v755 = vld [vmem:[#allocation2 + $0x2] sm:$0x1]
      %v756 = vsel %vm751, 0, %v755
      %757 = vst [vmem:[#allocation2 + $0x2] sm:$0x1] %v756
      %v758 = vld [vmem:[#allocation2 + $0x4] sm:$0x1]
      %v759 = vsel %vm751, 0, %v758
      %760 = vst [vmem:[#allocation2 + $0x4] sm:$0x1] %v759
      %v761 = vld [vmem:[#allocation2 + $0x6] sm:$0x1]
      %v762 = vsel %vm751, 0, %v761
      %763 = vst [vmem:[#allocation2 + $0x6] sm:$0x1] %v762
      %v764 = vld [vmem:[#allocation2 + $0x8] sm:$0x1]
      %v765 = vsel %vm751, 0, %v764
      %766 = vst [vmem:[#allocation2 + $0x8] sm:$0x1] %v765
      %v767 = vld [vmem:[#allocation2 + $0xa] sm:$0x1]
      %v768 = vsel %vm751, 0, %v767
      %769 = vst [vmem:[#allocation2 + $0xa] sm:$0x1] %v768
      %v770 = vld [vmem:[#allocation2 + $0xc] sm:$0x1]
      %v771 = vsel %vm751, 0, %v770
      %772 = vst [vmem:[#allocation2 + $0xc] sm:$0x1] %v771
      %v773 = vld [vmem:[#allocation2 + $0xe] sm:$0x1]
      %v774 = vsel %vm751, 0, %v773
      %775 = vst [vmem:[#allocation2 + $0xe] sm:$0x1] %v774
      %v776 = vld [vmem:[#allocation2 + $0x10] sm:$0x1]
      %v777 = vsel %vm751, 0, %v776
      %778 = vst [vmem:[#allocation2 + $0x10] sm:$0x1] %v777
      %v779 = vld [vmem:[#allocation2 + $0x12] sm:$0x1]
      %v780 = vsel %vm751, 0, %v779
      %781 = vst [vmem:[#allocation2 + $0x12] sm:$0x1] %v780
      %v786 = vrot.slane %v731, 2
      %v787 = vrot.slane %v735, 2
      %v788 = vrot.slane %v739, 2
      %v789 = vrot.slane %v743, 2
      %vm790 = vcmask 1041408
      %v793 = vsel %vm790, %v731, %v786
      %v797 = vsel %vm790, %v735, %v787
      %v801 = vsel %vm790, %v739, %v788
      %v805 = vsel %vm790, %v743, %v789
      %807 = vrot.lane.b32.xlu0 %v793, 16
      %v808 = vpop.permute.xlu0 %807
      %809 = vrot.lane.b32.xlu0 %v797, 16
      %v810 = vpop.permute.xlu0 %809
      %811 = vrot.lane.b32.xlu0 %v801, 16
      %v812 = vpop.permute.xlu0 %811
      %813 = vrot.lane.b32.xlu0 %v805, 16
      %v814 = vpop.permute.xlu0 %813
      %s819 = scalar_lea.vmem [#allocation2], 2
      %vm820 = vcmask 255104
      %821 = vst.msk [vmem:[%s819] sm:$0x3] %vm820, %v808
      %822 = vst.msk [vmem:[%s819 + $0x4] sm:$0x3] %vm820, %v810
      %823 = vst.msk [vmem:[%s819 + $0x8] sm:$0x3] %vm820, %v812
      %824 = vst.msk [vmem:[%s819 + $0xc] sm:$0x3] %vm820, %v814
      %v829 = vrot.slane %v732, 2
      %v830 = vrot.slane %v736, 2
      %v831 = vrot.slane %v740, 2
      %v832 = vrot.slane %v744, 2
      %v835 = vsel %vm790, %v732, %v829
      %v839 = vsel %vm790, %v736, %v830
      %v843 = vsel %vm790, %v740, %v831
      %v847 = vsel %vm790, %v744, %v832
      %849 = vrot.lane.b32.xlu0 %v835, 32
      %v850 = vpop.permute.xlu0 %849
      %851 = vrot.lane.b32.xlu0 %v839, 32
      %v852 = vpop.permute.xlu0 %851
      %853 = vrot.lane.b32.xlu0 %v843, 32
      %v854 = vpop.permute.xlu0 %853
      %855 = vrot.lane.b32.xlu0 %v847, 32
      %v856 = vpop.permute.xlu0 %855
      %vm861 = vcmask 386304
      %862 = vst.msk [vmem:[%s819] sm:$0x3] %vm861, %v850
      %863 = vst.msk [vmem:[%s819 + $0x4] sm:$0x3] %vm861, %v852
      %864 = vst.msk [vmem:[%s819 + $0x8] sm:$0x3] %vm861, %v854
      %865 = vst.msk [vmem:[%s819 + $0xc] sm:$0x3] %vm861, %v856
      %v866 = vshrl.u32 %v835, 16
      %v868 = vrot.slane %v866, 7
      %v869 = vshll.u32 %v835, 16
      %v871 = vor.u32 %v868, %v869
      %v872 = vshrl.u32 %v839, 16
      %v874 = vrot.slane %v872, 7
      %v875 = vshll.u32 %v839, 16
      %v877 = vor.u32 %v874, %v875
      %v878 = vshrl.u32 %v843, 16
      %v880 = vrot.slane %v878, 7
      %v881 = vshll.u32 %v843, 16
      %v883 = vor.u32 %v880, %v881
      %v884 = vshrl.u32 %v847, 16
      %v886 = vrot.slane %v884, 7
      %v887 = vshll.u32 %v847, 16
      %v889 = vor.u32 %v886, %v887
      %vm894 = vcmask 123904
      %vm895 = vsmask.f32 7938
      %vm896 = vmand %vm894, %vm895
      %v897 = vld [vmem:[%s819] sm:$0x3]
      %v898 = vsel %vm896, %v871, %v897
      %899 = vst [vmem:[%s819] sm:$0x3] %v898
      %v900 = vld [vmem:[%s819 + $0x4] sm:$0x3]
      %v901 = vsel %vm896, %v877, %v900
      %902 = vst [vmem:[%s819 + $0x4] sm:$0x3] %v901
      %v903 = vld [vmem:[%s819 + $0x8] sm:$0x3]
      %v904 = vsel %vm896, %v883, %v903
      %905 = vst [vmem:[%s819 + $0x8] sm:$0x3] %v904
      %v906 = vld [vmem:[%s819 + $0xc] sm:$0x3]
      %v907 = vsel %vm896, %v889, %v906
      %908 = vst [vmem:[%s819 + $0xc] sm:$0x3] %v907
      %v913 = vrot.slane %v733, 2
      %v914 = vrot.slane %v737, 2
      %v915 = vrot.slane %v741, 2
      %v916 = vrot.slane %v745, 2
      %v919 = vsel %vm790, %v733, %v913
      %v923 = vsel %vm790, %v737, %v914
      %v927 = vsel %vm790, %v741, %v915
      %v931 = vsel %vm790, %v745, %v916
      %933 = vrot.lane.b32.xlu0 %v919, 16
      %v934 = vpop.permute.xlu0 %933
      %935 = vrot.lane.b32.xlu0 %v923, 16
      %v936 = vpop.permute.xlu0 %935
      %937 = vrot.lane.b32.xlu0 %v927, 16
      %v938 = vpop.permute.xlu0 %937
      %939 = vrot.lane.b32.xlu0 %v931, 16
      %v940 = vpop.permute.xlu0 %939
      %s945 = scalar_lea.vmem [#allocation2], 4
      %946 = vst.msk [vmem:[%s945] sm:$0x3] %vm820, %v934
      %947 = vst.msk [vmem:[%s945 + $0x4] sm:$0x3] %vm820, %v936
      %948 = vst.msk [vmem:[%s945 + $0x8] sm:$0x3] %vm820, %v938
      %949 = vst.msk [vmem:[%s945 + $0xc] sm:$0x3] %vm820, %v940
      %v954 = vrot.slane %v734, 2
      %v955 = vrot.slane %v738, 2
      %v956 = vrot.slane %v742, 2
      %v957 = vrot.slane %v746, 2
      %v960 = vsel %vm790, %v734, %v954
      %v964 = vsel %vm790, %v738, %v955
      %v968 = vsel %vm790, %v742, %v956
      %v972 = vsel %vm790, %v746, %v957
      %974 = vrot.lane.b32.xlu0 %v960, 32
      %v975 = vpop.permute.xlu0 %974
      %976 = vrot.lane.b32.xlu0 %v964, 32
      %v977 = vpop.permute.xlu0 %976
      %978 = vrot.lane.b32.xlu0 %v968, 32
      %v979 = vpop.permute.xlu0 %978
      %980 = vrot.lane.b32.xlu0 %v972, 32
      %v981 = vpop.permute.xlu0 %980
      %986 = vst.msk [vmem:[%s945] sm:$0x3] %vm861, %v975
      %987 = vst.msk [vmem:[%s945 + $0x4] sm:$0x3] %vm861, %v977
      %988 = vst.msk [vmem:[%s945 + $0x8] sm:$0x3] %vm861, %v979
      %989 = vst.msk [vmem:[%s945 + $0xc] sm:$0x3] %vm861, %v981
      %v990 = vshrl.u32 %v960, 16
      %v992 = vrot.slane %v990, 7
      %v993 = vshll.u32 %v960, 16
      %v995 = vor.u32 %v992, %v993
      %v996 = vshrl.u32 %v964, 16
      %v998 = vrot.slane %v996, 7
      %v999 = vshll.u32 %v964, 16
      %v1001 = vor.u32 %v998, %v999
      %v1002 = vshrl.u32 %v968, 16
      %v1004 = vrot.slane %v1002, 7
      %v1005 = vshll.u32 %v968, 16
      %v1007 = vor.u32 %v1004, %v1005
      %v1008 = vshrl.u32 %v972, 16
      %v1010 = vrot.slane %v1008, 7
      %v1011 = vshll.u32 %v972, 16
      %v1013 = vor.u32 %v1010, %v1011
      %v1018 = vld [vmem:[%s945] sm:$0x3]
      %v1019 = vsel %vm896, %v995, %v1018
      %1020 = vst [vmem:[%s945] sm:$0x3] %v1019
      %v1021 = vld [vmem:[%s945 + $0x4] sm:$0x3]
      %v1022 = vsel %vm896, %v1001, %v1021
      %1023 = vst [vmem:[%s945 + $0x4] sm:$0x3] %v1022
      %v1024 = vld [vmem:[%s945 + $0x8] sm:$0x3]
      %v1025 = vsel %vm896, %v1007, %v1024
      %1026 = vst [vmem:[%s945 + $0x8] sm:$0x3] %v1025
      %v1027 = vld [vmem:[%s945 + $0xc] sm:$0x3]
      %v1028 = vsel %vm896, %v1013, %v1027
      %1029 = vst [vmem:[%s945 + $0xc] sm:$0x3] %v1028
      %v1030 = vld [vmem:[#allocation2] sm:$0x3]
      %v1031 = vld [vmem:[#allocation2 + $0x4] sm:$0x3]
      %v1032 = vld [vmem:[#allocation2 + $0x8] sm:$0x3]
      %v1033 = vld [vmem:[#allocation2 + $0xc] sm:$0x3]
      %v1034 = vld [vmem:[%s3] sm:$0xf]
      %v1035 = vld [vmem:[%s3 + $0x4] sm:$0xf]
      %v1036 = vld [vmem:[%s3 + $0x8] sm:$0xf]
      %v1037 = vld [vmem:[%s3 + $0xc] sm:$0xf]
      %v1038 = vld [vmem:[%s3 + $0x10] sm:$0xf]
      %v1039 = vld [vmem:[%s3 + $0x14] sm:$0xf]
      %v1040 = vld [vmem:[%s819] sm:$0x3]
      %v1041 = vld [vmem:[%s819 + $0x4] sm:$0x3]
      %v1042 = vld [vmem:[%s819 + $0x8] sm:$0x3]
      %v1043 = vld [vmem:[%s819 + $0xc] sm:$0x3]
      %s1044 = scalar_lea.vmem %s3, 24
      %v1045 = vld [vmem:[%s1044] sm:$0xf]
      %v1046 = vld [vmem:[%s1044 + $0x4] sm:$0xf]
      %v1047 = vld [vmem:[%s1044 + $0x8] sm:$0xf]
      %v1048 = vld [vmem:[%s1044 + $0xc] sm:$0xf]
      %v1049 = vld [vmem:[%s1044 + $0x10] sm:$0xf]
      %v1050 = vld [vmem:[%s1044 + $0x14] sm:$0xf]
      %1052 = vst [vmem:[#allocation1] ss:$4 sm:$0xff] %v1040
      %s1054 = scalar_lea.vmem [#allocation1], 1
      %1055 = vst [vmem:[%s1054] ss:$4 sm:$0xff] %v1041
      %s1057 = scalar_lea.vmem [#allocation1], 2
      %1058 = vst [vmem:[%s1057] ss:$4 sm:$0xff] %v1042
      %s1060 = scalar_lea.vmem [#allocation1], 3
      %1061 = vst [vmem:[%s1060] ss:$4 sm:$0xff] %v1043
      %v1062 = vld.sshfl [vmem:[#allocation1] sm:$0xff pattern:$0x73625140]
      %v1069 = vunpack.c.l.b16 %v1045
      %v1070 = vunpack.c.l.b16 %v1046
      %v1071 = vunpack.c.l.b16 %v1047
      %v1072 = vunpack.c.l.b16 %v1048
      %v1073 = vunpack.c.l.b16 %v1049
      %v1074 = vunpack.c.l.b16 %v1050
      %v1075 = vpack.c.b16 %v1070, %v1069
      %v1076 = vpack.c.b16 %v1072, %v1071
      %v1077 = vpack.c.b16 %v1074, %v1073
      %vm1081 = vcmask 392192
      %v1082 = vsel %vm1081, %v1062, 0
      %1084 = vmatpush.bf16.msra.mxu0 0
      %1085 = vmatpush.bf16.msra.mxu0 0
      %1086 = vmatpush.bf16.msra.mxu0 0
      %1087 = vmatpush.bf16.msra.mxu0 0
      %1088 = vmatpush.bf16.msra.mxu0 0
      %1089 = vmatpush.bf16.msra.mxu0 %v1077
      %1090 = vmatpush.bf16.msra.mxu0 %v1076
      %1091 = vmatpush.bf16.msra.mxu0 %v1075
      %1092 = vmatmul.bf16.gmra.mxu0 %v1082
      %v1093 = vpop.f32.mrf.mxu0
      %v1094 = vadd.f32 0.0, %v1093
      %v1095 = vpop.f32.mrf.mxu0
      %v1096 = vadd.f32 0.0, %v1095
      %1097 = vdwg.mxu0
      %1099 = vst [vmem:[#allocation1] ss:$4 sm:$0xff] %v1030
      %s1101 = scalar_lea.vmem [#allocation1], 1
      %1102 = vst [vmem:[%s1101] ss:$4 sm:$0xff] %v1031
      %s1104 = scalar_lea.vmem [#allocation1], 2
      %1105 = vst [vmem:[%s1104] ss:$4 sm:$0xff] %v1032
      %s1107 = scalar_lea.vmem [#allocation1], 3
      %1108 = vst [vmem:[%s1107] ss:$4 sm:$0xff] %v1033
      %v1109 = vld.sshfl [vmem:[#allocation1] sm:$0xff pattern:$0x73625140]
      %v1116 = vunpack.c.l.b16 %v1034
      %v1117 = vunpack.c.l.b16 %v1035
      %v1118 = vunpack.c.l.b16 %v1036
      %v1119 = vunpack.c.l.b16 %v1037
      %v1120 = vunpack.c.l.b16 %v1038
      %v1121 = vunpack.c.l.b16 %v1039
      %v1122 = vpack.c.b16 %v1117, %v1116
      %v1123 = vpack.c.b16 %v1119, %v1118
      %v1124 = vpack.c.b16 %v1121, %v1120
      %v1128 = vsel %vm1081, %v1109, 0
      %1130 = vmatpush.bf16.msra.mxu0 0
      %1131 = vmatpush.bf16.msra.mxu0 0
      %1132 = vmatpush.bf16.msra.mxu0 0
      %1133 = vmatpush.bf16.msra.mxu0 0
      %1134 = vmatpush.bf16.msra.mxu0 0
      %1135 = vmatpush.bf16.msra.mxu0 %v1124
      %1136 = vmatpush.bf16.msra.mxu0 %v1123
      %1137 = vmatpush.bf16.msra.mxu0 %v1122
      %1138 = vmatmul.bf16.gmra.mxu0 %v1128
      %v1139 = vpop.f32.mrf.mxu0
      %v1140 = vadd.f32 %v1094, %v1139
      %v1141 = vpop.f32.mrf.mxu0
      %v1142 = vadd.f32 %v1096, %v1141
      %1143 = vdwg.mxu0
      %v1146 = vrot.slane %v1140, 4
      %v1147 = vrot.slane %v1142, 4
      %v1150 = vld [vmem:[%s945] sm:$0x3]
      %v1151 = vld [vmem:[%s945 + $0x4] sm:$0x3]
      %v1152 = vld [vmem:[%s945 + $0x8] sm:$0x3]
      %v1153 = vld [vmem:[%s945 + $0xc] sm:$0x3]
      %s1154 = scalar_lea.vmem %s3, 48
      %v1155 = vld [vmem:[%s1154] sm:$0xf]
      %v1156 = vld [vmem:[%s1154 + $0x4] sm:$0xf]
      %v1157 = vld [vmem:[%s1154 + $0x8] sm:$0xf]
      %v1158 = vld [vmem:[%s1154 + $0xc] sm:$0xf]
      %v1159 = vld [vmem:[%s1154 + $0x10] sm:$0xf]
      %v1160 = vld [vmem:[%s1154 + $0x14] sm:$0xf]
      %1162 = vst [vmem:[#allocation1] ss:$4 sm:$0xff] %v1150
      %s1164 = scalar_lea.vmem [#allocation1], 1
      %1165 = vst [vmem:[%s1164] ss:$4 sm:$0xff] %v1151
      %s1167 = scalar_lea.vmem [#allocation1], 2
      %1168 = vst [vmem:[%s1167] ss:$4 sm:$0xff] %v1152
      %s1170 = scalar_lea.vmem [#allocation1], 3
      %1171 = vst [vmem:[%s1170] ss:$4 sm:$0xff] %v1153
      %v1172 = vld.sshfl [vmem:[#allocation1] sm:$0xff pattern:$0x73625140]
      %v1179 = vunpack.c.l.b16 %v1155
      %v1180 = vunpack.c.l.b16 %v1156
      %v1181 = vunpack.c.l.b16 %v1157
      %v1182 = vunpack.c.l.b16 %v1158
      %v1183 = vunpack.c.l.b16 %v1159
      %v1184 = vunpack.c.l.b16 %v1160
      %v1185 = vpack.c.b16 %v1180, %v1179
      %v1186 = vpack.c.b16 %v1182, %v1181
      %v1187 = vpack.c.b16 %v1184, %v1183
      %v1191 = vsel %vm1081, %v1172, 0
      %1193 = vmatpush.bf16.msra.mxu0 0
      %1194 = vmatpush.bf16.msra.mxu0 0
      %1195 = vmatpush.bf16.msra.mxu0 0
      %1196 = vmatpush.bf16.msra.mxu0 0
      %1197 = vmatpush.bf16.msra.mxu0 0
      %1198 = vmatpush.bf16.msra.mxu0 %v1187
      %1199 = vmatpush.bf16.msra.mxu0 %v1186
      %1200 = vmatpush.bf16.msra.mxu0 %v1185
      %1201 = vmatmul.bf16.gmra.mxu0 %v1191
      %v1202 = vpop.f32.mrf.mxu0
      %v1203 = vadd.f32 0.0, %v1202
      %v1204 = vpop.f32.mrf.mxu0
      %v1205 = vadd.f32 0.0, %v1204
      %1206 = vdwg.mxu0
      %v1209 = vrot.slane %v1203, 4
      %v1210 = vrot.slane %v1205, 4
      %v1213 = vadd.f32 %v1140, %v1203
      %v1214 = vadd.f32 %v1146, %v1209
      %v1215 = vadd.f32 %v1142, %v1205
      %v1216 = vadd.f32 %v1147, %v1210
      %v1217 = vld [vmem:[%s4] sm:$0x1]
      %v1219 = vperm.slane %v1217, 0
      %v1221 = vadd.f32 %v1213, %v1219
      %v1222 = vadd.f32 %v1214, %v1219
      %v1223 = vadd.f32 %v1215, %v1219
      %v1224 = vadd.f32 %v1216, %v1219
      %v1225 = vmax.f32 %v1221, 0.0
      %v1226 = vmax.f32 %v1222, 0.0
      %v1227 = vmax.f32 %v1223, 0.0
      %v1228 = vmax.f32 %v1224, 0.0
      %v1229 = vpack.c.bf16 %v1225, %v1225
      %v1230 = vpack.c.bf16 %v1226, %v1226
      %v1231 = vpack.c.bf16 %v1227, %v1227
      %v1232 = vpack.c.bf16 %v1228, %v1228
      %v1233 = vld [vmem:[%s6] sm:$0xf]
      %v1234 = vld [vmem:[%s6 + $0x4] sm:$0xf]
      %v1235 = vld [vmem:[%s6 + $0x8] sm:$0xf]
      %v1236 = vld [vmem:[%s6 + $0xc] sm:$0xf]
      %v1237 = vld [vmem:[%s7] sm:$0x1]
      %v1239 = vperm.slane %v1237, 0
      %1241 = vst [vmem:[#allocation1] ss:$4 sm:$0xff] %v1229
      %s1243 = scalar_lea.vmem [#allocation1], 1
      %1244 = vst [vmem:[%s1243] ss:$4 sm:$0xff] %v1230
      %s1246 = scalar_lea.vmem [#allocation1], 2
      %1247 = vst [vmem:[%s1246] ss:$4 sm:$0xff] %v1231
      %s1249 = scalar_lea.vmem [#allocation1], 3
      %1250 = vst [vmem:[%s1249] ss:$4 sm:$0xff] %v1232
      %v1251 = vld.sshfl [vmem:[#allocation1] sm:$0xff pattern:$0x73625140]
      %v1256 = vunpack.c.l.b16 %v1233
      %v1257 = vunpack.c.l.b16 %v1234
      %v1258 = vunpack.c.l.b16 %v1235
      %v1259 = vunpack.c.l.b16 %v1236
      %v1260 = vpack.c.b16 %v1257, %v1256
      %v1261 = vpack.c.b16 %v1259, %v1258
      %1264 = vst [vmem:[#allocation1] ss:$2 sm:$0xff] %v1239
      %s1265 = scalar_lea.vmem [#allocation1], 1
      %1266 = vst [vmem:[%s1265] ss:$2 sm:$0xff] %v1239
      %s1267 = scalar_lea.vmem [#allocation1], 16
      %1268 = vst [vmem:[%s1267] ss:$2 sm:$0xff] %v1239
      %s1269 = scalar_lea.vmem [#allocation1], 17
      %1270 = vst [vmem:[%s1269] ss:$2 sm:$0xff] %v1239
      %v1271 = vld.sshfl [vmem:[#allocation1] sm:$0xff pattern:$0x75316420]
      %v1272 = vld.sshfl [vmem:[#allocation1 + $0x10] sm:$0xff pattern:$0x75316420]
      %vm1275 = vcmask 261120
      %v1276 = vsel %vm1275, %v1251, 0
      %1278 = vmatpush.bf16.msra.mxu0 0
      %1279 = vmatpush.bf16.msra.mxu0 0
      %1280 = vmatpush.bf16.msra.mxu0 0
      %1281 = vmatpush.bf16.msra.mxu0 0
      %1282 = vmatpush.bf16.msra.mxu0 0
      %1283 = vmatpush.bf16.msra.mxu0 0
      %1284 = vmatpush.bf16.msra.mxu0 %v1261
      %1285 = vmatpush.bf16.msra.mxu0 %v1260
      %1286 = vmatmul.bf16.gmra.mxu0 %v1276
      %v1287 = vpop.f32.mrf.mxu0
      %v1288 = vadd.f32 %v1271, %v1287
      %v1289 = vpop.f32.mrf.mxu0
      %v1290 = vadd.f32 %v1272, %v1289
      %1291 = vdwg.mxu0
      %v1292 = vld [vmem:[%s5] sm:$0xf]
      %v1293 = vld [vmem:[%s5 + $0x4] sm:$0xf]
      %1294 = vst [vmem:[#allocation1] ss:$4 sm:$0xff] %v731
      %s1295 = scalar_lea.vmem [#allocation1], 1
      %1296 = vst [vmem:[%s1295] ss:$4 sm:$0xff] %v732
      %s1297 = scalar_lea.vmem [#allocation1], 2
      %1298 = vst [vmem:[%s1297] ss:$4 sm:$0xff] %v733
      %s1299 = scalar_lea.vmem [#allocation1], 3
      %1300 = vst [vmem:[%s1299] ss:$4 sm:$0xff] %v734
      %s1301 = scalar_lea.vmem [#allocation1], 32
      %1302 = vst [vmem:[%s1301] ss:$4 sm:$0xff] %v735
      %s1303 = scalar_lea.vmem [#allocation1], 33
      %1304 = vst [vmem:[%s1303] ss:$4 sm:$0xff] %v736
      %s1305 = scalar_lea.vmem [#allocation1], 34
      %1306 = vst [vmem:[%s1305] ss:$4 sm:$0xff] %v737
      %s1307 = scalar_lea.vmem [#allocation1], 35
      %1308 = vst [vmem:[%s1307] ss:$4 sm:$0xff] %v738
      %v1309 = vld.sshfl [vmem:[#allocation1] sm:$0xff pattern:$0x73625140]
      %v1310 = vld.sshfl [vmem:[#allocation1 + $0x20] sm:$0xff pattern:$0x73625140]
      %1311 = vst [vmem:[#allocation1] ss:$4 sm:$0xff] %v739
      %1312 = vst [vmem:[%s1295] ss:$4 sm:$0xff] %v740
      %1313 = vst [vmem:[%s1297] ss:$4 sm:$0xff] %v741
      %1314 = vst [vmem:[%s1299] ss:$4 sm:$0xff] %v742
      %1315 = vst [vmem:[%s1301] ss:$4 sm:$0xff] %v743
      %1316 = vst [vmem:[%s1303] ss:$4 sm:$0xff] %v744
      %1317 = vst [vmem:[%s1305] ss:$4 sm:$0xff] %v745
      %1318 = vst [vmem:[%s1307] ss:$4 sm:$0xff] %v746
      %v1319 = vld.sshfl [vmem:[#allocation1] sm:$0xff pattern:$0x73625140]
      %v1320 = vld.sshfl [vmem:[#allocation1 + $0x20] sm:$0xff pattern:$0x73625140]
      %v1323 = vunpack.c.l.b16 %v1292
      %v1324 = vunpack.c.l.b16 %v1293
      %v1325 = vpack.c.b16 %v1324, %v1323
      %vm1327 = vcmask 130048
      %v1328 = vsel %vm1327, %v1309, 0
      %v1330 = vsel %vm1327, %v1310, 0
      %v1332 = vsel %vm1327, %v1319, 0
      %v1334 = vsel %vm1327, %v1320, 0
      %1336 = vmatpush.bf16.msra.mxu0 0
      %1337 = vmatpush.bf16.msra.mxu0 0
      %1338 = vmatpush.bf16.msra.mxu0 0
      %1339 = vmatpush.bf16.msra.mxu0 0
      %1340 = vmatpush.bf16.msra.mxu0 0
      %1341 = vmatpush.bf16.msra.mxu0 0
      %1342 = vmatpush.bf16.msra.mxu0 0
      %1343 = vmatpush.bf16.msra.mxu0 %v1325
      %1344 = vmatmul.bf16.gmra.mxu0 %v1328
      %v1345 = vpop.f32.mrf.mxu0
      %v1346 = vadd.f32 0.0, %v1345
      %v1347 = vpop.f32.mrf.mxu0
      %v1348 = vadd.f32 0.0, %v1347
      %1349 = vmatmul.bf16.gmra.mxu0 %v1330
      %v1350 = vpop.f32.mrf.mxu0
      %v1351 = vadd.f32 0.0, %v1350
      %v1352 = vpop.f32.mrf.mxu0
      %v1353 = vadd.f32 0.0, %v1352
      %1354 = vmatmul.bf16.gmra.mxu0 %v1332
      %v1355 = vpop.f32.mrf.mxu0
      %v1356 = vadd.f32 0.0, %v1355
      %v1357 = vpop.f32.mrf.mxu0
      %v1358 = vadd.f32 0.0, %v1357
      %1359 = vmatmul.bf16.gmra.mxu0 %v1334
      %v1360 = vpop.f32.mrf.mxu0
      %v1361 = vadd.f32 0.0, %v1360
      %v1362 = vpop.f32.mrf.mxu0
      %v1363 = vadd.f32 0.0, %v1362
      %1364 = vdwg.mxu0
      %v1373 = vrot.slane %v1346, 4
      %v1374 = vrot.slane %v1348, 4
      %v1375 = vrot.slane %v1351, 4
      %v1376 = vrot.slane %v1353, 4
      %v1377 = vrot.slane %v1356, 4
      %v1378 = vrot.slane %v1358, 4
      %v1379 = vrot.slane %v1361, 4
      %v1380 = vrot.slane %v1363, 4
      %v1391 = vrot.slane %v1288, 4
      %v1392 = vrot.slane %v1290, 4
      %v1395 = vadd.f32 %v1346, %v1288
      %v1396 = vadd.f32 %v1373, %v1288
      %v1397 = vadd.f32 %v1348, %v1288
      %v1398 = vadd.f32 %v1374, %v1288
      %v1399 = vadd.f32 %v1351, %v1391
      %v1400 = vadd.f32 %v1375, %v1391
      %v1401 = vadd.f32 %v1353, %v1391
      %v1402 = vadd.f32 %v1376, %v1391
      %v1403 = vadd.f32 %v1356, %v1290
      %v1404 = vadd.f32 %v1377, %v1290
      %v1405 = vadd.f32 %v1358, %v1290
      %v1406 = vadd.f32 %v1378, %v1290
      %v1407 = vadd.f32 %v1361, %v1392
      %v1408 = vadd.f32 %v1379, %v1392
      %v1409 = vadd.f32 %v1363, %v1392
      %v1410 = vadd.f32 %v1380, %v1392
      %v1411 = vmax.f32 %v1395, 0.0
      %v1412 = vmax.f32 %v1396, 0.0
      %v1413 = vmax.f32 %v1397, 0.0
      %v1414 = vmax.f32 %v1398, 0.0
      %v1415 = vmax.f32 %v1399, 0.0
      %v1416 = vmax.f32 %v1400, 0.0
      %v1417 = vmax.f32 %v1401, 0.0
      %v1418 = vmax.f32 %v1402, 0.0
      %v1419 = vmax.f32 %v1403, 0.0
      %v1420 = vmax.f32 %v1404, 0.0
      %v1421 = vmax.f32 %v1405, 0.0
      %v1422 = vmax.f32 %v1406, 0.0
      %v1423 = vmax.f32 %v1407, 0.0
      %v1424 = vmax.f32 %v1408, 0.0
      %v1425 = vmax.f32 %v1409, 0.0
      %v1426 = vmax.f32 %v1410, 0.0
      %1431 = vst [vmem:[#allocation1] ss:$2 sm:$0xff] %v1412
      %v1432 = vld.sshfl [vmem:[#allocation1] sm:$0xff pattern:$0x75316420]
      %s1433 = scalar_lea.vmem [#allocation1], 16
      %1434 = vst [vmem:[%s1433] ss:$2 sm:$0xff] %v1416
      %v1435 = vld.sshfl [vmem:[#allocation1 + $0x10] sm:$0xff pattern:$0x75316420]
      %s1436 = scalar_lea.vmem [#allocation1], 32
      %1437 = vst [vmem:[%s1436] ss:$2 sm:$0xff] %v1420
      %v1438 = vld.sshfl [vmem:[#allocation1 + $0x20] sm:$0xff pattern:$0x75316420]
      %s1439 = scalar_lea.vmem [#allocation1], 48
      %1440 = vst [vmem:[%s1439] ss:$2 sm:$0xff] %v1424
      %v1441 = vld.sshfl [vmem:[#allocation1 + $0x30] sm:$0xff pattern:$0x75316420]
      %1442 = vrot.lane.b32.xlu0 %v1432, 32
      %v1443 = vpop.permute.xlu0 %1442
      %1444 = vrot.lane.b32.xlu0 %v1435, 32
      %v1445 = vpop.permute.xlu0 %1444
      %1446 = vrot.lane.b32.xlu0 %v1438, 32
      %v1447 = vpop.permute.xlu0 %1446
      %1448 = vrot.lane.b32.xlu0 %v1441, 32
      %v1449 = vpop.permute.xlu0 %1448
      %1458 = vst [vmem:[#allocation1] ss:$2 sm:$0xff] %v1413
      %v1459 = vld.sshfl [vmem:[#allocation1] sm:$0xff pattern:$0x75316420]
      %s1460 = scalar_lea.vmem [#allocation1], 16
      %1461 = vst [vmem:[%s1460] ss:$2 sm:$0xff] %v1417
      %v1462 = vld.sshfl [vmem:[#allocation1 + $0x10] sm:$0xff pattern:$0x75316420]
      %s1463 = scalar_lea.vmem [#allocation1], 32
      %1464 = vst [vmem:[%s1463] ss:$2 sm:$0xff] %v1421
      %v1465 = vld.sshfl [vmem:[#allocation1 + $0x20] sm:$0xff pattern:$0x75316420]
      %s1466 = scalar_lea.vmem [#allocation1], 48
      %1467 = vst [vmem:[%s1466] ss:$2 sm:$0xff] %v1425
      %v1468 = vld.sshfl [vmem:[#allocation1 + $0x30] sm:$0xff pattern:$0x75316420]
      %1469 = vrot.lane.b32.xlu0 %v1459, 64
      %v1470 = vpop.permute.xlu0 %1469
      %1471 = vrot.lane.b32.xlu0 %v1462, 64
      %v1472 = vpop.permute.xlu0 %1471
      %1473 = vrot.lane.b32.xlu0 %v1465, 64
      %v1474 = vpop.permute.xlu0 %1473
      %1475 = vrot.lane.b32.xlu0 %v1468, 64
      %v1476 = vpop.permute.xlu0 %1475
      %1485 = vst [vmem:[#allocation1] ss:$2 sm:$0xff] %v1414
      %v1486 = vld.sshfl [vmem:[#allocation1] sm:$0xff pattern:$0x75316420]
      %s1487 = scalar_lea.vmem [#allocation1], 16
      %1488 = vst [vmem:[%s1487] ss:$2 sm:$0xff] %v1418
      %v1489 = vld.sshfl [vmem:[#allocation1 + $0x10] sm:$0xff pattern:$0x75316420]
      %s1490 = scalar_lea.vmem [#allocation1], 32
      %1491 = vst [vmem:[%s1490] ss:$2 sm:$0xff] %v1422
      %v1492 = vld.sshfl [vmem:[#allocation1 + $0x20] sm:$0xff pattern:$0x75316420]
      %s1493 = scalar_lea.vmem [#allocation1], 48
      %1494 = vst [vmem:[%s1493] ss:$2 sm:$0xff] %v1426
      %v1495 = vld.sshfl [vmem:[#allocation1 + $0x30] sm:$0xff pattern:$0x75316420]
      %1496 = vrot.lane.b32.xlu0 %v1486, 96
      %v1497 = vpop.permute.xlu0 %1496
      %1498 = vrot.lane.b32.xlu0 %v1489, 96
      %v1499 = vpop.permute.xlu0 %1498
      %1500 = vrot.lane.b32.xlu0 %v1492, 96
      %v1501 = vpop.permute.xlu0 %1500
      %1502 = vrot.lane.b32.xlu0 %v1495, 96
      %v1503 = vpop.permute.xlu0 %1502
      %v1508 = vsel %vm1275, %v1411, %v1443
      %v1509 = vsel %vm1275, %v1415, %v1445
      %v1510 = vsel %vm1275, %v1419, %v1447
      %v1511 = vsel %vm1275, %v1423, %v1449
      %vm1512 = vcmask 523264
      %v1513 = vsel %vm1512, %v1508, %v1470
      %v1514 = vsel %vm1512, %v1509, %v1472
      %v1515 = vsel %vm1512, %v1510, %v1474
      %v1516 = vsel %vm1512, %v1511, %v1476
      %vm1517 = vcmask 785408
      %v1518 = vsel %vm1517, %v1513, %v1497
      %v1519 = vsel %vm1517, %v1514, %v1499
      %v1520 = vsel %vm1517, %v1515, %v1501
      %v1521 = vsel %vm1517, %v1516, %v1503
      %1522 = vst [vmem:[%s305] sm:$0xf] %v1518
      %1523 = vst [vmem:[%s305 + $0x4] sm:$0xf] %v1519
      %1524 = vst [vmem:[%s305 + $0x8] sm:$0xf] %v1520
      %1525 = vst [vmem:[%s305 + $0xc] sm:$0xf] %v1521
      %p1526 = scmp.lt.s32.totalorder %s19, 1
      %s1527 = scalar_select %p1526, %s19, 1
      %s1528 = smul.addr %s1527, 4
      %s1529 = smul.addr %s1528, 4
      %s1530 = scalar_lea.vmem %s8, %s1529
      // Predicated region
      $region53: #{od3d_model_forward.1} parent=51 // pred_check
        %p1531 = pneg %p210
      $region54: #{od3d_model_forward.1} parent=51 // pred_check_branch
        %1533 = sbr.rel (%p1531) target = $region56
      $region55: #{od3d_model_forward.1} parent=51 // pred_region
        _
      $region56: #{od3d_model_forward.1} parent=51 // pred_fallthru
        _
    $region52: #{od3d_model_forward.1} parent=5 // pred_fallthru
      _
    %p1534 = scmp.le.s32.totalorder 2, %s14
    // Predicated region
    $region57: #{od3d_model_forward.1} parent=5 // pred_check
      %p1535 = pneg %p1534
    $region58: #{od3d_model_forward.1} parent=5 // pred_check_branch
      %1537 = sbr.rel (%p1535) target = $region60
    $region59: #{od3d_model_forward.1} parent=5 // pred_region
      %s1538 = ssub.s32 %s14, 2
      // Predicated region
      $region61: #{od3d_model_forward.1} parent=59 // pred_check
        %p1539 = pneg %p216
      $region62: #{od3d_model_forward.1} parent=59 // pred_check_branch
        %1541 = sbr.rel (%p1539) target = $region64
      $region63: #{od3d_model_forward.1} parent=59 // pred_region
        %p1542 = scmp.lt.s32.totalorder %s20, 1
        %s1543 = scalar_select %p1542, %s20, 1
        %s1544 = smul.addr %s1543, 4
        %s1545 = smul.addr %s1544, 4
        %s1546 = scalar_lea.vmem %s8, %s1545
      $region64: #{od3d_model_forward.1} parent=59 // pred_fallthru
        _
    $region60: #{od3d_model_forward.1} parent=5 // pred_fallthru
      _
  $region6: #{od3d_model_forward.1} parent=0 // loop_footer
    %s18 = sadd.s32 1, %s14
  $region7: #{od3d_model_forward.1} parent=0 // loop_footer_branch
    %13 = sbr.rel target = $region3
  $region8: #{od3d_model_forward.1} parent=0 // loop_exit
    _

// kernel: od3d_model_forward.1
$region0: #{od3d_model_forward.1}
  #allocation0 [shape = 'u32[]', space=smem, size = 0x4, offset = 0x4, fixed_abs, tag = 'smem constant byte address 0x4 - core index']
  #allocation1 [shape = 'u32[72,128]{1,0:T(1,128)}', space=vmem, size = 0x9000, scoped, tag = 'internal scratch']
  #allocation2 [shape = 'bf16[5,2,4,48]{3,2,1,0:T(4,128)(2,1)}', space=vmem, size = 0x2800, scoped, tag = 'scratch operand']
  %s0 = inlined_call_operand.vmem [shape: bf16[2,9,4,4,12], index: 0, kind: input, shape index: {}]
  %s1 = inlined_call_operand.vmem [shape: bf16[3,12,16], index: 1, kind: input, shape index: {}]
  %s2 = inlined_call_operand.vmem [shape: f32[1,16], index: 2, kind: input, shape index: {}]
  %s3 = inlined_call_operand.vmem [shape: bf16[3,48,32], index: 3, kind: input, shape index: {}]
  %s4 = inlined_call_operand.vmem [shape: f32[1,32], index: 4, kind: input, shape index: {}]
  %s5 = inlined_call_operand.vmem [shape: bf16[16,32], index: 5, kind: input, shape index: {}]
  %s6 = inlined_call_operand.vmem [shape: bf16[32,32], index: 6, kind: input, shape index: {}]
  %s7 = inlined_call_operand.vmem [shape: f32[1,32], index: 7, kind: input, shape index: {}]
  %s8 = inlined_call_operand.vmem [shape: f32[2,4,4,128], index: 8, kind: output, shape index: {}]
  %s9 = sld [smem:[#allocation0]]
  $region65: #{od3d_model_forward.1} parent=0
    _
  %s11 = ssub.s32 1, %s9
  %s12 = scalar_select 0, %s11, %s9
  loop: start=0, step=1, limit=4
  $region2: #{od3d_model_forward.1} parent=0 // loop_pre_header
    _
  $region3: #{od3d_model_forward.1} parent=0 // loop_header
    %s14 = sphi 0, %s18
    %p15 = scmp.ge.s32.totalorder %s14, 4
    %s24 = sphi 0, %s26
    %s27 = sphi 0, %s24
    %s28 = sphi 0, %s27
    %s44 = sphi 0, %s28
    %s48 = sphi 0, %s48
    %s50 = sphi 0, %s48
    %s51 = sphi 0, %s50
    %s65 = sphi 0, %s51
    %s69 = sphi 0, %s69
    %s71 = sphi 0, %s69
    %s72 = sphi 0, %s71
    %s86 = sphi 0, %s72
    %s90 = sphi 0, %s90
    %s92 = sphi 0, %s90
    %s93 = sphi 0, %s92
    %s107 = sphi 0, %s93
    %s111 = sphi 0, %s111
    %s113 = sphi 0, %s111
    %s114 = sphi 0, %s113
    %s128 = sphi 0, %s114
    %s132 = sphi 0, %s132
    %s134 = sphi 0, %s132
    %s135 = sphi 0, %s134
    %s149 = sphi 0, %s135
    %s153 = sphi 0, %s153
    %s155 = sphi 0, %s153
    %s156 = sphi 0, %s155
    %s170 = sphi 0, %s156
    %s174 = sphi 0, %s174
    %s176 = sphi 0, %s174
    %s177 = sphi 0, %s176
    %s191 = sphi 0, %s177
    %s197 = sphi 0, %s199
    %s200 = sphi 0, %s197
    %s201 = sphi 0, %s200
    %s217 = sphi 0, %s201
  $region4: #{od3d_model_forward.1} parent=0 // loop_header_branch
    %17 = sbr.rel (%p15) target = $region8
  $region5: #{od3d_model_forward.1} parent=0 // loop_body
    %s19 = ssub.s32 %s14, 1
    %s20 = ssub.s32 %s14, 2
    %s21 = sadd.s32 %s14, 1
    %s22 = ssub.s32 %s14, %s21
    %p23 = scmp.eq.s32.totalorder %s22, 0
    %s25 = sadd.s32 %s24, 1
    %s26 = scalar_select %p23, %s24, %s25
    %p29 = pneg %p23
    %p30 = scmp.eq.s32.totalorder %s14, 1
    %p31 = por %p29, %p30
    %p32 = scmp.ne.s32.totalorder %s24, %s27
    %p33 = scmp.eq.s32.totalorder %s14, 0
    %p34 = por %p32, %p33
    %p35 = scmp.ne.s32.totalorder %s24, %s27
    %p36 = scmp.eq.s32.totalorder %s19, 1
    %p37 = por %p35, %p36
    %p38 = scmp.ne.s32.totalorder %s27, %s28
    %p39 = scmp.eq.s32.totalorder %s19, 0
    %p40 = por %p38, %p39
    %p41 = scmp.ne.s32.totalorder %s27, %s28
    %p42 = scmp.eq.s32.totalorder %s20, 1
    %p43 = por %p41, %p42
    %p45 = scmp.ne.s32.totalorder %s28, %s44
    %p46 = scmp.eq.s32.totalorder %s20, 0
    %p47 = por %p45, %p46
    %s49 = sadd.s32 %s48, 1
    %p52 = scmp.eq.s32.totalorder %s14, 1
    %p53 = scmp.ne.s32.totalorder %s48, %s50
    %p54 = scmp.eq.s32.totalorder %s14, 0
    %p55 = por %p53, %p54
    %p56 = scmp.ne.s32.totalorder %s48, %s50
    %p57 = scmp.eq.s32.totalorder %s19, 1
    %p58 = por %p56, %p57
    %p59 = scmp.ne.s32.totalorder %s50, %s51
    %p60 = scmp.eq.s32.totalorder %s19, 0
    %p61 = por %p59, %p60
    %p62 = scmp.ne.s32.totalorder %s50, %s51
    %p63 = scmp.eq.s32.totalorder %s20, 1
    %p64 = por %p62, %p63
    %p66 = scmp.ne.s32.totalorder %s51, %s65
    %p67 = scmp.eq.s32.totalorder %s20, 0
    %p68 = por %p66, %p67
    %s70 = sadd.s32 %s69, 1
    %p73 = scmp.eq.s32.totalorder %s14, 1
    %p74 = scmp.ne.s32.totalorder %s69, %s71
    %p75 = scmp.eq.s32.totalorder %s14, 0
    %p76 = por %p74, %p75
    %p77 = scmp.ne.s32.totalorder %s69, %s71
    %p78 = scmp.eq.s32.totalorder %s19, 1
    %p79 = por %p77, %p78
    %p80 = scmp.ne.s32.totalorder %s71, %s72
    %p81 = scmp.eq.s32.totalorder %s19, 0
    %p82 = por %p80, %p81
    %p83 = scmp.ne.s32.totalorder %s71, %s72
    %p84 = scmp.eq.s32.totalorder %s20, 1
    %p85 = por %p83, %p84
    %p87 = scmp.ne.s32.totalorder %s72, %s86
    %p88 = scmp.eq.s32.totalorder %s20, 0
    %p89 = por %p87, %p88
    %s91 = sadd.s32 %s90, 1
    %p94 = scmp.eq.s32.totalorder %s14, 1
    %p95 = scmp.ne.s32.totalorder %s90, %s92
    %p96 = scmp.eq.s32.totalorder %s14, 0
    %p97 = por %p95, %p96
    %p98 = scmp.ne.s32.totalorder %s90, %s92
    %p99 = scmp.eq.s32.totalorder %s19, 1
    %p100 = por %p98, %p99
    %p101 = scmp.ne.s32.totalorder %s92, %s93
    %p102 = scmp.eq.s32.totalorder %s19, 0
    %p103 = por %p101, %p102
    %p104 = scmp.ne.s32.totalorder %s92, %s93
    %p105 = scmp.eq.s32.totalorder %s20, 1
    %p106 = por %p104, %p105
    %p108 = scmp.ne.s32.totalorder %s93, %s107
    %p109 = scmp.eq.s32.totalorder %s20, 0
    %p110 = por %p108, %p109
    %s112 = sadd.s32 %s111, 1
    %p115 = scmp.eq.s32.totalorder %s14, 1
    %p116 = scmp.ne.s32.totalorder %s111, %s113
    %p117 = scmp.eq.s32.totalorder %s14, 0
    %p118 = por %p116, %p117
    %p119 = scmp.ne.s32.totalorder %s111, %s113
    %p120 = scmp.eq.s32.totalorder %s19, 1
    %p121 = por %p119, %p120
    %p122 = scmp.ne.s32.totalorder %s113, %s114
    %p123 = scmp.eq.s32.totalorder %s19, 0
    %p124 = por %p122, %p123
    %p125 = scmp.ne.s32.totalorder %s113, %s114
    %p126 = scmp.eq.s32.totalorder %s20, 1
    %p127 = por %p125, %p126
    %p129 = scmp.ne.s32.totalorder %s114, %s128
    %p130 = scmp.eq.s32.totalorder %s20, 0
    %p131 = por %p129, %p130
    %s133 = sadd.s32 %s132, 1
    %p136 = scmp.eq.s32.totalorder %s14, 1
    %p137 = scmp.ne.s32.totalorder %s132, %s134
    %p138 = scmp.eq.s32.totalorder %s14, 0
    %p139 = por %p137, %p138
    %p140 = scmp.ne.s32.totalorder %s132, %s134
    %p141 = scmp.eq.s32.totalorder %s19, 1
    %p142 = por %p140, %p141
    %p143 = scmp.ne.s32.totalorder %s134, %s135
    %p144 = scmp.eq.s32.totalorder %s19, 0
    %p145 = por %p143, %p144
    %p146 = scmp.ne.s32.totalorder %s134, %s135
    %p147 = scmp.eq.s32.totalorder %s20, 1
    %p148 = por %p146, %p147
    %p150 = scmp.ne.s32.totalorder %s135, %s149
    %p151 = scmp.eq.s32.totalorder %s20, 0
    %p152 = por %p150, %p151
    %s154 = sadd.s32 %s153, 1
    %p157 = scmp.eq.s32.totalorder %s14, 1
    %p158 = scmp.ne.s32.totalorder %s153, %s155
    %p159 = scmp.eq.s32.totalorder %s14, 0
    %p160 = por %p158, %p159
    %p161 = scmp.ne.s32.totalorder %s153, %s155
    %p162 = scmp.eq.s32.totalorder %s19, 1
    %p163 = por %p161, %p162
    %p164 = scmp.ne.s32.totalorder %s155, %s156
    %p165 = scmp.eq.s32.totalorder %s19, 0
    %p166 = por %p164, %p165
    %p167 = scmp.ne.s32.totalorder %s155, %s156
    %p168 = scmp.eq.s32.totalorder %s20, 1
    %p169 = por %p167, %p168
    %p171 = scmp.ne.s32.totalorder %s156, %s170
    %p172 = scmp.eq.s32.totalorder %s20, 0
    %p173 = por %p171, %p172
    %s175 = sadd.s32 %s174, 1
    %p178 = scmp.eq.s32.totalorder %s14, 1
    %p179 = scmp.ne.s32.totalorder %s174, %s176
    %p180 = scmp.eq.s32.totalorder %s14, 0
    %p181 = por %p179, %p180
    %p182 = scmp.ne.s32.totalorder %s174, %s176
    %p183 = scmp.eq.s32.totalorder %s19, 1
    %p184 = por %p182, %p183
    %p185 = scmp.ne.s32.totalorder %s176, %s177
    %p186 = scmp.eq.s32.totalorder %s19, 0
    %p187 = por %p185, %p186
    %p188 = scmp.ne.s32.totalorder %s176, %s177
    %p189 = scmp.eq.s32.totalorder %s20, 1
    %p190 = por %p188, %p189
    %p192 = scmp.ne.s32.totalorder %s177, %s191
    %p193 = scmp.eq.s32.totalorder %s20, 0
    %p194 = por %p192, %p193
    %s195 = ssub.s32 %s14, %s21
    %p196 = scmp.eq.s32.totalorder %s195, 0
    %s198 = sadd.s32 %s197, 1
    %s199 = scalar_select %p196, %s197, %s198
    %p202 = pneg %p196
    %p203 = scmp.eq.s32.totalorder %s14, 1
    %p204 = por %p202, %p203
    %p205 = scmp.ne.s32.totalorder %s197, %s200
    %p206 = scmp.eq.s32.totalorder %s14, 0
    %p207 = por %p205, %p206
    %p208 = scmp.ne.s32.totalorder %s197, %s200
    %p209 = scmp.eq.s32.totalorder %s19, 1
    %p210 = por %p208, %p209
    %p211 = scmp.ne.s32.totalorder %s200, %s201
    %p212 = scmp.eq.s32.totalorder %s19, 0
    %p213 = por %p211, %p212
    %p214 = scmp.ne.s32.totalorder %s200, %s201
    %p215 = scmp.eq.s32.totalorder %s20, 1
    %p216 = por %p214, %p215
    %p218 = scmp.ne.s32.totalorder %s201, %s217
    %p219 = scmp.eq.s32.totalorder %s20, 0
    %p220 = por %p218, %p219
    %p221 = scmp.le.s32.totalorder 1, %s14
    %p222 = scmp.lt.s32.totalorder %s14, 3
    %p223 = pnand %p221, %p222
    %p224 = pneg %p223
    // Predicated region
    $region9: #{od3d_model_forward.1} parent=5 // pred_check
      _
    $region10: #{od3d_model_forward.1} parent=5 // pred_check_branch
      %226 = sbr.rel (%p223) target = $region12
    $region11: #{od3d_model_forward.1} parent=5 // pred_region
      %s227 = ssub.s32 %s14, 1
      // Predicated region
      $region13: #{od3d_model_forward.1} parent=11 // pred_check
        %p228 = pneg %p61
      $region14: #{od3d_model_forward.1} parent=11 // pred_check_branch
        %230 = sbr.rel (%p228) target = $region16
      $region15: #{od3d_model_forward.1} parent=11 // pred_region
        _
      $region16: #{od3d_model_forward.1} parent=11 // pred_fallthru
        _
      // Predicated region
      $region17: #{od3d_model_forward.1} parent=11 // pred_check
        %p231 = pneg %p82
      $region18: #{od3d_model_forward.1} parent=11 // pred_check_branch
        %233 = sbr.rel (%p231) target = $region20
      $region19: #{od3d_model_forward.1} parent=11 // pred_region
        _
      $region20: #{od3d_model_forward.1} parent=11 // pred_fallthru
        _
      // Predicated region
      $region21: #{od3d_model_forward.1} parent=11 // pred_check
        %p234 = pneg %p103
      $region22: #{od3d_model_forward.1} parent=11 // pred_check_branch
        %236 = sbr.rel (%p234) target = $region24
      $region23: #{od3d_model_forward.1} parent=11 // pred_region
        _
      $region24: #{od3d_model_forward.1} parent=11 // pred_fallthru
        _
      // Predicated region
      $region25: #{od3d_model_forward.1} parent=11 // pred_check
        %p237 = pneg %p124
      $region26: #{od3d_model_forward.1} parent=11 // pred_check_branch
        %239 = sbr.rel (%p237) target = $region28
      $region27: #{od3d_model_forward.1} parent=11 // pred_region
        _
      $region28: #{od3d_model_forward.1} parent=11 // pred_fallthru
        _
      // Predicated region
      $region29: #{od3d_model_forward.1} parent=11 // pred_check
        %p240 = pneg %p145
      $region30: #{od3d_model_forward.1} parent=11 // pred_check_branch
        %242 = sbr.rel (%p240) target = $region32
      $region31: #{od3d_model_forward.1} parent=11 // pred_region
        _
      $region32: #{od3d_model_forward.1} parent=11 // pred_fallthru
        _
      // Predicated region
      $region33: #{od3d_model_forward.1} parent=11 // pred_check
        %p243 = pneg %p166
      $region34: #{od3d_model_forward.1} parent=11 // pred_check_branch
        %245 = sbr.rel (%p243) target = $region36
      $region35: #{od3d_model_forward.1} parent=11 // pred_region
        _
      $region36: #{od3d_model_forward.1} parent=11 // pred_fallthru
        _
      // Predicated region
      $region37: #{od3d_model_forward.1} parent=11 // pred_check
        %p246 = pneg %p187
      $region38: #{od3d_model_forward.1} parent=11 // pred_check_branch
        %248 = sbr.rel (%p246) target = $region40
      $region39: #{od3d_model_forward.1} parent=11 // pred_region
        _
      $region40: #{od3d_model_forward.1} parent=11 // pred_fallthru
        _
    $region12: #{od3d_model_forward.1} parent=5 // pred_fallthru
      _
    %p249 = scmp.lt.s32.totalorder %s14, 2
    // Predicated region
    $region41: #{od3d_model_forward.1} parent=5 // pred_check
      %p250 = pneg %p249
    $region42: #{od3d_model_forward.1} parent=5 // pred_check_branch
      %252 = sbr.rel (%p250) target = $region44
    $region43: #{od3d_model_forward.1} parent=5 // pred_region
      // Predicated region
      $region45: #{od3d_model_forward.1} parent=43 // pred_check
        %p253 = pneg %p34
      $region46: #{od3d_model_forward.1} parent=43 // pred_check_branch
        %255 = sbr.rel (%p253) target = $region48
      $region47: #{od3d_model_forward.1} parent=43 // pred_region
        %p256 = scmp.lt.s32.totalorder %s14, 1
        %s257 = scalar_select %p256, %s14, 1
        %s258 = smul.addr %s257, 36
        %s259 = smul.addr %s258, 2
        %s260 = scalar_lea.vmem %s0, %s259
      $region48: #{od3d_model_forward.1} parent=43 // pred_fallthru
        _
    $region44: #{od3d_model_forward.1} parent=5 // pred_fallthru
      _
    %p261 = scmp.le.s32.totalorder 1, %s14
    %p262 = scmp.lt.s32.totalorder %s14, 3
    %p263 = pnand %p261, %p262
    %p264 = pneg %p263
    // Predicated region
    $region49: #{od3d_model_forward.1} parent=5 // pred_check
      _
    $region50: #{od3d_model_forward.1} parent=5 // pred_check_branch
      %266 = sbr.rel (%p263) target = $region52
    $region51: #{od3d_model_forward.1} parent=5 // pred_region
      %s267 = ssub.s32 %s14, 1
      %p268 = scmp.lt.s32.totalorder %s19, 1
      %s269 = scalar_select %p268, %s19, 1
      %s270 = smul.addr %s269, 36
      %s271 = smul.addr %s270, 2
      %s272 = scalar_lea.vmem %s0, %s271
      %p273 = pneg %p40
      %p274 = pneg %p37
      %p275 = pneg %p61
      %p276 = pneg %p58
      %p277 = pneg %p82
      %p278 = pneg %p79
      %p279 = pneg %p103
      %p280 = pneg %p100
      %p281 = pneg %p124
      %p282 = pneg %p121
      %p283 = pneg %p145
      %p284 = pneg %p142
      %p285 = pneg %p166
      %p286 = pneg %p163
      %p287 = pneg %p187
      %p288 = pneg %p184
      %p289 = pneg %p213
      %p290 = pneg %p210
      %p291 = scmp.lt.s32.totalorder %s19, 1
      %s292 = scalar_select %p291, %s19, 1
      %s293 = smul.addr %s292, 4
      %s294 = smul.addr %s293, 4
      %s295 = scalar_lea.vmem %s8, %s294
      %p296 = scmp.lt.s32.totalorder %s19, 1
      %s297 = scalar_select %p296, %s19, 1
      %s298 = smul.addr %s297, 36
      %s299 = smul.addr %s298, 2
      %s300 = scalar_lea.vmem %s0, %s299
      %p301 = scmp.lt.s32.totalorder %s19, 1
      %s302 = scalar_select %p301, %s19, 1
      %s303 = smul.addr %s302, 4
      %s304 = smul.addr %s303, 4
      %s305 = scalar_lea.vmem %s8, %s304
      %v307 = vld [vmem:[%s300] sm:$0x3]
      %v308 = vld [vmem:[%s300 + $0x2] sm:$0x3]
      %v309 = vld [vmem:[%s300 + $0x8] sm:$0x3]
      %v310 = vld [vmem:[%s300 + $0xa] sm:$0x3]
      %v311 = vld [vmem:[%s300 + $0x10] sm:$0x3]
      %v312 = vld [vmem:[%s300 + $0x12] sm:$0x3]
      %v313 = vld [vmem:[%s300 + $0x18] sm:$0x3]
      %v314 = vld [vmem:[%s300 + $0x1a] sm:$0x3]
      %v315 = vld [vmem:[%s300 + $0x20] sm:$0x3]
      %v316 = vld [vmem:[%s300 + $0x22] sm:$0x3]
      %v317 = vld [vmem:[%s300 + $0x28] sm:$0x3]
      %v318 = vld [vmem:[%s300 + $0x2a] sm:$0x3]
      %v319 = vld [vmem:[%s300 + $0x30] sm:$0x3]
      %v320 = vld [vmem:[%s300 + $0x32] sm:$0x3]
      %v321 = vld [vmem:[%s300 + $0x38] sm:$0x3]
      %v322 = vld [vmem:[%s300 + $0x3a] sm:$0x3]
      %v323 = vld [vmem:[%s1] sm:$0xf]
      %v324 = vld [vmem:[%s1 + $0x4] sm:$0x3]
      %326 = vst [vmem:[#allocation1] ss:$4 sm:$0xff] %v307
      %s328 = scalar_lea.vmem [#allocation1], 1
      %329 = vst [vmem:[%s328] ss:$4 sm:$0xff] %v308
      %s331 = scalar_lea.vmem [#allocation1], 2
      %332 = vst [vmem:[%s331] ss:$4 sm:$0xff] %v309
      %s334 = scalar_lea.vmem [#allocation1], 3
      %335 = vst [vmem:[%s334] ss:$4 sm:$0xff] %v310
      %s337 = scalar_lea.vmem [#allocation1], 32
      %338 = vst [vmem:[%s337] ss:$4 sm:$0xff] %v311
      %s340 = scalar_lea.vmem [#allocation1], 33
      %341 = vst [vmem:[%s340] ss:$4 sm:$0xff] %v312
      %s343 = scalar_lea.vmem [#allocation1], 34
      %344 = vst [vmem:[%s343] ss:$4 sm:$0xff] %v313
      %s346 = scalar_lea.vmem [#allocation1], 35
      %347 = vst [vmem:[%s346] ss:$4 sm:$0xff] %v314
      %v348 = vld.sshfl [vmem:[#allocation1] sm:$0xff pattern:$0x73625140]
      %v349 = vld.sshfl [vmem:[#allocation1 + $0x20] sm:$0xff pattern:$0x73625140]
      %351 = vst [vmem:[#allocation1] ss:$4 sm:$0xff] %v315
      %353 = vst [vmem:[%s328] ss:$4 sm:$0xff] %v316
      %355 = vst [vmem:[%s331] ss:$4 sm:$0xff] %v317
      %357 = vst [vmem:[%s334] ss:$4 sm:$0xff] %v318
      %359 = vst [vmem:[%s337] ss:$4 sm:$0xff] %v319
      %361 = vst [vmem:[%s340] ss:$4 sm:$0xff] %v320
      %363 = vst [vmem:[%s343] ss:$4 sm:$0xff] %v321
      %365 = vst [vmem:[%s346] ss:$4 sm:$0xff] %v322
      %v366 = vld.sshfl [vmem:[#allocation1] sm:$0xff pattern:$0x73625140]
      %v367 = vld.sshfl [vmem:[#allocation1 + $0x20] sm:$0xff pattern:$0x73625140]
      %v370 = vunpack.c.l.b16 %v323
      %v371 = vunpack.c.l.b16 %v324
      %v372 = vpack.c.b16 %v371, %v370
      %vm373 = vcmask 97280
      %v374 = vsel %vm373, %v348, 0
      %v376 = vsel %vm373, %v349, 0
      %v378 = vsel %vm373, %v366, 0
      %v380 = vsel %vm373, %v367, 0
      %vm382 = vcmask 1045504
      %v384 = vsel %vm382, %v372, 0
      %386 = vmatpush.bf16.msra.mxu0 0
      %387 = vmatpush.bf16.msra.mxu0 0
      %388 = vmatpush.bf16.msra.mxu0 0
      %389 = vmatpush.bf16.msra.mxu0 0
      %390 = vmatpush.bf16.msra.mxu0 0
      %391 = vmatpush.bf16.msra.mxu0 0
      %392 = vmatpush.bf16.msra.mxu0 0
      %393 = vmatpush.bf16.msra.mxu0 %v384
      %394 = vmatmul.bf16.gmra.mxu0 %v374
      %v395 = vpop.f32.mrf.mxu0
      %v396 = vadd.f32 0.0, %v395
      %v397 = vpop.f32.mrf.mxu0
      %v398 = vadd.f32 0.0, %v397
      %399 = vmatmul.bf16.gmra.mxu0 %v376
      %v400 = vpop.f32.mrf.mxu0
      %v401 = vadd.f32 0.0, %v400
      %v402 = vpop.f32.mrf.mxu0
      %v403 = vadd.f32 0.0, %v402
      %404 = vmatmul.bf16.gmra.mxu0 %v378
      %v405 = vpop.f32.mrf.mxu0
      %v406 = vadd.f32 0.0, %v405
      %v407 = vpop.f32.mrf.mxu0
      %v408 = vadd.f32 0.0, %v407
      %409 = vmatmul.bf16.gmra.mxu0 %v380
      %v410 = vpop.f32.mrf.mxu0
      %v411 = vadd.f32 0.0, %v410
      %v412 = vpop.f32.mrf.mxu0
      %v413 = vadd.f32 0.0, %v412
      %414 = vdwg.mxu0
      %v423 = vrot.slane %v396, 4
      %v424 = vrot.slane %v398, 4
      %v425 = vrot.slane %v401, 4
      %v426 = vrot.slane %v403, 4
      %v427 = vrot.slane %v406, 4
      %v428 = vrot.slane %v408, 4
      %v429 = vrot.slane %v411, 4
      %v430 = vrot.slane %v413, 4
      %s439 = scalar_lea.vmem %s300, 4
      %v440 = vld [vmem:[%s439] sm:$0x3]
      %v441 = vld [vmem:[%s439 + $0x2] sm:$0x3]
      %v442 = vld [vmem:[%s439 + $0x8] sm:$0x3]
      %v443 = vld [vmem:[%s439 + $0xa] sm:$0x3]
      %v444 = vld [vmem:[%s439 + $0x10] sm:$0x3]
      %v445 = vld [vmem:[%s439 + $0x12] sm:$0x3]
      %v446 = vld [vmem:[%s439 + $0x18] sm:$0x3]
      %v447 = vld [vmem:[%s439 + $0x1a] sm:$0x3]
      %v448 = vld [vmem:[%s439 + $0x20] sm:$0x3]
      %v449 = vld [vmem:[%s439 + $0x22] sm:$0x3]
      %v450 = vld [vmem:[%s439 + $0x28] sm:$0x3]
      %v451 = vld [vmem:[%s439 + $0x2a] sm:$0x3]
      %v452 = vld [vmem:[%s439 + $0x30] sm:$0x3]
      %v453 = vld [vmem:[%s439 + $0x32] sm:$0x3]
      %v454 = vld [vmem:[%s439 + $0x38] sm:$0x3]
      %v455 = vld [vmem:[%s439 + $0x3a] sm:$0x3]
      %s456 = scalar_lea.vmem %s1, 8
      %v457 = vld [vmem:[%s456] sm:$0xf]
      %v458 = vld [vmem:[%s456 + $0x4] sm:$0x3]
      %460 = vst [vmem:[#allocation1] ss:$4 sm:$0xff] %v440
      %s462 = scalar_lea.vmem [#allocation1], 1
      %463 = vst [vmem:[%s462] ss:$4 sm:$0xff] %v441
      %s465 = scalar_lea.vmem [#allocation1], 2
      %466 = vst [vmem:[%s465] ss:$4 sm:$0xff] %v442
      %s468 = scalar_lea.vmem [#allocation1], 3
      %469 = vst [vmem:[%s468] ss:$4 sm:$0xff] %v443
      %s471 = scalar_lea.vmem [#allocation1], 32
      %472 = vst [vmem:[%s471] ss:$4 sm:$0xff] %v444
      %s474 = scalar_lea.vmem [#allocation1], 33
      %475 = vst [vmem:[%s474] ss:$4 sm:$0xff] %v445
      %s477 = scalar_lea.vmem [#allocation1], 34
      %478 = vst [vmem:[%s477] ss:$4 sm:$0xff] %v446
      %s480 = scalar_lea.vmem [#allocation1], 35
      %481 = vst [vmem:[%s480] ss:$4 sm:$0xff] %v447
      %v482 = vld.sshfl [vmem:[#allocation1] sm:$0xff pattern:$0x73625140]
      %v483 = vld.sshfl [vmem:[#allocation1 + $0x20] sm:$0xff pattern:$0x73625140]
      %485 = vst [vmem:[#allocation1] ss:$4 sm:$0xff] %v448
      %487 = vst [vmem:[%s462] ss:$4 sm:$0xff] %v449
      %489 = vst [vmem:[%s465] ss:$4 sm:$0xff] %v450
      %491 = vst [vmem:[%s468] ss:$4 sm:$0xff] %v451
      %493 = vst [vmem:[%s471] ss:$4 sm:$0xff] %v452
      %495 = vst [vmem:[%s474] ss:$4 sm:$0xff] %v453
      %497 = vst [vmem:[%s477] ss:$4 sm:$0xff] %v454
      %499 = vst [vmem:[%s480] ss:$4 sm:$0xff] %v455
      %v500 = vld.sshfl [vmem:[#allocation1] sm:$0xff pattern:$0x73625140]
      %v501 = vld.sshfl [vmem:[#allocation1 + $0x20] sm:$0xff pattern:$0x73625140]
      %v504 = vunpack.c.l.b16 %v457
      %v505 = vunpack.c.l.b16 %v458
      %v506 = vpack.c.b16 %v505, %v504
      %v507 = vsel %vm373, %v482, 0
      %v509 = vsel %vm373, %v483, 0
      %v511 = vsel %vm373, %v500, 0
      %v513 = vsel %vm373, %v501, 0
      %v516 = vsel %vm382, %v506, 0
      %518 = vmatpush.bf16.msra.mxu0 0
      %519 = vmatpush.bf16.msra.mxu0 0
      %520 = vmatpush.bf16.msra.mxu0 0
      %521 = vmatpush.bf16.msra.mxu0 0
      %522 = vmatpush.bf16.msra.mxu0 0
      %523 = vmatpush.bf16.msra.mxu0 0
      %524 = vmatpush.bf16.msra.mxu0 0
      %525 = vmatpush.bf16.msra.mxu0 %v516
      %526 = vmatmul.bf16.gmra.mxu0 %v507
      %v527 = vpop.f32.mrf.mxu0
      %v528 = vadd.f32 0.0, %v527
      %v529 = vpop.f32.mrf.mxu0
      %v530 = vadd.f32 0.0, %v529
      %531 = vmatmul.bf16.gmra.mxu0 %v509
      %v532 = vpop.f32.mrf.mxu0
      %v533 = vadd.f32 0.0, %v532
      %v534 = vpop.f32.mrf.mxu0
      %v535 = vadd.f32 0.0, %v534
      %536 = vmatmul.bf16.gmra.mxu0 %v511
      %v537 = vpop.f32.mrf.mxu0
      %v538 = vadd.f32 0.0, %v537
      %v539 = vpop.f32.mrf.mxu0
      %v540 = vadd.f32 0.0, %v539
      %541 = vmatmul.bf16.gmra.mxu0 %v513
      %v542 = vpop.f32.mrf.mxu0
      %v543 = vadd.f32 0.0, %v542
      %v544 = vpop.f32.mrf.mxu0
      %v545 = vadd.f32 0.0, %v544
      %546 = vdwg.mxu0
      %v555 = vrot.slane %v528, 4
      %v556 = vrot.slane %v530, 4
      %v557 = vrot.slane %v533, 4
      %v558 = vrot.slane %v535, 4
      %v559 = vrot.slane %v538, 4
      %v560 = vrot.slane %v540, 4
      %v561 = vrot.slane %v543, 4
      %v562 = vrot.slane %v545, 4
      %v571 = vadd.f32 %v396, %v528
      %v572 = vadd.f32 %v423, %v555
      %v573 = vadd.f32 %v398, %v530
      %v574 = vadd.f32 %v424, %v556
      %v575 = vadd.f32 %v401, %v533
      %v576 = vadd.f32 %v425, %v557
      %v577 = vadd.f32 %v403, %v535
      %v578 = vadd.f32 %v426, %v558
      %v579 = vadd.f32 %v406, %v538
      %v580 = vadd.f32 %v427, %v559
      %v581 = vadd.f32 %v408, %v540
      %v582 = vadd.f32 %v428, %v560
      %v583 = vadd.f32 %v411, %v543
      %v584 = vadd.f32 %v429, %v561
      %v585 = vadd.f32 %v413, %v545
      %v586 = vadd.f32 %v430, %v562
      %s587 = scalar_lea.vmem %s300, 8
      %v588 = vld [vmem:[%s587] sm:$0x3]
      %v589 = vld [vmem:[%s587 + $0x2] sm:$0x3]
      %v590 = vld [vmem:[%s587 + $0x8] sm:$0x3]
      %v591 = vld [vmem:[%s587 + $0xa] sm:$0x3]
      %v592 = vld [vmem:[%s587 + $0x10] sm:$0x3]
      %v593 = vld [vmem:[%s587 + $0x12] sm:$0x3]
      %v594 = vld [vmem:[%s587 + $0x18] sm:$0x3]
      %v595 = vld [vmem:[%s587 + $0x1a] sm:$0x3]
      %v596 = vld [vmem:[%s587 + $0x20] sm:$0x3]
      %v597 = vld [vmem:[%s587 + $0x22] sm:$0x3]
      %v598 = vld [vmem:[%s587 + $0x28] sm:$0x3]
      %v599 = vld [vmem:[%s587 + $0x2a] sm:$0x3]
      %v600 = vld [vmem:[%s587 + $0x30] sm:$0x3]
      %v601 = vld [vmem:[%s587 + $0x32] sm:$0x3]
      %v602 = vld [vmem:[%s587 + $0x38] sm:$0x3]
      %v603 = vld [vmem:[%s587 + $0x3a] sm:$0x3]
      %s604 = scalar_lea.vmem %s1, 16
      %v605 = vld [vmem:[%s604] sm:$0xf]
      %v606 = vld [vmem:[%s604 + $0x4] sm:$0x3]
      %608 = vst [vmem:[#allocation1] ss:$4 sm:$0xff] %v588
      %s610 = scalar_lea.vmem [#allocation1], 1
      %611 = vst [vmem:[%s610] ss:$4 sm:$0xff] %v589
      %s613 = scalar_lea.vmem [#allocation1], 2
      %614 = vst [vmem:[%s613] ss:$4 sm:$0xff] %v590
      %s616 = scalar_lea.vmem [#allocation1], 3
      %617 = vst [vmem:[%s616] ss:$4 sm:$0xff] %v591
      %s619 = scalar_lea.vmem [#allocation1], 32
      %620 = vst [vmem:[%s619] ss:$4 sm:$0xff] %v592
      %s622 = scalar_lea.vmem [#allocation1], 33
      %623 = vst [vmem:[%s622] ss:$4 sm:$0xff] %v593
      %s625 = scalar_lea.vmem [#allocation1], 34
      %626 = vst [vmem:[%s625] ss:$4 sm:$0xff] %v594
      %s628 = scalar_lea.vmem [#allocation1], 35
      %629 = vst [vmem:[%s628] ss:$4 sm:$0xff] %v595
      %v630 = vld.sshfl [vmem:[#allocation1] sm:$0xff pattern:$0x73625140]
      %v631 = vld.sshfl [vmem:[#allocation1 + $0x20] sm:$0xff pattern:$0x73625140]
      %633 = vst [vmem:[#allocation1] ss:$4 sm:$0xff] %v596
      %635 = vst [vmem:[%s610] ss:$4 sm:$0xff] %v597
      %637 = vst [vmem:[%s613] ss:$4 sm:$0xff] %v598
      %639 = vst [vmem:[%s616] ss:$4 sm:$0xff] %v599
      %641 = vst [vmem:[%s619] ss:$4 sm:$0xff] %v600
      %643 = vst [vmem:[%s622] ss:$4 sm:$0xff] %v601
      %645 = vst [vmem:[%s625] ss:$4 sm:$0xff] %v602
      %647 = vst [vmem:[%s628] ss:$4 sm:$0xff] %v603
      %v648 = vld.sshfl [vmem:[#allocation1] sm:$0xff pattern:$0x73625140]
      %v649 = vld.sshfl [vmem:[#allocation1 + $0x20] sm:$0xff pattern:$0x73625140]
      %v652 = vunpack.c.l.b16 %v605
      %v653 = vunpack.c.l.b16 %v606
      %v654 = vpack.c.b16 %v653, %v652
      %v655 = vsel %vm373, %v630, 0
      %v657 = vsel %vm373, %v631, 0
      %v659 = vsel %vm373, %v648, 0
      %v661 = vsel %vm373, %v649, 0
      %v664 = vsel %vm382, %v654, 0
      %666 = vmatpush.bf16.msra.mxu0 0
      %667 = vmatpush.bf16.msra.mxu0 0
      %668 = vmatpush.bf16.msra.mxu0 0
      %669 = vmatpush.bf16.msra.mxu0 0
      %670 = vmatpush.bf16.msra.mxu0 0
      %671 = vmatpush.bf16.msra.mxu0 0
      %672 = vmatpush.bf16.msra.mxu0 0
      %673 = vmatpush.bf16.msra.mxu0 %v664
      %674 = vmatmul.bf16.gmra.mxu0 %v655
      %v675 = vpop.f32.mrf.mxu0
      %v676 = vadd.f32 0.0, %v675
      %v677 = vpop.f32.mrf.mxu0
      %v678 = vadd.f32 0.0, %v677
      %679 = vmatmul.bf16.gmra.mxu0 %v657
      %v680 = vpop.f32.mrf.mxu0
      %v681 = vadd.f32 0.0, %v680
      %v682 = vpop.f32.mrf.mxu0
      %v683 = vadd.f32 0.0, %v682
      %684 = vmatmul.bf16.gmra.mxu0 %v659
      %v685 = vpop.f32.mrf.mxu0
      %v686 = vadd.f32 0.0, %v685
      %v687 = vpop.f32.mrf.mxu0
      %v688 = vadd.f32 0.0, %v687
      %689 = vmatmul.bf16.gmra.mxu0 %v661
      %v690 = vpop.f32.mrf.mxu0
      %v691 = vadd.f32 0.0, %v690
      %v692 = vpop.f32.mrf.mxu0
      %v693 = vadd.f32 0.0, %v692
      %694 = vdwg.mxu0
      %v703 = vrot.slane %v676, 4
      %v704 = vrot.slane %v678, 4
      %v705 = vrot.slane %v681, 4
      %v706 = vrot.slane %v683, 4
      %v707 = vrot.slane %v686, 4
      %v708 = vrot.slane %v688, 4
      %v709 = vrot.slane %v691, 4
      %v710 = vrot.slane %v693, 4
      %v719 = vadd.f32 %v571, %v676
      %v720 = vadd.f32 %v572, %v703
      %v721 = vadd.f32 %v573, %v678
      %v722 = vadd.f32 %v574, %v704
      %v723 = vadd.f32 %v575, %v681
      %v724 = vadd.f32 %v576, %v705
      %v725 = vadd.f32 %v577, %v683
      %v726 = vadd.f32 %v578, %v706
      %v727 = vadd.f32 %v579, %v686
      %v728 = vadd.f32 %v580, %v707
      %v729 = vadd.f32 %v581, %v688
      %v730 = vadd.f32 %v582, %v708
      %v731 = vadd.f32 %v583, %v691
      %v732 = vadd.f32 %v584, %v709
      %v733 = vadd.f32 %v585, %v693
      %v734 = vadd.f32 %v586, %v710
      %v735 = vld [vmem:[%s2] sm:$0x1]
      %v737 = vperm.slane %v735, 0
      %v739 = vadd.f32 %v719, %v737
      %v740 = vadd.f32 %v720, %v737
      %v741 = vadd.f32 %v721, %v737
      %v742 = vadd.f32 %v722, %v737
      %v743 = vadd.f32 %v723, %v737
      %v744 = vadd.f32 %v724, %v737
      %v745 = vadd.f32 %v725, %v737
      %v746 = vadd.f32 %v726, %v737
      %v747 = vadd.f32 %v727, %v737
      %v748 = vadd.f32 %v728, %v737
      %v749 = vadd.f32 %v729, %v737
      %v750 = vadd.f32 %v730, %v737
      %v751 = vadd.f32 %v731, %v737
      %v752 = vadd.f32 %v732, %v737
      %v753 = vadd.f32 %v733, %v737
      %v754 = vadd.f32 %v734, %v737
      %v755 = vmax.f32 %v739, 0.0
      %v756 = vmax.f32 %v740, 0.0
      %v757 = vmax.f32 %v741, 0.0
      %v758 = vmax.f32 %v742, 0.0
      %v759 = vmax.f32 %v743, 0.0
      %v760 = vmax.f32 %v744, 0.0
      %v761 = vmax.f32 %v745, 0.0
      %v762 = vmax.f32 %v746, 0.0
      %v763 = vmax.f32 %v747, 0.0
      %v764 = vmax.f32 %v748, 0.0
      %v765 = vmax.f32 %v749, 0.0
      %v766 = vmax.f32 %v750, 0.0
      %v767 = vmax.f32 %v751, 0.0
      %v768 = vmax.f32 %v752, 0.0
      %v769 = vmax.f32 %v753, 0.0
      %v770 = vmax.f32 %v754, 0.0
      %v771 = vpack.c.bf16 %v755, %v755
      %v772 = vpack.c.bf16 %v756, %v756
      %v773 = vpack.c.bf16 %v757, %v757
      %v774 = vpack.c.bf16 %v758, %v758
      %v775 = vpack.c.bf16 %v759, %v759
      %v776 = vpack.c.bf16 %v760, %v760
      %v777 = vpack.c.bf16 %v761, %v761
      %v778 = vpack.c.bf16 %v762, %v762
      %v779 = vpack.c.bf16 %v763, %v763
      %v780 = vpack.c.bf16 %v764, %v764
      %v781 = vpack.c.bf16 %v765, %v765
      %v782 = vpack.c.bf16 %v766, %v766
      %v783 = vpack.c.bf16 %v767, %v767
      %v784 = vpack.c.bf16 %v768, %v768
      %v785 = vpack.c.bf16 %v769, %v769
      %v786 = vpack.c.bf16 %v770, %v770
      %vm787 = vcmask 386048
      %788 = vst.msk [vmem:[#allocation2] sm:$0x3] %vm787, 0
      %vm789 = vcmask 122880
      %vm790 = vsmask.f32 256
      %vm791 = vmand %vm789, %vm790
      %v792 = vld [vmem:[#allocation2] sm:$0x1]
      %v793 = vsel %vm791, 0, %v792
      %794 = vst [vmem:[#allocation2] sm:$0x1] %v793
      %v795 = vld [vmem:[#allocation2 + $0x2] sm:$0x1]
      %v796 = vsel %vm791, 0, %v795
      %797 = vst [vmem:[#allocation2 + $0x2] sm:$0x1] %v796
      %v798 = vld [vmem:[#allocation2 + $0x4] sm:$0x1]
      %v799 = vsel %vm791, 0, %v798
      %800 = vst [vmem:[#allocation2 + $0x4] sm:$0x1] %v799
      %v801 = vld [vmem:[#allocation2 + $0x6] sm:$0x1]
      %v802 = vsel %vm791, 0, %v801
      %803 = vst [vmem:[#allocation2 + $0x6] sm:$0x1] %v802
      %v804 = vld [vmem:[#allocation2 + $0x8] sm:$0x1]
      %v805 = vsel %vm791, 0, %v804
      %806 = vst [vmem:[#allocation2 + $0x8] sm:$0x1] %v805
      %v807 = vld [vmem:[#allocation2 + $0xa] sm:$0x1]
      %v808 = vsel %vm791, 0, %v807
      %809 = vst [vmem:[#allocation2 + $0xa] sm:$0x1] %v808
      %v810 = vld [vmem:[#allocation2 + $0xc] sm:$0x1]
      %v811 = vsel %vm791, 0, %v810
      %812 = vst [vmem:[#allocation2 + $0xc] sm:$0x1] %v811
      %v813 = vld [vmem:[#allocation2 + $0xe] sm:$0x1]
      %v814 = vsel %vm791, 0, %v813
      %815 = vst [vmem:[#allocation2 + $0xe] sm:$0x1] %v814
      %v816 = vld [vmem:[#allocation2 + $0x10] sm:$0x1]
      %v817 = vsel %vm791, 0, %v816
      %818 = vst [vmem:[#allocation2 + $0x10] sm:$0x1] %v817
      %v819 = vld [vmem:[#allocation2 + $0x12] sm:$0x1]
      %v820 = vsel %vm791, 0, %v819
      %821 = vst [vmem:[#allocation2 + $0x12] sm:$0x1] %v820
      %v826 = vrot.slane %v771, 2
      %v827 = vrot.slane %v775, 2
      %v828 = vrot.slane %v779, 2
      %v829 = vrot.slane %v783, 2
      %vm830 = vcmask 1041408
      %v833 = vsel %vm830, %v771, %v826
      %v837 = vsel %vm830, %v775, %v827
      %v841 = vsel %vm830, %v779, %v828
      %v845 = vsel %vm830, %v783, %v829
      %847 = vrot.lane.b32.xlu0 %v833, 16
      %v848 = vpop.permute.xlu0 %847
      %849 = vrot.lane.b32.xlu0 %v837, 16
      %v850 = vpop.permute.xlu0 %849
      %851 = vrot.lane.b32.xlu0 %v841, 16
      %v852 = vpop.permute.xlu0 %851
      %853 = vrot.lane.b32.xlu0 %v845, 16
      %v854 = vpop.permute.xlu0 %853
      %s859 = scalar_lea.vmem [#allocation2], 2
      %vm860 = vcmask 255104
      %861 = vst.msk [vmem:[%s859] sm:$0x3] %vm860, %v848
      %862 = vst.msk [vmem:[%s859 + $0x4] sm:$0x3] %vm860, %v850
      %863 = vst.msk [vmem:[%s859 + $0x8] sm:$0x3] %vm860, %v852
      %864 = vst.msk [vmem:[%s859 + $0xc] sm:$0x3] %vm860, %v854
      %v869 = vrot.slane %v772, 2
      %v870 = vrot.slane %v776, 2
      %v871 = vrot.slane %v780, 2
      %v872 = vrot.slane %v784, 2
      %v875 = vsel %vm830, %v772, %v869
      %v879 = vsel %vm830, %v776, %v870
      %v883 = vsel %vm830, %v780, %v871
      %v887 = vsel %vm830, %v784, %v872
      %889 = vrot.lane.b32.xlu0 %v875, 32
      %v890 = vpop.permute.xlu0 %889
      %891 = vrot.lane.b32.xlu0 %v879, 32
      %v892 = vpop.permute.xlu0 %891
      %893 = vrot.lane.b32.xlu0 %v883, 32
      %v894 = vpop.permute.xlu0 %893
      %895 = vrot.lane.b32.xlu0 %v887, 32
      %v896 = vpop.permute.xlu0 %895
      %vm901 = vcmask 386304
      %902 = vst.msk [vmem:[%s859] sm:$0x3] %vm901, %v890
      %903 = vst.msk [vmem:[%s859 + $0x4] sm:$0x3] %vm901, %v892
      %904 = vst.msk [vmem:[%s859 + $0x8] sm:$0x3] %vm901, %v894
      %905 = vst.msk [vmem:[%s859 + $0xc] sm:$0x3] %vm901, %v896
      %v906 = vshrl.u32 %v875, 16
      %v908 = vrot.slane %v906, 7
      %v909 = vshll.u32 %v875, 16
      %v911 = vor.u32 %v908, %v909
      %v912 = vshrl.u32 %v879, 16
      %v914 = vrot.slane %v912, 7
      %v915 = vshll.u32 %v879, 16
      %v917 = vor.u32 %v914, %v915
      %v918 = vshrl.u32 %v883, 16
      %v920 = vrot.slane %v918, 7
      %v921 = vshll.u32 %v883, 16
      %v923 = vor.u32 %v920, %v921
      %v924 = vshrl.u32 %v887, 16
      %v926 = vrot.slane %v924, 7
      %v927 = vshll.u32 %v887, 16
      %v929 = vor.u32 %v926, %v927
      %vm934 = vcmask 123904
      %vm935 = vsmask.f32 7938
      %vm936 = vmand %vm934, %vm935
      %v937 = vld [vmem:[%s859] sm:$0x3]
      %v938 = vsel %vm936, %v911, %v937
      %939 = vst [vmem:[%s859] sm:$0x3] %v938
      %v940 = vld [vmem:[%s859 + $0x4] sm:$0x3]
      %v941 = vsel %vm936, %v917, %v940
      %942 = vst [vmem:[%s859 + $0x4] sm:$0x3] %v941
      %v943 = vld [vmem:[%s859 + $0x8] sm:$0x3]
      %v944 = vsel %vm936, %v923, %v943
      %945 = vst [vmem:[%s859 + $0x8] sm:$0x3] %v944
      %v946 = vld [vmem:[%s859 + $0xc] sm:$0x3]
      %v947 = vsel %vm936, %v929, %v946
      %948 = vst [vmem:[%s859 + $0xc] sm:$0x3] %v947
      %v953 = vrot.slane %v773, 2
      %v954 = vrot.slane %v777, 2
      %v955 = vrot.slane %v781, 2
      %v956 = vrot.slane %v785, 2
      %v959 = vsel %vm830, %v773, %v953
      %v963 = vsel %vm830, %v777, %v954
      %v967 = vsel %vm830, %v781, %v955
      %v971 = vsel %vm830, %v785, %v956
      %973 = vrot.lane.b32.xlu0 %v959, 16
      %v974 = vpop.permute.xlu0 %973
      %975 = vrot.lane.b32.xlu0 %v963, 16
      %v976 = vpop.permute.xlu0 %975
      %977 = vrot.lane.b32.xlu0 %v967, 16
      %v978 = vpop.permute.xlu0 %977
      %979 = vrot.lane.b32.xlu0 %v971, 16
      %v980 = vpop.permute.xlu0 %979
      %s985 = scalar_lea.vmem [#allocation2], 4
      %986 = vst.msk [vmem:[%s985] sm:$0x3] %vm860, %v974
      %987 = vst.msk [vmem:[%s985 + $0x4] sm:$0x3] %vm860, %v976
      %988 = vst.msk [vmem:[%s985 + $0x8] sm:$0x3] %vm860, %v978
      %989 = vst.msk [vmem:[%s985 + $0xc] sm:$0x3] %vm860, %v980
      %v994 = vrot.slane %v774, 2
      %v995 = vrot.slane %v778, 2
      %v996 = vrot.slane %v782, 2
      %v997 = vrot.slane %v786, 2
      %v1000 = vsel %vm830, %v774, %v994
      %v1004 = vsel %vm830, %v778, %v995
      %v1008 = vsel %vm830, %v782, %v996
      %v1012 = vsel %vm830, %v786, %v997
      %1014 = vrot.lane.b32.xlu0 %v1000, 32
      %v1015 = vpop.permute.xlu0 %1014
      %1016 = vrot.lane.b32.xlu0 %v1004, 32
      %v1017 = vpop.permute.xlu0 %1016
      %1018 = vrot.lane.b32.xlu0 %v1008, 32
      %v1019 = vpop.permute.xlu0 %1018
      %1020 = vrot.lane.b32.xlu0 %v1012, 32
      %v1021 = vpop.permute.xlu0 %1020
      %1026 = vst.msk [vmem:[%s985] sm:$0x3] %vm901, %v1015
      %1027 = vst.msk [vmem:[%s985 + $0x4] sm:$0x3] %vm901, %v1017
      %1028 = vst.msk [vmem:[%s985 + $0x8] sm:$0x3] %vm901, %v1019
      %1029 = vst.msk [vmem:[%s985 + $0xc] sm:$0x3] %vm901, %v1021
      %v1030 = vshrl.u32 %v1000, 16
      %v1032 = vrot.slane %v1030, 7
      %v1033 = vshll.u32 %v1000, 16
      %v1035 = vor.u32 %v1032, %v1033
      %v1036 = vshrl.u32 %v1004, 16
      %v1038 = vrot.slane %v1036, 7
      %v1039 = vshll.u32 %v1004, 16
      %v1041 = vor.u32 %v1038, %v1039
      %v1042 = vshrl.u32 %v1008, 16
      %v1044 = vrot.slane %v1042, 7
      %v1045 = vshll.u32 %v1008, 16
      %v1047 = vor.u32 %v1044, %v1045
      %v1048 = vshrl.u32 %v1012, 16
      %v1050 = vrot.slane %v1048, 7
      %v1051 = vshll.u32 %v1012, 16
      %v1053 = vor.u32 %v1050, %v1051
      %v1058 = vld [vmem:[%s985] sm:$0x3]
      %v1059 = vsel %vm936, %v1035, %v1058
      %1060 = vst [vmem:[%s985] sm:$0x3] %v1059
      %v1061 = vld [vmem:[%s985 + $0x4] sm:$0x3]
      %v1062 = vsel %vm936, %v1041, %v1061
      %1063 = vst [vmem:[%s985 + $0x4] sm:$0x3] %v1062
      %v1064 = vld [vmem:[%s985 + $0x8] sm:$0x3]
      %v1065 = vsel %vm936, %v1047, %v1064
      %1066 = vst [vmem:[%s985 + $0x8] sm:$0x3] %v1065
      %v1067 = vld [vmem:[%s985 + $0xc] sm:$0x3]
      %v1068 = vsel %vm936, %v1053, %v1067
      %1069 = vst [vmem:[%s985 + $0xc] sm:$0x3] %v1068
      %v1070 = vld [vmem:[#allocation2] sm:$0x3]
      %v1071 = vld [vmem:[#allocation2 + $0x4] sm:$0x3]
      %v1072 = vld [vmem:[#allocation2 + $0x8] sm:$0x3]
      %v1073 = vld [vmem:[#allocation2 + $0xc] sm:$0x3]
      %v1074 = vld [vmem:[%s3] sm:$0xf]
      %v1075 = vld [vmem:[%s3 + $0x4] sm:$0xf]
      %v1076 = vld [vmem:[%s3 + $0x8] sm:$0xf]
      %v1077 = vld [vmem:[%s3 + $0xc] sm:$0xf]
      %v1078 = vld [vmem:[%s3 + $0x10] sm:$0xf]
      %v1079 = vld [vmem:[%s3 + $0x14] sm:$0xf]
      %1081 = vst [vmem:[#allocation1] ss:$4 sm:$0xff] %v1070
      %s1083 = scalar_lea.vmem [#allocation1], 1
      %1084 = vst [vmem:[%s1083] ss:$4 sm:$0xff] %v1071
      %s1086 = scalar_lea.vmem [#allocation1], 2
      %1087 = vst [vmem:[%s1086] ss:$4 sm:$0xff] %v1072
      %s1089 = scalar_lea.vmem [#allocation1], 3
      %1090 = vst [vmem:[%s1089] ss:$4 sm:$0xff] %v1073
      %v1091 = vld.sshfl [vmem:[#allocation1] sm:$0xff pattern:$0x73625140]
      %v1098 = vunpack.c.l.b16 %v1074
      %v1099 = vunpack.c.l.b16 %v1075
      %v1100 = vunpack.c.l.b16 %v1076
      %v1101 = vunpack.c.l.b16 %v1077
      %v1102 = vunpack.c.l.b16 %v1078
      %v1103 = vunpack.c.l.b16 %v1079
      %v1104 = vpack.c.b16 %v1099, %v1098
      %v1105 = vpack.c.b16 %v1101, %v1100
      %v1106 = vpack.c.b16 %v1103, %v1102
      %vm1110 = vcmask 392192
      %v1111 = vsel %vm1110, %v1091, 0
      %1113 = vmatpush.bf16.msra.mxu0 0
      %1114 = vmatpush.bf16.msra.mxu0 0
      %1115 = vmatpush.bf16.msra.mxu0 0
      %1116 = vmatpush.bf16.msra.mxu0 0
      %1117 = vmatpush.bf16.msra.mxu0 0
      %1118 = vmatpush.bf16.msra.mxu0 %v1106
      %1119 = vmatpush.bf16.msra.mxu0 %v1105
      %1120 = vmatpush.bf16.msra.mxu0 %v1104
      %1121 = vmatmul.bf16.gmra.mxu0 %v1111
      %v1122 = vpop.f32.mrf.mxu0
      %v1123 = vadd.f32 0.0, %v1122
      %v1124 = vpop.f32.mrf.mxu0
      %v1125 = vadd.f32 0.0, %v1124
      %1126 = vdwg.mxu0
      %v1129 = vrot.slane %v1123, 4
      %v1130 = vrot.slane %v1125, 4
      %v1133 = vld [vmem:[%s859] sm:$0x3]
      %v1134 = vld [vmem:[%s859 + $0x4] sm:$0x3]
      %v1135 = vld [vmem:[%s859 + $0x8] sm:$0x3]
      %v1136 = vld [vmem:[%s859 + $0xc] sm:$0x3]
      %s1137 = scalar_lea.vmem %s3, 24
      %v1138 = vld [vmem:[%s1137] sm:$0xf]
      %v1139 = vld [vmem:[%s1137 + $0x4] sm:$0xf]
      %v1140 = vld [vmem:[%s1137 + $0x8] sm:$0xf]
      %v1141 = vld [vmem:[%s1137 + $0xc] sm:$0xf]
      %v1142 = vld [vmem:[%s1137 + $0x10] sm:$0xf]
      %v1143 = vld [vmem:[%s1137 + $0x14] sm:$0xf]
      %1145 = vst [vmem:[#allocation1] ss:$4 sm:$0xff] %v1133
      %s1147 = scalar_lea.vmem [#allocation1], 1
      %1148 = vst [vmem:[%s1147] ss:$4 sm:$0xff] %v1134
      %s1150 = scalar_lea.vmem [#allocation1], 2
      %1151 = vst [vmem:[%s1150] ss:$4 sm:$0xff] %v1135
      %s1153 = scalar_lea.vmem [#allocation1], 3
      %1154 = vst [vmem:[%s1153] ss:$4 sm:$0xff] %v1136
      %v1155 = vld.sshfl [vmem:[#allocation1] sm:$0xff pattern:$0x73625140]
      %v1162 = vunpack.c.l.b16 %v1138
      %v1163 = vunpack.c.l.b16 %v1139
      %v1164 = vunpack.c.l.b16 %v1140
      %v1165 = vunpack.c.l.b16 %v1141
      %v1166 = vunpack.c.l.b16 %v1142
      %v1167 = vunpack.c.l.b16 %v1143
      %v1168 = vpack.c.b16 %v1163, %v1162
      %v1169 = vpack.c.b16 %v1165, %v1164
      %v1170 = vpack.c.b16 %v1167, %v1166
      %v1174 = vsel %vm1110, %v1155, 0
      %1176 = vmatpush.bf16.msra.mxu0 0
      %1177 = vmatpush.bf16.msra.mxu0 0
      %1178 = vmatpush.bf16.msra.mxu0 0
      %1179 = vmatpush.bf16.msra.mxu0 0
      %1180 = vmatpush.bf16.msra.mxu0 0
      %1181 = vmatpush.bf16.msra.mxu0 %v1170
      %1182 = vmatpush.bf16.msra.mxu0 %v1169
      %1183 = vmatpush.bf16.msra.mxu0 %v1168
      %1184 = vmatmul.bf16.gmra.mxu0 %v1174
      %v1185 = vpop.f32.mrf.mxu0
      %v1186 = vadd.f32 0.0, %v1185
      %v1187 = vpop.f32.mrf.mxu0
      %v1188 = vadd.f32 0.0, %v1187
      %1189 = vdwg.mxu0
      %v1192 = vrot.slane %v1186, 4
      %v1193 = vrot.slane %v1188, 4
      %v1196 = vadd.f32 %v1123, %v1186
      %v1197 = vadd.f32 %v1129, %v1192
      %v1198 = vadd.f32 %v1125, %v1188
      %v1199 = vadd.f32 %v1130, %v1193
      %v1200 = vld [vmem:[%s985] sm:$0x3]
      %v1201 = vld [vmem:[%s985 + $0x4] sm:$0x3]
      %v1202 = vld [vmem:[%s985 + $0x8] sm:$0x3]
      %v1203 = vld [vmem:[%s985 + $0xc] sm:$0x3]
      %s1204 = scalar_lea.vmem %s3, 48
      %v1205 = vld [vmem:[%s1204] sm:$0xf]
      %v1206 = vld [vmem:[%s1204 + $0x4] sm:$0xf]
      %v1207 = vld [vmem:[%s1204 + $0x8] sm:$0xf]
      %v1208 = vld [vmem:[%s1204 + $0xc] sm:$0xf]
      %v1209 = vld [vmem:[%s1204 + $0x10] sm:$0xf]
      %v1210 = vld [vmem:[%s1204 + $0x14] sm:$0xf]
      %1212 = vst [vmem:[#allocation1] ss:$4 sm:$0xff] %v1200
      %s1214 = scalar_lea.vmem [#allocation1], 1
      %1215 = vst [vmem:[%s1214] ss:$4 sm:$0xff] %v1201
      %s1217 = scalar_lea.vmem [#allocation1], 2
      %1218 = vst [vmem:[%s1217] ss:$4 sm:$0xff] %v1202
      %s1220 = scalar_lea.vmem [#allocation1], 3
      %1221 = vst [vmem:[%s1220] ss:$4 sm:$0xff] %v1203
      %v1222 = vld.sshfl [vmem:[#allocation1] sm:$0xff pattern:$0x73625140]
      %v1229 = vunpack.c.l.b16 %v1205
      %v1230 = vunpack.c.l.b16 %v1206
      %v1231 = vunpack.c.l.b16 %v1207
      %v1232 = vunpack.c.l.b16 %v1208
      %v1233 = vunpack.c.l.b16 %v1209
      %v1234 = vunpack.c.l.b16 %v1210
      %v1235 = vpack.c.b16 %v1230, %v1229
      %v1236 = vpack.c.b16 %v1232, %v1231
      %v1237 = vpack.c.b16 %v1234, %v1233
      %v1241 = vsel %vm1110, %v1222, 0
      %1243 = vmatpush.bf16.msra.mxu0 0
      %1244 = vmatpush.bf16.msra.mxu0 0
      %1245 = vmatpush.bf16.msra.mxu0 0
      %1246 = vmatpush.bf16.msra.mxu0 0
      %1247 = vmatpush.bf16.msra.mxu0 0
      %1248 = vmatpush.bf16.msra.mxu0 %v1237
      %1249 = vmatpush.bf16.msra.mxu0 %v1236
      %1250 = vmatpush.bf16.msra.mxu0 %v1235
      %1251 = vmatmul.bf16.gmra.mxu0 %v1241
      %v1252 = vpop.f32.mrf.mxu0
      %v1253 = vadd.f32 0.0, %v1252
      %v1254 = vpop.f32.mrf.mxu0
      %v1255 = vadd.f32 0.0, %v1254
      %1256 = vdwg.mxu0
      %v1259 = vrot.slane %v1253, 4
      %v1260 = vrot.slane %v1255, 4
      %v1263 = vadd.f32 %v1196, %v1253
      %v1264 = vadd.f32 %v1197, %v1259
      %v1265 = vadd.f32 %v1198, %v1255
      %v1266 = vadd.f32 %v1199, %v1260
      %v1267 = vld [vmem:[%s4] sm:$0x1]
      %v1269 = vperm.slane %v1267, 0
      %v1271 = vadd.f32 %v1263, %v1269
      %v1272 = vadd.f32 %v1264, %v1269
      %v1273 = vadd.f32 %v1265, %v1269
      %v1274 = vadd.f32 %v1266, %v1269
      %v1275 = vmax.f32 %v1271, 0.0
      %v1276 = vmax.f32 %v1272, 0.0
      %v1277 = vmax.f32 %v1273, 0.0
      %v1278 = vmax.f32 %v1274, 0.0
      %v1279 = vpack.c.bf16 %v1275, %v1275
      %v1280 = vpack.c.bf16 %v1276, %v1276
      %v1281 = vpack.c.bf16 %v1277, %v1277
      %v1282 = vpack.c.bf16 %v1278, %v1278
      %v1283 = vld [vmem:[%s6] sm:$0xf]
      %v1284 = vld [vmem:[%s6 + $0x4] sm:$0xf]
      %v1285 = vld [vmem:[%s6 + $0x8] sm:$0xf]
      %v1286 = vld [vmem:[%s6 + $0xc] sm:$0xf]
      %1288 = vst [vmem:[#allocation1] ss:$4 sm:$0xff] %v1279
      %s1290 = scalar_lea.vmem [#allocation1], 1
      %1291 = vst [vmem:[%s1290] ss:$4 sm:$0xff] %v1280
      %s1293 = scalar_lea.vmem [#allocation1], 2
      %1294 = vst [vmem:[%s1293] ss:$4 sm:$0xff] %v1281
      %s1296 = scalar_lea.vmem [#allocation1], 3
      %1297 = vst [vmem:[%s1296] ss:$4 sm:$0xff] %v1282
      %v1298 = vld.sshfl [vmem:[#allocation1] sm:$0xff pattern:$0x73625140]
      %v1303 = vunpack.c.l.b16 %v1283
      %v1304 = vunpack.c.l.b16 %v1284
      %v1305 = vunpack.c.l.b16 %v1285
      %v1306 = vunpack.c.l.b16 %v1286
      %v1307 = vpack.c.b16 %v1304, %v1303
      %v1308 = vpack.c.b16 %v1306, %v1305
      %vm1311 = vcmask 261120
      %v1312 = vsel %vm1311, %v1298, 0
      %1314 = vmatpush.bf16.msra.mxu0 0
      %1315 = vmatpush.bf16.msra.mxu0 0
      %1316 = vmatpush.bf16.msra.mxu0 0
      %1317 = vmatpush.bf16.msra.mxu0 0
      %1318 = vmatpush.bf16.msra.mxu0 0
      %1319 = vmatpush.bf16.msra.mxu0 0
      %1320 = vmatpush.bf16.msra.mxu0 %v1308
      %1321 = vmatpush.bf16.msra.mxu0 %v1307
      %1322 = vmatmul.bf16.gmra.mxu0 %v1312
      %v1323 = vpop.f32.mrf.mxu0
      %v1324 = vadd.f32 0.0, %v1323
      %v1325 = vpop.f32.mrf.mxu0
      %v1326 = vadd.f32 0.0, %v1325
      %1327 = vdwg.mxu0
      %v1330 = vrot.slane %v1324, 4
      %v1331 = vrot.slane %v1326, 4
      %v1334 = vld [vmem:[%s7] sm:$0x1]
      %v1336 = vperm.slane %v1334, 0
      %v1338 = vadd.f32 %v1324, %v1336
      %v1339 = vadd.f32 %v1330, %v1336
      %v1340 = vadd.f32 %v1326, %v1336
      %v1341 = vadd.f32 %v1331, %v1336
      %v1342 = vld [vmem:[%s5] sm:$0xf]
      %v1343 = vld [vmem:[%s5 + $0x4] sm:$0xf]
      %1344 = vst [vmem:[#allocation1] ss:$4 sm:$0xff] %v771
      %s1345 = scalar_lea.vmem [#allocation1], 1
      %1346 = vst [vmem:[%s1345] ss:$4 sm:$0xff] %v772
      %s1347 = scalar_lea.vmem [#allocation1], 2
      %1348 = vst [vmem:[%s1347] ss:$4 sm:$0xff] %v773
      %s1349 = scalar_lea.vmem [#allocation1], 3
      %1350 = vst [vmem:[%s1349] ss:$4 sm:$0xff] %v774
      %s1351 = scalar_lea.vmem [#allocation1], 32
      %1352 = vst [vmem:[%s1351] ss:$4 sm:$0xff] %v775
      %s1353 = scalar_lea.vmem [#allocation1], 33
      %1354 = vst [vmem:[%s1353] ss:$4 sm:$0xff] %v776
      %s1355 = scalar_lea.vmem [#allocation1], 34
      %1356 = vst [vmem:[%s1355] ss:$4 sm:$0xff] %v777
      %s1357 = scalar_lea.vmem [#allocation1], 35
      %1358 = vst [vmem:[%s1357] ss:$4 sm:$0xff] %v778
      %v1359 = vld.sshfl [vmem:[#allocation1] sm:$0xff pattern:$0x73625140]
      %v1360 = vld.sshfl [vmem:[#allocation1 + $0x20] sm:$0xff pattern:$0x73625140]
      %1361 = vst [vmem:[#allocation1] ss:$4 sm:$0xff] %v779
      %1362 = vst [vmem:[%s1345] ss:$4 sm:$0xff] %v780
      %1363 = vst [vmem:[%s1347] ss:$4 sm:$0xff] %v781
      %1364 = vst [vmem:[%s1349] ss:$4 sm:$0xff] %v782
      %1365 = vst [vmem:[%s1351] ss:$4 sm:$0xff] %v783
      %1366 = vst [vmem:[%s1353] ss:$4 sm:$0xff] %v784
      %1367 = vst [vmem:[%s1355] ss:$4 sm:$0xff] %v785
      %1368 = vst [vmem:[%s1357] ss:$4 sm:$0xff] %v786
      %v1369 = vld.sshfl [vmem:[#allocation1] sm:$0xff pattern:$0x73625140]
      %v1370 = vld.sshfl [vmem:[#allocation1 + $0x20] sm:$0xff pattern:$0x73625140]
      %v1373 = vunpack.c.l.b16 %v1342
      %v1374 = vunpack.c.l.b16 %v1343
      %v1375 = vpack.c.b16 %v1374, %v1373
      %vm1377 = vcmask 130048
      %v1378 = vsel %vm1377, %v1359, 0
      %v1380 = vsel %vm1377, %v1360, 0
      %v1382 = vsel %vm1377, %v1369, 0
      %v1384 = vsel %vm1377, %v1370, 0
      %1386 = vmatpush.bf16.msra.mxu0 0
      %1387 = vmatpush.bf16.msra.mxu0 0
      %1388 = vmatpush.bf16.msra.mxu0 0
      %1389 = vmatpush.bf16.msra.mxu0 0
      %1390 = vmatpush.bf16.msra.mxu0 0
      %1391 = vmatpush.bf16.msra.mxu0 0
      %1392 = vmatpush.bf16.msra.mxu0 0
      %1393 = vmatpush.bf16.msra.mxu0 %v1375
      %1394 = vmatmul.bf16.gmra.mxu0 %v1378
      %v1395 = vpop.f32.mrf.mxu0
      %v1396 = vadd.f32 0.0, %v1395
      %v1397 = vpop.f32.mrf.mxu0
      %v1398 = vadd.f32 0.0, %v1397
      %1399 = vmatmul.bf16.gmra.mxu0 %v1380
      %v1400 = vpop.f32.mrf.mxu0
      %v1401 = vadd.f32 0.0, %v1400
      %v1402 = vpop.f32.mrf.mxu0
      %v1403 = vadd.f32 0.0, %v1402
      %1404 = vmatmul.bf16.gmra.mxu0 %v1382
      %v1405 = vpop.f32.mrf.mxu0
      %v1406 = vadd.f32 0.0, %v1405
      %v1407 = vpop.f32.mrf.mxu0
      %v1408 = vadd.f32 0.0, %v1407
      %1409 = vmatmul.bf16.gmra.mxu0 %v1384
      %v1410 = vpop.f32.mrf.mxu0
      %v1411 = vadd.f32 0.0, %v1410
      %v1412 = vpop.f32.mrf.mxu0
      %v1413 = vadd.f32 0.0, %v1412
      %1414 = vdwg.mxu0
      %v1423 = vrot.slane %v1396, 4
      %v1424 = vrot.slane %v1398, 4
      %v1425 = vrot.slane %v1401, 4
      %v1426 = vrot.slane %v1403, 4
      %v1427 = vrot.slane %v1406, 4
      %v1428 = vrot.slane %v1408, 4
      %v1429 = vrot.slane %v1411, 4
      %v1430 = vrot.slane %v1413, 4
      %v1439 = vadd.f32 %v1396, %v1338
      %v1440 = vadd.f32 %v1423, %v1338
      %v1441 = vadd.f32 %v1398, %v1338
      %v1442 = vadd.f32 %v1424, %v1338
      %v1443 = vadd.f32 %v1401, %v1339
      %v1444 = vadd.f32 %v1425, %v1339
      %v1445 = vadd.f32 %v1403, %v1339
      %v1446 = vadd.f32 %v1426, %v1339
      %v1447 = vadd.f32 %v1406, %v1340
      %v1448 = vadd.f32 %v1427, %v1340
      %v1449 = vadd.f32 %v1408, %v1340
      %v1450 = vadd.f32 %v1428, %v1340
      %v1451 = vadd.f32 %v1411, %v1341
      %v1452 = vadd.f32 %v1429, %v1341
      %v1453 = vadd.f32 %v1413, %v1341
      %v1454 = vadd.f32 %v1430, %v1341
      %v1455 = vmax.f32 %v1439, 0.0
      %v1456 = vmax.f32 %v1440, 0.0
      %v1457 = vmax.f32 %v1441, 0.0
      %v1458 = vmax.f32 %v1442, 0.0
      %v1459 = vmax.f32 %v1443, 0.0
      %v1460 = vmax.f32 %v1444, 0.0
      %v1461 = vmax.f32 %v1445, 0.0
      %v1462 = vmax.f32 %v1446, 0.0
      %v1463 = vmax.f32 %v1447, 0.0
      %v1464 = vmax.f32 %v1448, 0.0
      %v1465 = vmax.f32 %v1449, 0.0
      %v1466 = vmax.f32 %v1450, 0.0
      %v1467 = vmax.f32 %v1451, 0.0
      %v1468 = vmax.f32 %v1452, 0.0
      %v1469 = vmax.f32 %v1453, 0.0
      %v1470 = vmax.f32 %v1454, 0.0
      %1475 = vst [vmem:[#allocation1] ss:$2 sm:$0xff] %v1456
      %v1476 = vld.sshfl [vmem:[#allocation1] sm:$0xff pattern:$0x75316420]
      %s1477 = scalar_lea.vmem [#allocation1], 16
      %1478 = vst [vmem:[%s1477] ss:$2 sm:$0xff] %v1460
      %v1479 = vld.sshfl [vmem:[#allocation1 + $0x10] sm:$0xff pattern:$0x75316420]
      %s1480 = scalar_lea.vmem [#allocation1], 32
      %1481 = vst [vmem:[%s1480] ss:$2 sm:$0xff] %v1464
      %v1482 = vld.sshfl [vmem:[#allocation1 + $0x20] sm:$0xff pattern:$0x75316420]
      %s1483 = scalar_lea.vmem [#allocation1], 48
      %1484 = vst [vmem:[%s1483] ss:$2 sm:$0xff] %v1468
      %v1485 = vld.sshfl [vmem:[#allocation1 + $0x30] sm:$0xff pattern:$0x75316420]
      %1486 = vrot.lane.b32.xlu0 %v1476, 32
      %v1487 = vpop.permute.xlu0 %1486
      %1488 = vrot.lane.b32.xlu0 %v1479, 32
      %v1489 = vpop.permute.xlu0 %1488
      %1490 = vrot.lane.b32.xlu0 %v1482, 32
      %v1491 = vpop.permute.xlu0 %1490
      %1492 = vrot.lane.b32.xlu0 %v1485, 32
      %v1493 = vpop.permute.xlu0 %1492
      %1502 = vst [vmem:[#allocation1] ss:$2 sm:$0xff] %v1457
      %v1503 = vld.sshfl [vmem:[#allocation1] sm:$0xff pattern:$0x75316420]
      %s1504 = scalar_lea.vmem [#allocation1], 16
      %1505 = vst [vmem:[%s1504] ss:$2 sm:$0xff] %v1461
      %v1506 = vld.sshfl [vmem:[#allocation1 + $0x10] sm:$0xff pattern:$0x75316420]
      %s1507 = scalar_lea.vmem [#allocation1], 32
      %1508 = vst [vmem:[%s1507] ss:$2 sm:$0xff] %v1465
      %v1509 = vld.sshfl [vmem:[#allocation1 + $0x20] sm:$0xff pattern:$0x75316420]
      %s1510 = scalar_lea.vmem [#allocation1], 48
      %1511 = vst [vmem:[%s1510] ss:$2 sm:$0xff] %v1469
      %v1512 = vld.sshfl [vmem:[#allocation1 + $0x30] sm:$0xff pattern:$0x75316420]
      %1513 = vrot.lane.b32.xlu0 %v1503, 64
      %v1514 = vpop.permute.xlu0 %1513
      %1515 = vrot.lane.b32.xlu0 %v1506, 64
      %v1516 = vpop.permute.xlu0 %1515
      %1517 = vrot.lane.b32.xlu0 %v1509, 64
      %v1518 = vpop.permute.xlu0 %1517
      %1519 = vrot.lane.b32.xlu0 %v1512, 64
      %v1520 = vpop.permute.xlu0 %1519
      %1529 = vst [vmem:[#allocation1] ss:$2 sm:$0xff] %v1458
      %v1530 = vld.sshfl [vmem:[#allocation1] sm:$0xff pattern:$0x75316420]
      %s1531 = scalar_lea.vmem [#allocation1], 16
      %1532 = vst [vmem:[%s1531] ss:$2 sm:$0xff] %v1462
      %v1533 = vld.sshfl [vmem:[#allocation1 + $0x10] sm:$0xff pattern:$0x75316420]
      %s1534 = scalar_lea.vmem [#allocation1], 32
      %1535 = vst [vmem:[%s1534] ss:$2 sm:$0xff] %v1466
      %v1536 = vld.sshfl [vmem:[#allocation1 + $0x20] sm:$0xff pattern:$0x75316420]
      %s1537 = scalar_lea.vmem [#allocation1], 48
      %1538 = vst [vmem:[%s1537] ss:$2 sm:$0xff] %v1470
      %v1539 = vld.sshfl [vmem:[#allocation1 + $0x30] sm:$0xff pattern:$0x75316420]
      %1540 = vrot.lane.b32.xlu0 %v1530, 96
      %v1541 = vpop.permute.xlu0 %1540
      %1542 = vrot.lane.b32.xlu0 %v1533, 96
      %v1543 = vpop.permute.xlu0 %1542
      %1544 = vrot.lane.b32.xlu0 %v1536, 96
      %v1545 = vpop.permute.xlu0 %1544
      %1546 = vrot.lane.b32.xlu0 %v1539, 96
      %v1547 = vpop.permute.xlu0 %1546
      %v1552 = vsel %vm1311, %v1455, %v1487
      %v1553 = vsel %vm1311, %v1459, %v1489
      %v1554 = vsel %vm1311, %v1463, %v1491
      %v1555 = vsel %vm1311, %v1467, %v1493
      %vm1556 = vcmask 523264
      %v1557 = vsel %vm1556, %v1552, %v1514
      %v1558 = vsel %vm1556, %v1553, %v1516
      %v1559 = vsel %vm1556, %v1554, %v1518
      %v1560 = vsel %vm1556, %v1555, %v1520
      %vm1561 = vcmask 785408
      %v1562 = vsel %vm1561, %v1557, %v1541
      %v1563 = vsel %vm1561, %v1558, %v1543
      %v1564 = vsel %vm1561, %v1559, %v1545
      %v1565 = vsel %vm1561, %v1560, %v1547
      %1566 = vst [vmem:[%s305] sm:$0xf] %v1562
      %1567 = vst [vmem:[%s305 + $0x4] sm:$0xf] %v1563
      %1568 = vst [vmem:[%s305 + $0x8] sm:$0xf] %v1564
      %1569 = vst [vmem:[%s305 + $0xc] sm:$0xf] %v1565
      %p1570 = scmp.lt.s32.totalorder %s19, 1
      %s1571 = scalar_select %p1570, %s19, 1
      %s1572 = smul.addr %s1571, 4
      %s1573 = smul.addr %s1572, 4
      %s1574 = scalar_lea.vmem %s8, %s1573
      // Predicated region
      $region53: #{od3d_model_forward.1} parent=51 // pred_check
        %p1575 = pneg %p210
      $region54: #{od3d_model_forward.1} parent=51 // pred_check_branch
        %1577 = sbr.rel (%p1575) target = $region56
      $region55: #{od3d_model_forward.1} parent=51 // pred_region
        _
      $region56: #{od3d_model_forward.1} parent=51 // pred_fallthru
        _
    $region52: #{od3d_model_forward.1} parent=5 // pred_fallthru
      _
    %p1578 = scmp.le.s32.totalorder 2, %s14
    // Predicated region
    $region57: #{od3d_model_forward.1} parent=5 // pred_check
      %p1579 = pneg %p1578
    $region58: #{od3d_model_forward.1} parent=5 // pred_check_branch
      %1581 = sbr.rel (%p1579) target = $region60
    $region59: #{od3d_model_forward.1} parent=5 // pred_region
      %s1582 = ssub.s32 %s14, 2
      // Predicated region
      $region61: #{od3d_model_forward.1} parent=59 // pred_check
        %p1583 = pneg %p216
      $region62: #{od3d_model_forward.1} parent=59 // pred_check_branch
        %1585 = sbr.rel (%p1583) target = $region64
      $region63: #{od3d_model_forward.1} parent=59 // pred_region
        %p1586 = scmp.lt.s32.totalorder %s20, 1
        %s1587 = scalar_select %p1586, %s20, 1
        %s1588 = smul.addr %s1587, 4
        %s1589 = smul.addr %s1588, 4
        %s1590 = scalar_lea.vmem %s8, %s1589
      $region64: #{od3d_model_forward.1} parent=59 // pred_fallthru
        _
    $region60: #{od3d_model_forward.1} parent=5 // pred_fallthru
      _
  $region6: #{od3d_model_forward.1} parent=0 // loop_footer
    %s18 = sadd.s32 1, %s14
  $region7: #{od3d_model_forward.1} parent=0 // loop_footer_branch
    %13 = sbr.rel target = $region3
  $region8: #{od3d_model_forward.1} parent=0 // loop_exit
    _

</llo_original>
